<compile_context>
chip_gen: v7x
topology: tpu7x:2x2x1
jax: 0.10.0
libtpu: 0.0.40
codegen_flags: <defaults>
</compile_context>

<pallas_src>
import jax
import jax.numpy as jnp
from jax.experimental import pallas as pl
from jax.experimental.pallas import tpu as pltpu

# ----------------------------- configuration --------------------------------
IN_CHANNEL   = 4          # C   (module default 28; small test size)
EMB          = 32         # emb_size
HIDDEN_FF    = 64         # hidden_size of FeedForward
NUM_HEADS    = 4
NUM_BRANCH   = 3
NUM_CLASSES  = 3
SEQ_LEN      = 8          # L (seq_length)
CONV_K       = 8          # temporal kernel of EmbConvBlock
CONV_HID     = EMB * 4    # EmbConvBlock hidden channels
PORTRAIT_LEN = 4
TAU          = 1.0
BATCH        = 2


# --------------------------- in-kernel helpers -------------------------------
def _gelu(x):
    c = 0.7978845608028654
    return 0.5 * x * (1.0 + jnp.tanh(c * (x + 0.044715 * x * x * x)))


def _softmax(x):
    m = jnp.max(x, axis=-1, keepdims=True)
    e = jnp.exp(x - m)
    return e / jnp.sum(e, axis=-1, keepdims=True)


def _layernorm(x, gamma, beta, eps=1e-5):
    mu = jnp.mean(x, axis=-1, keepdims=True)
    var = jnp.mean((x - mu) ** 2, axis=-1, keepdims=True)
    return (x - mu) * jax.lax.rsqrt(var + eps) * gamma + beta


# ------------------------------ fused kernel ----------------------------------
def branchnet_kernel(
    # data
    x_ref, port_ref,
    # EmbConvBlock (pre-packed: block-diag temporal conv + flattened collapse)
    w1big_ref, b1rep_ref, w2flat_ref, b2_ref,
    # tAPE + Attention
    pe_ref, wq3_ref, wk3_ref, wv3_ref, attn_g_ref, attn_b_ref,
    # FeedForward
    ffw1_ref, ffb1_ref, ffw2_ref, ffb2_ref, ffg_ref, ffbeta_ref,
    # Branching (branch weights concatenated along output lanes)
    wb_ref, bb_ref,
    # PersonalizeByPortrait
    wg_ref, bg_ref, wc_ref, bc_ref,
    # output
    o_ref,
    # scratch
    xpad_scr, xw_scr, attn_scr,
):
    N, L, C = x_ref.shape
    NH, E, dh = wq3_ref.shape
    K = CONV_K
    B = NUM_BRANCH
    pad_l = (K - 1) // 2          # PyTorch padding='same' split for even kernel

    # ---------------- EmbConvBlock: two MXU matmuls ----------------
    # zero-pad along time inside the kernel (no wrapper pad/transpose pass)
    xpad_scr[...] = jnp.zeros_like(xpad_scr)
    xpad_scr[:, pad_l:pad_l + L, :] = x_ref[...]
    # im2col into VMEM scratch: XW[n, l, k*C + c] = xpad[n, l + k, c]
    for k in range(K):
        xw_scr[:, :, k * C:(k + 1) * C] = xpad_scr[:, k:k + L, :]
    xw = xw_scr[...].reshape(N * L, K * C)
    # temporal conv over all channels/taps as one matmul (block-diagonal weight)
    z = jnp.dot(xw, w1big_ref[...], preferred_element_type=jnp.float32)      # (N*L, C*H)
    a = _gelu(z + b1rep_ref[...])
    # channel-collapsing conv as a single (N*L, C*H) x (C*H, E) contraction
    latent = _gelu(jnp.dot(a, w2flat_ref[...], preferred_element_type=jnp.float32)
                   + b2_ref[...])                                            # (N*L, E)

    # ---------------- tAPE + multi-head self-attention ----------------
    xa3 = latent.reshape(N, L, E) + pe_ref[...][None]                        # (N, L, E)
    xb = jnp.broadcast_to(xa3[:, None], (N, NH, L, E)).reshape(N * NH, L, E)
    wq_b = jnp.broadcast_to(wq3_ref[...][None], (N, NH, E, dh)).reshape(N * NH, E, dh)
    wk_b = jnp.broadcast_to(wk3_ref[...][None], (N, NH, E, dh)).reshape(N * NH, E, dh)
    wv_b = jnp.broadcast_to(wv3_ref[...][None], (N, NH, E, dh)).reshape(N * NH, E, dh)
    q = jnp.einsum('ble,bed->bld', xb, wq_b, preferred_element_type=jnp.float32)
    kk = jnp.einsum('ble,bed->bld', xb, wk_b, preferred_element_type=jnp.float32)
    v = jnp.einsum('ble,bed->bld', xb, wv_b, preferred_element_type=jnp.float32)
    # TODO(synk): scale = 1/sqrt(emb_size) kept from the original reconstruction;
    #             standard MHA would use 1/sqrt(d_head).
    s = jnp.einsum('bqd,bkd->bqk', q, kk,
                   preferred_element_type=jnp.float32) * (float(E) ** -0.5)
    p = _softmax(s)
    o = jnp.einsum('bqk,bkd->bqd', p, v, preferred_element_type=jnp.float32)  # (N*NH, L, dh)
    o4 = o.reshape(N, NH, L, dh)
    for h in range(NH):                       # write head outputs contiguously
        attn_scr[:, :, h * dh:(h + 1) * dh] = o4[:, h]
    attn = _layernorm(attn_scr[...].reshape(N * L, E),
                      attn_g_ref[...], attn_b_ref[...])                      # (N*L, E)

    # ---------------- FeedForward (Linear-ReLU-Linear, residual, LayerNorm) ----
    hh = jnp.maximum(jnp.dot(attn, ffw1_ref[...], preferred_element_type=jnp.float32)
                     + ffb1_ref[...], 0.0)
    yy = jnp.dot(hh, ffw2_ref[...], preferred_element_type=jnp.float32) + ffb2_ref[...]
    ff = _layernorm(attn + yy, ffg_ref[...], ffbeta_ref[...])                # (N*L, E)

    # ---------------- Branching: one wide matmul over all branches -------------
    br = jnp.maximum(jnp.dot(ff, wb_ref[...], preferred_element_type=jnp.float32)
                     + bb_ref[...], 0.0)                                     # (N*L, B*E)

    # ---------------- PersonalizeByPortrait ----------------
    logits = jnp.dot(port_ref[...], wg_ref[...],
                     preferred_element_type=jnp.float32) + bg_ref[...]       # (N, B)
    wmix = _softmax(logits / TAU)
    pooled = jnp.mean(br.reshape(N, L, B * E), axis=1)                       # (N, B*E)
    mixed = pooled[:, 0:E] * wmix[:, 0:1]
    for b in range(1, B):
        mixed = mixed + pooled[:, b * E:(b + 1) * E] * wmix[:, b:b + 1]      # (N, E)
    o_ref[...] = jnp.dot(mixed, wc_ref[...],
                         preferred_element_type=jnp.float32) + bc_ref[...]


# ------------------------------ JAX wrapper -----------------------------------
def branchnet_forward(params, x, subjects):
    """x: (N, L, C) signals, subjects: (N, portrait_len) -> (N, num_classes) logits."""
    N, L, C = x.shape
    emb = params['emb']
    w1, b1, w2, b2 = emb['w1'], emb['b1'], emb['w2'], emb['b2']
    H, K = w1.shape
    E = b2.shape[1]
    NH = NUM_HEADS
    dh = E // NH
    B = NUM_BRANCH
    Lp = L + K - 1

    # --- trace-time weight repacking so the kernel runs pure matmuls ---
    # block-diagonal temporal conv weight: W1big[k*C+c, d*H+h] = w1[h, k] * delta(c, d)
    w1big = (w1.T[:, None, None, :] *
             jnp.eye(C, dtype=w1.dtype)[None, :, :, None]).reshape(K * C, C * H)
    b1rep = jnp.tile(b1, (1, C))                       # (1, C*H)
    w2flat = w2.reshape(C * H, E)                      # (C*H, E)

    attn = params['attn']

    def _heads(wm):                                    # (E, E) -> (NH, E, dh)
        return wm.reshape(E, NH, dh).transpose(1, 0, 2)

    wq3, wk3, wv3 = _heads(attn['wq']), _heads(attn['wk']), _heads(attn['wv'])

    brp = params['branch']
    wbcat = jnp.transpose(brp['w'], (1, 0, 2)).reshape(E, B * E)
    bbcat = jnp.transpose(brp['b'], (1, 0, 2)).reshape(1, B * E)

    ff = params['ff']
    pers = params['pers']
    NC = pers['wc'].shape[1]

    args = (x, subjects,
            w1big, b1rep, w2flat, b2,
            params['pe'], wq3, wk3, wv3, attn['ln_g'], attn['ln_b'],
            ff['w1'], ff['b1'], ff['w2'], ff['b2'], ff['ln_g'], ff['ln_b'],
            wbcat, bbcat,
            pers['wg'], pers['bg'], pers['wc'], pers['bc'])

    def _full(a):
        nd = a.ndim
        return pl.BlockSpec(a.shape, lambda i, _nd=nd: (0,) * _nd)

    return pl.pallas_call(
        branchnet_kernel,
        out_shape=jax.ShapeDtypeStruct((N, NC), jnp.float32),
        grid=(1,),
        in_specs=[_full(a) for a in args],
        out_specs=pl.BlockSpec((N, NC), lambda i: (0, 0)),
        scratch_shapes=[
            pltpu.VMEM((N, Lp, C), jnp.float32),        # zero-padded input
            pltpu.VMEM((N, L, K * C), jnp.float32),     # im2col windows
            pltpu.VMEM((N, L, E), jnp.float32),         # merged attention heads
        ],
        compiler_params=pltpu.CompilerParams(dimension_semantics=("arbitrary",)),
    )(*args)


# ------------------------------ parameters ------------------------------------
def make_tape_pe(seq_len, d_model):
    pos = jnp.arange(seq_len, dtype=jnp.float32)[:, None]
    div = jnp.exp(jnp.arange(0, d_model, 2, dtype=jnp.float32) *
                  (-jnp.log(10000.0) / d_model))
    ang = pos * div * (d_model / seq_len)                  # ConvTran tAPE scaling
    pe = jnp.zeros((seq_len, d_model), dtype=jnp.float32)
    pe = pe.at[:, 0::2].set(jnp.sin(ang))
    pe = pe.at[:, 1::2].set(jnp.cos(ang))
    return pe


def init_params(key):
    ks = list(jax.random.split(key, 12))
    it = iter(ks)

    def w(shape, scale=0.05):
        return jax.random.normal(next(it), shape, dtype=jnp.float32) * scale

    return {
        'emb': dict(w1=w((CONV_HID, CONV_K)),
                    b1=jnp.zeros((1, CONV_HID), jnp.float32),
                    w2=w((IN_CHANNEL, CONV_HID, EMB)),
                    b2=jnp.zeros((1, EMB), jnp.float32)),
        'pe': make_tape_pe(SEQ_LEN, EMB),
        'attn': dict(wq=w((EMB, EMB)), wk=w((EMB, EMB)), wv=w((EMB, EMB)),
                     ln_g=jnp.ones((1, EMB), jnp.float32),
                     ln_b=jnp.zeros((1, EMB), jnp.float32)),
        'ff': dict(w1=w((EMB, HIDDEN_FF)), b1=jnp.zeros((1, HIDDEN_FF), jnp.float32),
                   w2=w((HIDDEN_FF, EMB)), b2=jnp.zeros((1, EMB), jnp.float32),
                   ln_g=jnp.ones((1, EMB), jnp.float32),
                   ln_b=jnp.zeros((1, EMB), jnp.float32)),
        'branch': dict(w=w((NUM_BRANCH, EMB, EMB)),
                       b=jnp.zeros((NUM_BRANCH, 1, EMB), jnp.float32)),
        'pers': dict(wg=w((PORTRAIT_LEN, NUM_BRANCH)),
                     bg=jnp.zeros((1, NUM_BRANCH), jnp.float32),
                     wc=w((EMB, NUM_CLASSES)),
                     bc=jnp.zeros((1, NUM_CLASSES), jnp.float32)),
    }


# ---------------------------------- main ---------------------------------------
if __name__ == "__main__":
    key = jax.random.PRNGKey(0)
    k_param, k_x, k_port = jax.random.split(key, 3)
    params = init_params(k_param)

    x = jax.random.normal(k_x, (BATCH, SEQ_LEN, IN_CHANNEL), dtype=jnp.float32)
    subjects = jax.random.normal(k_port, (BATCH, PORTRAIT_LEN), dtype=jnp.float32)

    out = jax.jit(branchnet_forward)(params, x, subjects)
    jax.block_until_ready(out)
    assert out.shape == (BATCH, NUM_CLASSES), out.shape
    assert bool(jnp.all(jnp.isfinite(out)))
    print("KERNEL_OK")
</pallas_src>

<mosaic_0001>
module attributes {stable_mosaic.version = 11 : i64} {
  func.func @branchnet_kernel(%arg0: i32, %arg1: memref<2x8x4xf32, #tpu.memory_space<vmem>>, %arg2: memref<2x4xf32, #tpu.memory_space<vmem>>, %arg3: memref<32x512xf32, #tpu.memory_space<vmem>>, %arg4: memref<1x512xf32, #tpu.memory_space<vmem>>, %arg5: memref<512x32xf32, #tpu.memory_space<vmem>>, %arg6: memref<1x32xf32, #tpu.memory_space<vmem>>, %arg7: memref<8x32xf32, #tpu.memory_space<vmem>>, %arg8: memref<4x32x8xf32, #tpu.memory_space<vmem>>, %arg9: memref<4x32x8xf32, #tpu.memory_space<vmem>>, %arg10: memref<4x32x8xf32, #tpu.memory_space<vmem>>, %arg11: memref<1x32xf32, #tpu.memory_space<vmem>>, %arg12: memref<1x32xf32, #tpu.memory_space<vmem>>, %arg13: memref<32x64xf32, #tpu.memory_space<vmem>>, %arg14: memref<1x64xf32, #tpu.memory_space<vmem>>, %arg15: memref<64x32xf32, #tpu.memory_space<vmem>>, %arg16: memref<1x32xf32, #tpu.memory_space<vmem>>, %arg17: memref<1x32xf32, #tpu.memory_space<vmem>>, %arg18: memref<1x32xf32, #tpu.memory_space<vmem>>, %arg19: memref<32x96xf32, #tpu.memory_space<vmem>>, %arg20: memref<1x96xf32, #tpu.memory_space<vmem>>, %arg21: memref<4x3xf32, #tpu.memory_space<vmem>>, %arg22: memref<1x3xf32, #tpu.memory_space<vmem>>, %arg23: memref<32x3xf32, #tpu.memory_space<vmem>>, %arg24: memref<1x3xf32, #tpu.memory_space<vmem>>, %arg25: memref<2x3xf32, #tpu.memory_space<vmem>>, %arg26: memref<2x15x4xf32, #tpu.memory_space<vmem>>, %arg27: memref<2x8x32xf32, #tpu.memory_space<vmem>>, %arg28: memref<2x8x32xf32, #tpu.memory_space<vmem>>) attributes {dimension_semantics = [#tpu.dimension_semantics<arbitrary>], iteration_bounds = array<i64: 1>, scalar_prefetch = 0 : i64, scratch_operands = 3 : i64, tpu.core_type = #tpu.core_type<tc>, window_params = [{pipeline_mode = #tpu.pipeline_mode<synchronous>, transform_indices = @transform_0, window_bounds = array<i64: 2, 8, 4>}, {pipeline_mode = #tpu.pipeline_mode<synchronous>, transform_indices = @transform_1, window_bounds = array<i64: 2, 4>}, {pipeline_mode = #tpu.pipeline_mode<synchronous>, transform_indices = @transform_2, window_bounds = array<i64: 32, 512>}, {pipeline_mode = #tpu.pipeline_mode<synchronous>, transform_indices = @transform_3, window_bounds = array<i64: 1, 512>}, {pipeline_mode = #tpu.pipeline_mode<synchronous>, transform_indices = @transform_4, window_bounds = array<i64: 512, 32>}, {pipeline_mode = #tpu.pipeline_mode<synchronous>, transform_indices = @transform_5, window_bounds = array<i64: 1, 32>}, {pipeline_mode = #tpu.pipeline_mode<synchronous>, transform_indices = @transform_6, window_bounds = array<i64: 8, 32>}, {pipeline_mode = #tpu.pipeline_mode<synchronous>, transform_indices = @transform_7, window_bounds = array<i64: 4, 32, 8>}, {pipeline_mode = #tpu.pipeline_mode<synchronous>, transform_indices = @transform_8, window_bounds = array<i64: 4, 32, 8>}, {pipeline_mode = #tpu.pipeline_mode<synchronous>, transform_indices = @transform_9, window_bounds = array<i64: 4, 32, 8>}, {pipeline_mode = #tpu.pipeline_mode<synchronous>, transform_indices = @transform_10, window_bounds = array<i64: 1, 32>}, {pipeline_mode = #tpu.pipeline_mode<synchronous>, transform_indices = @transform_11, window_bounds = array<i64: 1, 32>}, {pipeline_mode = #tpu.pipeline_mode<synchronous>, transform_indices = @transform_12, window_bounds = array<i64: 32, 64>}, {pipeline_mode = #tpu.pipeline_mode<synchronous>, transform_indices = @transform_13, window_bounds = array<i64: 1, 64>}, {pipeline_mode = #tpu.pipeline_mode<synchronous>, transform_indices = @transform_14, window_bounds = array<i64: 64, 32>}, {pipeline_mode = #tpu.pipeline_mode<synchronous>, transform_indices = @transform_15, window_bounds = array<i64: 1, 32>}, {pipeline_mode = #tpu.pipeline_mode<synchronous>, transform_indices = @transform_16, window_bounds = array<i64: 1, 32>}, {pipeline_mode = #tpu.pipeline_mode<synchronous>, transform_indices = @transform_17, window_bounds = array<i64: 1, 32>}, {pipeline_mode = #tpu.pipeline_mode<synchronous>, transform_indices = @transform_18, window_bounds = array<i64: 32, 96>}, {pipeline_mode = #tpu.pipeline_mode<synchronous>, transform_indices = @transform_19, window_bounds = array<i64: 1, 96>}, {pipeline_mode = #tpu.pipeline_mode<synchronous>, transform_indices = @transform_20, window_bounds = array<i64: 4, 3>}, {pipeline_mode = #tpu.pipeline_mode<synchronous>, transform_indices = @transform_21, window_bounds = array<i64: 1, 3>}, {pipeline_mode = #tpu.pipeline_mode<synchronous>, transform_indices = @transform_22, window_bounds = array<i64: 32, 3>}, {pipeline_mode = #tpu.pipeline_mode<synchronous>, transform_indices = @transform_23, window_bounds = array<i64: 1, 3>}, {pipeline_mode = #tpu.pipeline_mode<synchronous>, transform_indices = @transform_24, window_bounds = array<i64: 2, 3>}]} {
    %cst = arith.constant 0.000000e+00 : f32
    %0 = vector.broadcast %cst : f32 to vector<2x15x4xf32>
    %c0 = arith.constant 0 : index
    %c0_0 = arith.constant 0 : index
    %c0_1 = arith.constant 0 : index
    %1 = vector.load %arg26[%c0, %c0_0, %c0_1] : memref<2x15x4xf32, #tpu.memory_space<vmem>>, vector<2x15x4xf32>
    tpu.vector_store %arg26[%c0, %c0_0, %c0_1], %0 {strides = array<i32>} : memref<2x15x4xf32, #tpu.memory_space<vmem>>, vector<2x15x4xf32>,
    %c0_2 = arith.constant 0 : index
    %c0_3 = arith.constant 0 : index
    %c0_4 = arith.constant 0 : index
    %2 = vector.load %arg1[%c0_2, %c0_3, %c0_4] : memref<2x8x4xf32, #tpu.memory_space<vmem>>, vector<2x8x4xf32>
    %c0_5 = arith.constant 0 : index
    %c3 = arith.constant 3 : index
    %c0_6 = arith.constant 0 : index
    %3 = vector.load %arg26[%c0_5, %c3, %c0_6] : memref<2x15x4xf32, #tpu.memory_space<vmem>>, vector<2x8x4xf32>
    tpu.vector_store %arg26[%c0_5, %c3, %c0_6], %2 {strides = array<i32>} : memref<2x15x4xf32, #tpu.memory_space<vmem>>, vector<2x8x4xf32>,
    %c0_7 = arith.constant 0 : index
    %c0_8 = arith.constant 0 : index
    %c0_9 = arith.constant 0 : index
    %4 = vector.load %arg26[%c0_7, %c0_8, %c0_9] : memref<2x15x4xf32, #tpu.memory_space<vmem>>, vector<2x8x4xf32>
    %c0_10 = arith.constant 0 : index
    %c0_11 = arith.constant 0 : index
    %c0_12 = arith.constant 0 : index
    %5 = vector.load %arg27[%c0_10, %c0_11, %c0_12] : memref<2x8x32xf32, #tpu.memory_space<vmem>>, vector<2x8x4xf32>
    tpu.vector_store %arg27[%c0_10, %c0_11, %c0_12], %4 {strides = array<i32>} : memref<2x8x32xf32, #tpu.memory_space<vmem>>, vector<2x8x4xf32>,
    %c0_13 = arith.constant 0 : index
    %c1 = arith.constant 1 : index
    %c0_14 = arith.constant 0 : index
    %6 = vector.load %arg26[%c0_13, %c1, %c0_14] : memref<2x15x4xf32, #tpu.memory_space<vmem>>, vector<2x8x4xf32>
    %c0_15 = arith.constant 0 : index
    %c0_16 = arith.constant 0 : index
    %c4 = arith.constant 4 : index
    %7 = vector.load %arg27[%c0_15, %c0_16, %c4] : memref<2x8x32xf32, #tpu.memory_space<vmem>>, vector<2x8x4xf32>
    tpu.vector_store %arg27[%c0_15, %c0_16, %c4], %6 {strides = array<i32>} : memref<2x8x32xf32, #tpu.memory_space<vmem>>, vector<2x8x4xf32>,
    %c0_17 = arith.constant 0 : index
    %c2 = arith.constant 2 : index
    %c0_18 = arith.constant 0 : index
    %8 = vector.load %arg26[%c0_17, %c2, %c0_18] : memref<2x15x4xf32, #tpu.memory_space<vmem>>, vector<2x8x4xf32>
    %c0_19 = arith.constant 0 : index
    %c0_20 = arith.constant 0 : index
    %c8 = arith.constant 8 : index
    %9 = vector.load %arg27[%c0_19, %c0_20, %c8] : memref<2x8x32xf32, #tpu.memory_space<vmem>>, vector<2x8x4xf32>
    tpu.vector_store %arg27[%c0_19, %c0_20, %c8], %8 {strides = array<i32>} : memref<2x8x32xf32, #tpu.memory_space<vmem>>, vector<2x8x4xf32>,
    %c0_21 = arith.constant 0 : index
    %c3_22 = arith.constant 3 : index
    %c0_23 = arith.constant 0 : index
    %10 = vector.load %arg26[%c0_21, %c3_22, %c0_23] : memref<2x15x4xf32, #tpu.memory_space<vmem>>, vector<2x8x4xf32>
    %c0_24 = arith.constant 0 : index
    %c0_25 = arith.constant 0 : index
    %c12 = arith.constant 12 : index
    %11 = vector.load %arg27[%c0_24, %c0_25, %c12] : memref<2x8x32xf32, #tpu.memory_space<vmem>>, vector<2x8x4xf32>
    tpu.vector_store %arg27[%c0_24, %c0_25, %c12], %10 {strides = array<i32>} : memref<2x8x32xf32, #tpu.memory_space<vmem>>, vector<2x8x4xf32>,
    %c0_26 = arith.constant 0 : index
    %c4_27 = arith.constant 4 : index
    %c0_28 = arith.constant 0 : index
    %12 = vector.load %arg26[%c0_26, %c4_27, %c0_28] : memref<2x15x4xf32, #tpu.memory_space<vmem>>, vector<2x8x4xf32>
    %c0_29 = arith.constant 0 : index
    %c0_30 = arith.constant 0 : index
    %c16 = arith.constant 16 : index
    %13 = vector.load %arg27[%c0_29, %c0_30, %c16] : memref<2x8x32xf32, #tpu.memory_space<vmem>>, vector<2x8x4xf32>
    tpu.vector_store %arg27[%c0_29, %c0_30, %c16], %12 {strides = array<i32>} : memref<2x8x32xf32, #tpu.memory_space<vmem>>, vector<2x8x4xf32>,
    %c0_31 = arith.constant 0 : index
    %c5 = arith.constant 5 : index
    %c0_32 = arith.constant 0 : index
    %14 = vector.load %arg26[%c0_31, %c5, %c0_32] : memref<2x15x4xf32, #tpu.memory_space<vmem>>, vector<2x8x4xf32>
    %c0_33 = arith.constant 0 : index
    %c0_34 = arith.constant 0 : index
    %c20 = arith.constant 20 : index
    %15 = vector.load %arg27[%c0_33, %c0_34, %c20] : memref<2x8x32xf32, #tpu.memory_space<vmem>>, vector<2x8x4xf32>
    tpu.vector_store %arg27[%c0_33, %c0_34, %c20], %14 {strides = array<i32>} : memref<2x8x32xf32, #tpu.memory_space<vmem>>, vector<2x8x4xf32>,
    %c0_35 = arith.constant 0 : index
    %c6 = arith.constant 6 : index
    %c0_36 = arith.constant 0 : index
    %16 = vector.load %arg26[%c0_35, %c6, %c0_36] : memref<2x15x4xf32, #tpu.memory_space<vmem>>, vector<2x8x4xf32>
    %c0_37 = arith.constant 0 : index
    %c0_38 = arith.constant 0 : index
    %c24 = arith.constant 24 : index
    %17 = vector.load %arg27[%c0_37, %c0_38, %c24] : memref<2x8x32xf32, #tpu.memory_space<vmem>>, vector<2x8x4xf32>
    tpu.vector_store %arg27[%c0_37, %c0_38, %c24], %16 {strides = array<i32>} : memref<2x8x32xf32, #tpu.memory_space<vmem>>, vector<2x8x4xf32>,
    %c0_39 = arith.constant 0 : index
    %c7 = arith.constant 7 : index
    %c0_40 = arith.constant 0 : index
    %18 = vector.load %arg26[%c0_39, %c7, %c0_40] : memref<2x15x4xf32, #tpu.memory_space<vmem>>, vector<2x8x4xf32>
    %c0_41 = arith.constant 0 : index
    %c0_42 = arith.constant 0 : index
    %c28 = arith.constant 28 : index
    %19 = vector.load %arg27[%c0_41, %c0_42, %c28] : memref<2x8x32xf32, #tpu.memory_space<vmem>>, vector<2x8x4xf32>
    tpu.vector_store %arg27[%c0_41, %c0_42, %c28], %18 {strides = array<i32>} : memref<2x8x32xf32, #tpu.memory_space<vmem>>, vector<2x8x4xf32>,
    %c0_43 = arith.constant 0 : index
    %c0_44 = arith.constant 0 : index
    %c0_45 = arith.constant 0 : index
    %20 = vector.load %arg27[%c0_43, %c0_44, %c0_45] : memref<2x8x32xf32, #tpu.memory_space<vmem>>, vector<2x8x32xf32>
    %21 = vector.shape_cast %20 : vector<2x8x32xf32> to vector<16x32xf32>
    %c0_46 = arith.constant 0 : index
    %c0_47 = arith.constant 0 : index
    %22 = vector.load %arg3[%c0_46, %c0_47] : memref<32x512xf32, #tpu.memory_space<vmem>>, vector<32x512xf32>
    %cst_48 = arith.constant dense<0.000000e+00> : vector<16x512xf32>
    %23 = tpu.matmul %21, %22, %cst_48 {dimension_numbers = #tpu.dot_dimension_numbers<[1], [0], [0], [1], [0, 0, 1, 1], [], []>} : vector<16x32xf32>, vector<32x512xf32>, vector<16x512xf32> -> vector<16x512xf32>
    %c0_49 = arith.constant 0 : index
    %c0_50 = arith.constant 0 : index
    %24 = vector.load %arg4[%c0_49, %c0_50] : memref<1x512xf32, #tpu.memory_space<vmem>>, vector<1x512xf32>
    %25 = vector.broadcast %24 : vector<1x512xf32> to vector<16x512xf32>
    %26 = arith.addf %23, %25 : vector<16x512xf32>
    %cst_51 = arith.constant 5.000000e-01 : f32
    %27 = vector.broadcast %cst_51 : f32 to vector<16x512xf32>
    %28 = arith.mulf %27, %26 : vector<16x512xf32>
    %cst_52 = arith.constant 4.471500e-02 : f32
    %29 = vector.broadcast %cst_52 : f32 to vector<16x512xf32>
    %30 = arith.mulf %29, %26 : vector<16x512xf32>
    %31 = arith.mulf %30, %26 : vector<16x512xf32>
    %32 = arith.mulf %31, %26 : vector<16x512xf32>
    %33 = arith.addf %26, %32 : vector<16x512xf32>
    %cst_53 = arith.constant 0.797884583 : f32
    %34 = vector.broadcast %cst_53 : f32 to vector<16x512xf32>
    %35 = arith.mulf %34, %33 : vector<16x512xf32>
    %36 = math.tanh %35 : vector<16x512xf32>
    %cst_54 = arith.constant 1.000000e+00 : f32
    %37 = vector.broadcast %cst_54 : f32 to vector<16x512xf32>
    %38 = arith.addf %37, %36 : vector<16x512xf32>
    %39 = arith.mulf %28, %38 : vector<16x512xf32>
    %c0_55 = arith.constant 0 : index
    %c0_56 = arith.constant 0 : index
    %40 = vector.load %arg5[%c0_55, %c0_56] : memref<512x32xf32, #tpu.memory_space<vmem>>, vector<512x32xf32>
    %cst_57 = arith.constant dense<0.000000e+00> : vector<16x32xf32>
    %41 = tpu.matmul %39, %40, %cst_57 {dimension_numbers = #tpu.dot_dimension_numbers<[1], [0], [0], [1], [0, 0, 1, 1], [], []>} : vector<16x512xf32>, vector<512x32xf32>, vector<16x32xf32> -> vector<16x32xf32>
    %c0_58 = arith.constant 0 : index
    %c0_59 = arith.constant 0 : index
    %42 = vector.load %arg6[%c0_58, %c0_59] : memref<1x32xf32, #tpu.memory_space<vmem>>, vector<1x32xf32>
    %43 = vector.broadcast %42 : vector<1x32xf32> to vector<16x32xf32>
    %44 = arith.addf %41, %43 : vector<16x32xf32>
    %cst_60 = arith.constant 5.000000e-01 : f32
    %45 = vector.broadcast %cst_60 : f32 to vector<16x32xf32>
    %46 = arith.mulf %45, %44 : vector<16x32xf32>
    %cst_61 = arith.constant 4.471500e-02 : f32
    %47 = vector.broadcast %cst_61 : f32 to vector<16x32xf32>
    %48 = arith.mulf %47, %44 : vector<16x32xf32>
    %49 = arith.mulf %48, %44 : vector<16x32xf32>
    %50 = arith.mulf %49, %44 : vector<16x32xf32>
    %51 = arith.addf %44, %50 : vector<16x32xf32>
    %cst_62 = arith.constant 0.797884583 : f32
    %52 = vector.broadcast %cst_62 : f32 to vector<16x32xf32>
    %53 = arith.mulf %52, %51 : vector<16x32xf32>
    %54 = math.tanh %53 : vector<16x32xf32>
    %cst_63 = arith.constant 1.000000e+00 : f32
    %55 = vector.broadcast %cst_63 : f32 to vector<16x32xf32>
    %56 = arith.addf %55, %54 : vector<16x32xf32>
    %57 = arith.mulf %46, %56 : vector<16x32xf32>
    %58 = vector.shape_cast %57 : vector<16x32xf32> to vector<2x8x32xf32>
    %c0_64 = arith.constant 0 : index
    %c0_65 = arith.constant 0 : index
    %59 = vector.load %arg7[%c0_64, %c0_65] : memref<8x32xf32, #tpu.memory_space<vmem>>, vector<8x32xf32>
    %60 = vector.shape_cast %59 : vector<8x32xf32> to vector<1x8x32xf32>
    %61 = vector.broadcast %60 : vector<1x8x32xf32> to vector<2x8x32xf32>
    %62 = arith.addf %58, %61 : vector<2x8x32xf32>
    %63 = vector.shape_cast %62 : vector<2x8x32xf32> to vector<2x1x8x32xf32>
    %64 = vector.shape_cast %63 : vector<2x1x8x32xf32> to vector<2x1x8x32xf32>
    %65 = vector.broadcast %64 : vector<2x1x8x32xf32> to vector<2x4x8x32xf32>
    %66 = vector.shape_cast %65 : vector<2x4x8x32xf32> to vector<8x8x32xf32>
    %c0_66 = arith.constant 0 : index
    %c0_67 = arith.constant 0 : index
    %c0_68 = arith.constant 0 : index
    %67 = vector.load %arg8[%c0_66, %c0_67, %c0_68] : memref<4x32x8xf32, #tpu.memory_space<vmem>>, vector<4x32x8xf32>
    %68 = vector.shape_cast %67 : vector<4x32x8xf32> to vector<1x4x32x8xf32>
    %69 = vector.shape_cast %68 : vector<1x4x32x8xf32> to vector<1x4x32x8xf32>
    %70 = vector.broadcast %69 : vector<1x4x32x8xf32> to vector<2x4x32x8xf32>
    %71 = vector.shape_cast %70 : vector<2x4x32x8xf32> to vector<8x32x8xf32>
    %c0_69 = arith.constant 0 : index
    %c0_70 = arith.constant 0 : index
    %c0_71 = arith.constant 0 : index
    %72 = vector.load %arg9[%c0_69, %c0_70, %c0_71] : memref<4x32x8xf32, #tpu.memory_space<vmem>>, vector<4x32x8xf32>
    %73 = vector.shape_cast %72 : vector<4x32x8xf32> to vector<1x4x32x8xf32>
    %74 = vector.shape_cast %73 : vector<1x4x32x8xf32> to vector<1x4x32x8xf32>
    %75 = vector.broadcast %74 : vector<1x4x32x8xf32> to vector<2x4x32x8xf32>
    %76 = vector.shape_cast %75 : vector<2x4x32x8xf32> to vector<8x32x8xf32>
    %c0_72 = arith.constant 0 : index
    %c0_73 = arith.constant 0 : index
    %c0_74 = arith.constant 0 : index
    %77 = vector.load %arg10[%c0_72, %c0_73, %c0_74] : memref<4x32x8xf32, #tpu.memory_space<vmem>>, vector<4x32x8xf32>
    %78 = vector.shape_cast %77 : vector<4x32x8xf32> to vector<1x4x32x8xf32>
    %79 = vector.shape_cast %78 : vector<1x4x32x8xf32> to vector<1x4x32x8xf32>
    %80 = vector.broadcast %79 : vector<1x4x32x8xf32> to vector<2x4x32x8xf32>
    %81 = vector.shape_cast %80 : vector<2x4x32x8xf32> to vector<8x32x8xf32>
    "tpu.trace_start"() <{level = 10 : i32, message = "ble,bed->bld"}> : () -> ()
    %cst_75 = arith.constant dense<0.000000e+00> : vector<8x8x8xf32>
    %82 = tpu.matmul %66, %71, %cst_75 {dimension_numbers = #tpu.dot_dimension_numbers<[2], [1], [1], [2], [0, 0, 0, 1, 1, 2], [0], [0]>} : vector<8x8x32xf32>, vector<8x32x8xf32>, vector<8x8x8xf32> -> vector<8x8x8xf32>
    %cst_76 = arith.constant dense<0.000000e+00> : vector<8x8x8xf32>
    %83 = tpu.matmul %66, %76, %cst_76 {dimension_numbers = #tpu.dot_dimension_numbers<[2], [1], [1], [2], [0, 0, 0, 1, 1, 2], [0], [0]>} : vector<8x8x32xf32>, vector<8x32x8xf32>, vector<8x8x8xf32> -> vector<8x8x8xf32>
    %cst_77 = arith.constant dense<0.000000e+00> : vector<8x8x8xf32>
    %84 = tpu.matmul %66, %81, %cst_77 {dimension_numbers = #tpu.dot_dimension_numbers<[2], [1], [1], [2], [0, 0, 0, 1, 1, 2], [0], [0]>} : vector<8x8x32xf32>, vector<8x32x8xf32>, vector<8x8x8xf32> -> vector<8x8x8xf32>
    "tpu.trace_stop"() : () -> ()
    "tpu.trace_start"() <{level = 10 : i32, message = "bqd,bkd->bqk"}> : () -> ()
    %cst_78 = arith.constant dense<0.000000e+00> : vector<8x8x8xf32>
    %85 = tpu.matmul %82, %83, %cst_78 {dimension_numbers = #tpu.dot_dimension_numbers<[2], [2], [1], [1], [0, 0, 0, 1, 1, 1], [0], [0]>} : vector<8x8x8xf32>, vector<8x8x8xf32>, vector<8x8x8xf32> -> vector<8x8x8xf32>
    "tpu.trace_stop"() : () -> ()
    %cst_79 = arith.constant 0.176776692 : f32
    %86 = vector.broadcast %cst_79 : f32 to vector<8x8x8xf32>
    %87 = arith.mulf %85, %86 : vector<8x8x8xf32>
    %cst_80 = arith.constant dense<0xFF800000> : vector<8x8xf32>
    %88 = vector.multi_reduction <maximumf>, %87, %cst_80 [2] : vector<8x8x8xf32> to vector<8x8xf32>
    %89 = vector.shape_cast %88 : vector<8x8xf32> to vector<8x8x1xf32>
    %90 = vector.broadcast %89 : vector<8x8x1xf32> to vector<8x8x8xf32>
    %91 = arith.subf %87, %90 : vector<8x8x8xf32>
    %92 = math.exp %91 : vector<8x8x8xf32>
    %cst_81 = arith.constant dense<0.000000e+00> : vector<8x8xf32>
    %93 = vector.multi_reduction <add>, %92, %cst_81 [2] : vector<8x8x8xf32> to vector<8x8xf32>
    %94 = vector.shape_cast %93 : vector<8x8xf32> to vector<8x8x1xf32>
    %95 = vector.broadcast %94 : vector<8x8x1xf32> to vector<8x8x8xf32>
    %96 = arith.divf %92, %95 : vector<8x8x8xf32>
    "tpu.trace_start"() <{level = 10 : i32, message = "bqk,bkd->bqd"}> : () -> ()
    %cst_82 = arith.constant dense<0.000000e+00> : vector<8x8x8xf32>
    %97 = tpu.matmul %96, %84, %cst_82 {dimension_numbers = #tpu.dot_dimension_numbers<[2], [1], [1], [2], [0, 0, 0, 1, 1, 2], [0], [0]>} : vector<8x8x8xf32>, vector<8x8x8xf32>, vector<8x8x8xf32> -> vector<8x8x8xf32>
    "tpu.trace_stop"() : () -> ()
    %98 = vector.shape_cast %97 : vector<8x8x8xf32> to vector<2x4x8x8xf32>
    %99 = vector.extract_strided_slice %98 {offsets = [0, 0, 0, 0], sizes = [2, 1, 8, 8], strides = [1, 1, 1, 1]} : vector<2x4x8x8xf32> to vector<2x1x8x8xf32>
    %100 = vector.shape_cast %99 : vector<2x1x8x8xf32> to vector<2x8x8xf32>
    %c0_83 = arith.constant 0 : index
    %c0_84 = arith.constant 0 : index
    %c0_85 = arith.constant 0 : index
    %101 = vector.load %arg28[%c0_83, %c0_84, %c0_85] : memref<2x8x32xf32, #tpu.memory_space<vmem>>, vector<2x8x8xf32>
    tpu.vector_store %arg28[%c0_83, %c0_84, %c0_85], %100 {strides = array<i32>} : memref<2x8x32xf32, #tpu.memory_space<vmem>>, vector<2x8x8xf32>,
    %102 = vector.extract_strided_slice %98 {offsets = [0, 1, 0, 0], sizes = [2, 1, 8, 8], strides = [1, 1, 1, 1]} : vector<2x4x8x8xf32> to vector<2x1x8x8xf32>
    %103 = vector.shape_cast %102 : vector<2x1x8x8xf32> to vector<2x8x8xf32>
    %c0_86 = arith.constant 0 : index
    %c0_87 = arith.constant 0 : index
    %c8_88 = arith.constant 8 : index
    %104 = vector.load %arg28[%c0_86, %c0_87, %c8_88] : memref<2x8x32xf32, #tpu.memory_space<vmem>>, vector<2x8x8xf32>
    tpu.vector_store %arg28[%c0_86, %c0_87, %c8_88], %103 {strides = array<i32>} : memref<2x8x32xf32, #tpu.memory_space<vmem>>, vector<2x8x8xf32>,
    %105 = vector.extract_strided_slice %98 {offsets = [0, 2, 0, 0], sizes = [2, 1, 8, 8], strides = [1, 1, 1, 1]} : vector<2x4x8x8xf32> to vector<2x1x8x8xf32>
    %106 = vector.shape_cast %105 : vector<2x1x8x8xf32> to vector<2x8x8xf32>
    %c0_89 = arith.constant 0 : index
    %c0_90 = arith.constant 0 : index
    %c16_91 = arith.constant 16 : index
    %107 = vector.load %arg28[%c0_89, %c0_90, %c16_91] : memref<2x8x32xf32, #tpu.memory_space<vmem>>, vector<2x8x8xf32>
    tpu.vector_store %arg28[%c0_89, %c0_90, %c16_91], %106 {strides = array<i32>} : memref<2x8x32xf32, #tpu.memory_space<vmem>>, vector<2x8x8xf32>,
    %108 = vector.extract_strided_slice %98 {offsets = [0, 3, 0, 0], sizes = [2, 1, 8, 8], strides = [1, 1, 1, 1]} : vector<2x4x8x8xf32> to vector<2x1x8x8xf32>
    %109 = vector.shape_cast %108 : vector<2x1x8x8xf32> to vector<2x8x8xf32>
    %c0_92 = arith.constant 0 : index
    %c0_93 = arith.constant 0 : index
    %c24_94 = arith.constant 24 : index
    %110 = vector.load %arg28[%c0_92, %c0_93, %c24_94] : memref<2x8x32xf32, #tpu.memory_space<vmem>>, vector<2x8x8xf32>
    tpu.vector_store %arg28[%c0_92, %c0_93, %c24_94], %109 {strides = array<i32>} : memref<2x8x32xf32, #tpu.memory_space<vmem>>, vector<2x8x8xf32>,
    %c0_95 = arith.constant 0 : index
    %c0_96 = arith.constant 0 : index
    %c0_97 = arith.constant 0 : index
    %111 = vector.load %arg28[%c0_95, %c0_96, %c0_97] : memref<2x8x32xf32, #tpu.memory_space<vmem>>, vector<2x8x32xf32>
    %112 = vector.shape_cast %111 : vector<2x8x32xf32> to vector<16x32xf32>
    %c0_98 = arith.constant 0 : index
    %c0_99 = arith.constant 0 : index
    %113 = vector.load %arg11[%c0_98, %c0_99] : memref<1x32xf32, #tpu.memory_space<vmem>>, vector<1x32xf32>
    %c0_100 = arith.constant 0 : index
    %c0_101 = arith.constant 0 : index
    %114 = vector.load %arg12[%c0_100, %c0_101] : memref<1x32xf32, #tpu.memory_space<vmem>>, vector<1x32xf32>
    %cst_102 = arith.constant dense<0.000000e+00> : vector<16xf32>
    %115 = vector.multi_reduction <add>, %112, %cst_102 [1] : vector<16x32xf32> to vector<16xf32>
    %116 = vector.shape_cast %115 : vector<16xf32> to vector<16x1xf32>
    %cst_103 = arith.constant 3.200000e+01 : f32
    %117 = vector.broadcast %cst_103 : f32 to vector<16x1xf32>
    %118 = arith.divf %116, %117 : vector<16x1xf32>
    %119 = vector.broadcast %118 : vector<16x1xf32> to vector<16x32xf32>
    %120 = arith.subf %112, %119 : vector<16x32xf32>
    %121 = arith.mulf %120, %120 : vector<16x32xf32>
    %cst_104 = arith.constant dense<0.000000e+00> : vector<16xf32>
    %122 = vector.multi_reduction <add>, %121, %cst_104 [1] : vector<16x32xf32> to vector<16xf32>
    %123 = vector.shape_cast %122 : vector<16xf32> to vector<16x1xf32>
    %cst_105 = arith.constant 3.200000e+01 : f32
    %124 = vector.broadcast %cst_105 : f32 to vector<16x1xf32>
    %125 = arith.divf %123, %124 : vector<16x1xf32>
    %126 = vector.broadcast %118 : vector<16x1xf32> to vector<16x32xf32>
    %127 = arith.subf %112, %126 : vector<16x32xf32>
    %cst_106 = arith.constant 9.99999974E-6 : f32
    %128 = vector.broadcast %cst_106 : f32 to vector<16x1xf32>
    %129 = arith.addf %125, %128 : vector<16x1xf32>
    %130 = math.rsqrt %129 : vector<16x1xf32>
    %131 = vector.broadcast %130 : vector<16x1xf32> to vector<16x32xf32>
    %132 = arith.mulf %127, %131 : vector<16x32xf32>
    %133 = vector.broadcast %113 : vector<1x32xf32> to vector<16x32xf32>
    %134 = arith.mulf %132, %133 : vector<16x32xf32>
    %135 = vector.broadcast %114 : vector<1x32xf32> to vector<16x32xf32>
    %136 = arith.addf %134, %135 : vector<16x32xf32>
    %c0_107 = arith.constant 0 : index
    %c0_108 = arith.constant 0 : index
    %137 = vector.load %arg13[%c0_107, %c0_108] : memref<32x64xf32, #tpu.memory_space<vmem>>, vector<32x64xf32>
    %cst_109 = arith.constant dense<0.000000e+00> : vector<16x64xf32>
    %138 = tpu.matmul %136, %137, %cst_109 {dimension_numbers = #tpu.dot_dimension_numbers<[1], [0], [0], [1], [0, 0, 1, 1], [], []>} : vector<16x32xf32>, vector<32x64xf32>, vector<16x64xf32> -> vector<16x64xf32>
    %c0_110 = arith.constant 0 : index
    %c0_111 = arith.constant 0 : index
    %139 = vector.load %arg14[%c0_110, %c0_111] : memref<1x64xf32, #tpu.memory_space<vmem>>, vector<1x64xf32>
    %140 = vector.broadcast %139 : vector<1x64xf32> to vector<16x64xf32>
    %141 = arith.addf %138, %140 : vector<16x64xf32>
    %cst_112 = arith.constant 0.000000e+00 : f32
    %142 = vector.broadcast %cst_112 : f32 to vector<16x64xf32>
    %143 = arith.maximumf %141, %142 : vector<16x64xf32>
    %c0_113 = arith.constant 0 : index
    %c0_114 = arith.constant 0 : index
    %144 = vector.load %arg15[%c0_113, %c0_114] : memref<64x32xf32, #tpu.memory_space<vmem>>, vector<64x32xf32>
    %cst_115 = arith.constant dense<0.000000e+00> : vector<16x32xf32>
    %145 = tpu.matmul %143, %144, %cst_115 {dimension_numbers = #tpu.dot_dimension_numbers<[1], [0], [0], [1], [0, 0, 1, 1], [], []>} : vector<16x64xf32>, vector<64x32xf32>, vector<16x32xf32> -> vector<16x32xf32>
    %c0_116 = arith.constant 0 : index
    %c0_117 = arith.constant 0 : index
    %146 = vector.load %arg16[%c0_116, %c0_117] : memref<1x32xf32, #tpu.memory_space<vmem>>, vector<1x32xf32>
    %147 = vector.broadcast %146 : vector<1x32xf32> to vector<16x32xf32>
    %148 = arith.addf %145, %147 : vector<16x32xf32>
    %149 = arith.addf %136, %148 : vector<16x32xf32>
    %c0_118 = arith.constant 0 : index
    %c0_119 = arith.constant 0 : index
    %150 = vector.load %arg17[%c0_118, %c0_119] : memref<1x32xf32, #tpu.memory_space<vmem>>, vector<1x32xf32>
    %c0_120 = arith.constant 0 : index
    %c0_121 = arith.constant 0 : index
    %151 = vector.load %arg18[%c0_120, %c0_121] : memref<1x32xf32, #tpu.memory_space<vmem>>, vector<1x32xf32>
    %cst_122 = arith.constant dense<0.000000e+00> : vector<16xf32>
    %152 = vector.multi_reduction <add>, %149, %cst_122 [1] : vector<16x32xf32> to vector<16xf32>
    %153 = vector.shape_cast %152 : vector<16xf32> to vector<16x1xf32>
    %cst_123 = arith.constant 3.200000e+01 : f32
    %154 = vector.broadcast %cst_123 : f32 to vector<16x1xf32>
    %155 = arith.divf %153, %154 : vector<16x1xf32>
    %156 = vector.broadcast %155 : vector<16x1xf32> to vector<16x32xf32>
    %157 = arith.subf %149, %156 : vector<16x32xf32>
    %158 = arith.mulf %157, %157 : vector<16x32xf32>
    %cst_124 = arith.constant dense<0.000000e+00> : vector<16xf32>
    %159 = vector.multi_reduction <add>, %158, %cst_124 [1] : vector<16x32xf32> to vector<16xf32>
    %160 = vector.shape_cast %159 : vector<16xf32> to vector<16x1xf32>
    %cst_125 = arith.constant 3.200000e+01 : f32
    %161 = vector.broadcast %cst_125 : f32 to vector<16x1xf32>
    %162 = arith.divf %160, %161 : vector<16x1xf32>
    %163 = vector.broadcast %155 : vector<16x1xf32> to vector<16x32xf32>
    %164 = arith.subf %149, %163 : vector<16x32xf32>
    %cst_126 = arith.constant 9.99999974E-6 : f32
    %165 = vector.broadcast %cst_126 : f32 to vector<16x1xf32>
    %166 = arith.addf %162, %165 : vector<16x1xf32>
    %167 = math.rsqrt %166 : vector<16x1xf32>
    %168 = vector.broadcast %167 : vector<16x1xf32> to vector<16x32xf32>
    %169 = arith.mulf %164, %168 : vector<16x32xf32>
    %170 = vector.broadcast %150 : vector<1x32xf32> to vector<16x32xf32>
    %171 = arith.mulf %169, %170 : vector<16x32xf32>
    %172 = vector.broadcast %151 : vector<1x32xf32> to vector<16x32xf32>
    %173 = arith.addf %171, %172 : vector<16x32xf32>
    %c0_127 = arith.constant 0 : index
    %c0_128 = arith.constant 0 : index
    %174 = vector.load %arg19[%c0_127, %c0_128] : memref<32x96xf32, #tpu.memory_space<vmem>>, vector<32x96xf32>
    %cst_129 = arith.constant dense<0.000000e+00> : vector<16x96xf32>
    %175 = tpu.matmul %173, %174, %cst_129 {dimension_numbers = #tpu.dot_dimension_numbers<[1], [0], [0], [1], [0, 0, 1, 1], [], []>} : vector<16x32xf32>, vector<32x96xf32>, vector<16x96xf32> -> vector<16x96xf32>
    %c0_130 = arith.constant 0 : index
    %c0_131 = arith.constant 0 : index
    %176 = vector.load %arg20[%c0_130, %c0_131] : memref<1x96xf32, #tpu.memory_space<vmem>>, vector<1x96xf32>
    %177 = vector.broadcast %176 : vector<1x96xf32> to vector<16x96xf32>
    %178 = arith.addf %175, %177 : vector<16x96xf32>
    %cst_132 = arith.constant 0.000000e+00 : f32
    %179 = vector.broadcast %cst_132 : f32 to vector<16x96xf32>
    %180 = arith.maximumf %178, %179 : vector<16x96xf32>
    %c0_133 = arith.constant 0 : index
    %c0_134 = arith.constant 0 : index
    %181 = vector.load %arg2[%c0_133, %c0_134] : memref<2x4xf32, #tpu.memory_space<vmem>>, vector<2x4xf32>
    %c0_135 = arith.constant 0 : index
    %c0_136 = arith.constant 0 : index
    %182 = vector.load %arg21[%c0_135, %c0_136] : memref<4x3xf32, #tpu.memory_space<vmem>>, vector<4x3xf32>
    %cst_137 = arith.constant dense<0.000000e+00> : vector<2x3xf32>
    %183 = tpu.matmul %181, %182, %cst_137 {dimension_numbers = #tpu.dot_dimension_numbers<[1], [0], [0], [1], [0, 0, 1, 1], [], []>} : vector<2x4xf32>, vector<4x3xf32>, vector<2x3xf32> -> vector<2x3xf32>
    %c0_138 = arith.constant 0 : index
    %c0_139 = arith.constant 0 : index
    %184 = vector.load %arg22[%c0_138, %c0_139] : memref<1x3xf32, #tpu.memory_space<vmem>>, vector<1x3xf32>
    %185 = vector.broadcast %184 : vector<1x3xf32> to vector<2x3xf32>
    %186 = arith.addf %183, %185 : vector<2x3xf32>
    %cst_140 = arith.constant 1.000000e+00 : f32
    %187 = vector.broadcast %cst_140 : f32 to vector<2x3xf32>
    %188 = arith.divf %186, %187 : vector<2x3xf32>
    %cst_141 = arith.constant dense<0xFF800000> : vector<2xf32>
    %189 = vector.multi_reduction <maximumf>, %188, %cst_141 [1] : vector<2x3xf32> to vector<2xf32>
    %190 = vector.shape_cast %189 : vector<2xf32> to vector<2x1xf32>
    %191 = vector.broadcast %190 : vector<2x1xf32> to vector<2x3xf32>
    %192 = arith.subf %188, %191 : vector<2x3xf32>
    %193 = math.exp %192 : vector<2x3xf32>
    %cst_142 = arith.constant dense<0.000000e+00> : vector<2xf32>
    %194 = vector.multi_reduction <add>, %193, %cst_142 [1] : vector<2x3xf32> to vector<2xf32>
    %195 = vector.shape_cast %194 : vector<2xf32> to vector<2x1xf32>
    %196 = vector.broadcast %195 : vector<2x1xf32> to vector<2x3xf32>
    %197 = arith.divf %193, %196 : vector<2x3xf32>
    %198 = vector.shape_cast %180 : vector<16x96xf32> to vector<2x8x96xf32>
    %cst_143 = arith.constant dense<0.000000e+00> : vector<2x96xf32>
    %199 = vector.multi_reduction <add>, %198, %cst_143 [1] : vector<2x8x96xf32> to vector<2x96xf32>
    %cst_144 = arith.constant 8.000000e+00 : f32
    %200 = vector.broadcast %cst_144 : f32 to vector<2x96xf32>
    %201 = arith.divf %199, %200 : vector<2x96xf32>
    %202 = vector.extract_strided_slice %201 {offsets = [0, 0], sizes = [2, 32], strides = [1, 1]} : vector<2x96xf32> to vector<2x32xf32>
    %203 = vector.extract_strided_slice %197 {offsets = [0, 0], sizes = [2, 1], strides = [1, 1]} : vector<2x3xf32> to vector<2x1xf32>
    %204 = vector.broadcast %203 : vector<2x1xf32> to vector<2x32xf32>
    %205 = arith.mulf %202, %204 : vector<2x32xf32>
    %206 = vector.extract_strided_slice %201 {offsets = [0, 32], sizes = [2, 32], strides = [1, 1]} : vector<2x96xf32> to vector<2x32xf32>
    %207 = vector.extract_strided_slice %197 {offsets = [0, 1], sizes = [2, 1], strides = [1, 1]} : vector<2x3xf32> to vector<2x1xf32>
    %208 = vector.broadcast %207 : vector<2x1xf32> to vector<2x32xf32>
    %209 = arith.mulf %206, %208 : vector<2x32xf32>
    %210 = arith.addf %205, %209 : vector<2x32xf32>
    %211 = vector.extract_strided_slice %201 {offsets = [0, 64], sizes = [2, 32], strides = [1, 1]} : vector<2x96xf32> to vector<2x32xf32>
    %212 = vector.extract_strided_slice %197 {offsets = [0, 2], sizes = [2, 1], strides = [1, 1]} : vector<2x3xf32> to vector<2x1xf32>
    %213 = vector.broadcast %212 : vector<2x1xf32> to vector<2x32xf32>
    %214 = arith.mulf %211, %213 : vector<2x32xf32>
    %215 = arith.addf %210, %214 : vector<2x32xf32>
    %c0_145 = arith.constant 0 : index
    %c0_146 = arith.constant 0 : index
    %216 = vector.load %arg23[%c0_145, %c0_146] : memref<32x3xf32, #tpu.memory_space<vmem>>, vector<32x3xf32>
    %cst_147 = arith.constant dense<0.000000e+00> : vector<2x3xf32>
    %217 = tpu.matmul %215, %216, %cst_147 {dimension_numbers = #tpu.dot_dimension_numbers<[1], [0], [0], [1], [0, 0, 1, 1], [], []>} : vector<2x32xf32>, vector<32x3xf32>, vector<2x3xf32> -> vector<2x3xf32>
    %c0_148 = arith.constant 0 : index
    %c0_149 = arith.constant 0 : index
    %218 = vector.load %arg24[%c0_148, %c0_149] : memref<1x3xf32, #tpu.memory_space<vmem>>, vector<1x3xf32>
    %219 = vector.broadcast %218 : vector<1x3xf32> to vector<2x3xf32>
    %220 = arith.addf %217, %219 : vector<2x3xf32>
    %c0_150 = arith.constant 0 : index
    %c0_151 = arith.constant 0 : index
    %221 = vector.load %arg25[%c0_150, %c0_151] : memref<2x3xf32, #tpu.memory_space<vmem>>, vector<2x3xf32>
    tpu.vector_store %arg25[%c0_150, %c0_151], %220 {strides = array<i32>} : memref<2x3xf32, #tpu.memory_space<vmem>>, vector<2x3xf32>,
    return
  }
  func.func @transform_0(%arg0: i32) -> (i32, i32, i32) {
    %c0_i32 = arith.constant 0 : i32
    %c0_i32_0 = arith.constant 0 : i32
    %c0_i32_1 = arith.constant 0 : i32
    %c0_i32_2 = arith.constant 0 : i32
    return %c0_i32, %c0_i32_0, %c0_i32_1 : i32, i32, i32
  }
  func.func @transform_1(%arg0: i32) -> (i32, i32) {
    %c0_i32 = arith.constant 0 : i32
    %c0_i32_0 = arith.constant 0 : i32
    %c0_i32_1 = arith.constant 0 : i32
    return %c0_i32, %c0_i32_0 : i32, i32
  }
  func.func @transform_2(%arg0: i32) -> (i32, i32) {
    %c0_i32 = arith.constant 0 : i32
    %c0_i32_0 = arith.constant 0 : i32
    %c0_i32_1 = arith.constant 0 : i32
    return %c0_i32, %c0_i32_0 : i32, i32
  }
  func.func @transform_3(%arg0: i32) -> (i32, i32) {
    %c0_i32 = arith.constant 0 : i32
    %c0_i32_0 = arith.constant 0 : i32
    %c0_i32_1 = arith.constant 0 : i32
    return %c0_i32, %c0_i32_0 : i32, i32
  }
  func.func @transform_4(%arg0: i32) -> (i32, i32) {
    %c0_i32 = arith.constant 0 : i32
    %c0_i32_0 = arith.constant 0 : i32
    %c0_i32_1 = arith.constant 0 : i32
    return %c0_i32, %c0_i32_0 : i32, i32
  }
  func.func @transform_5(%arg0: i32) -> (i32, i32) {
    %c0_i32 = arith.constant 0 : i32
    %c0_i32_0 = arith.constant 0 : i32
    %c0_i32_1 = arith.constant 0 : i32
    return %c0_i32, %c0_i32_0 : i32, i32
  }
  func.func @transform_6(%arg0: i32) -> (i32, i32) {
    %c0_i32 = arith.constant 0 : i32
    %c0_i32_0 = arith.constant 0 : i32
    %c0_i32_1 = arith.constant 0 : i32
    return %c0_i32, %c0_i32_0 : i32, i32
  }
  func.func @transform_7(%arg0: i32) -> (i32, i32, i32) {
    %c0_i32 = arith.constant 0 : i32
    %c0_i32_0 = arith.constant 0 : i32
    %c0_i32_1 = arith.constant 0 : i32
    %c0_i32_2 = arith.constant 0 : i32
    return %c0_i32, %c0_i32_0, %c0_i32_1 : i32, i32, i32
  }
  func.func @transform_8(%arg0: i32) -> (i32, i32, i32) {
    %c0_i32 = arith.constant 0 : i32
    %c0_i32_0 = arith.constant 0 : i32
    %c0_i32_1 = arith.constant 0 : i32
    %c0_i32_2 = arith.constant 0 : i32
    return %c0_i32, %c0_i32_0, %c0_i32_1 : i32, i32, i32
  }
  func.func @transform_9(%arg0: i32) -> (i32, i32, i32) {
    %c0_i32 = arith.constant 0 : i32
    %c0_i32_0 = arith.constant 0 : i32
    %c0_i32_1 = arith.constant 0 : i32
    %c0_i32_2 = arith.constant 0 : i32
    return %c0_i32, %c0_i32_0, %c0_i32_1 : i32, i32, i32
  }
  func.func @transform_10(%arg0: i32) -> (i32, i32) {
    %c0_i32 = arith.constant 0 : i32
    %c0_i32_0 = arith.constant 0 : i32
    %c0_i32_1 = arith.constant 0 : i32
    return %c0_i32, %c0_i32_0 : i32, i32
  }
  func.func @transform_11(%arg0: i32) -> (i32, i32) {
    %c0_i32 = arith.constant 0 : i32
    %c0_i32_0 = arith.constant 0 : i32
    %c0_i32_1 = arith.constant 0 : i32
    return %c0_i32, %c0_i32_0 : i32, i32
  }
  func.func @transform_12(%arg0: i32) -> (i32, i32) {
    %c0_i32 = arith.constant 0 : i32
    %c0_i32_0 = arith.constant 0 : i32
    %c0_i32_1 = arith.constant 0 : i32
    return %c0_i32, %c0_i32_0 : i32, i32
  }
  func.func @transform_13(%arg0: i32) -> (i32, i32) {
    %c0_i32 = arith.constant 0 : i32
    %c0_i32_0 = arith.constant 0 : i32
    %c0_i32_1 = arith.constant 0 : i32
    return %c0_i32, %c0_i32_0 : i32, i32
  }
  func.func @transform_14(%arg0: i32) -> (i32, i32) {
    %c0_i32 = arith.constant 0 : i32
    %c0_i32_0 = arith.constant 0 : i32
    %c0_i32_1 = arith.constant 0 : i32
    return %c0_i32, %c0_i32_0 : i32, i32
  }
  func.func @transform_15(%arg0: i32) -> (i32, i32) {
    %c0_i32 = arith.constant 0 : i32
    %c0_i32_0 = arith.constant 0 : i32
    %c0_i32_1 = arith.constant 0 : i32
    return %c0_i32, %c0_i32_0 : i32, i32
  }
  func.func @transform_16(%arg0: i32) -> (i32, i32) {
    %c0_i32 = arith.constant 0 : i32
    %c0_i32_0 = arith.constant 0 : i32
    %c0_i32_1 = arith.constant 0 : i32
    return %c0_i32, %c0_i32_0 : i32, i32
  }
  func.func @transform_17(%arg0: i32) -> (i32, i32) {
    %c0_i32 = arith.constant 0 : i32
    %c0_i32_0 = arith.constant 0 : i32
    %c0_i32_1 = arith.constant 0 : i32
    return %c0_i32, %c0_i32_0 : i32, i32
  }
  func.func @transform_18(%arg0: i32) -> (i32, i32) {
    %c0_i32 = arith.constant 0 : i32
    %c0_i32_0 = arith.constant 0 : i32
    %c0_i32_1 = arith.constant 0 : i32
    return %c0_i32, %c0_i32_0 : i32, i32
  }
  func.func @transform_19(%arg0: i32) -> (i32, i32) {
    %c0_i32 = arith.constant 0 : i32
    %c0_i32_0 = arith.constant 0 : i32
    %c0_i32_1 = arith.constant 0 : i32
    return %c0_i32, %c0_i32_0 : i32, i32
  }
  func.func @transform_20(%arg0: i32) -> (i32, i32) {
    %c0_i32 = arith.constant 0 : i32
    %c0_i32_0 = arith.constant 0 : i32
    %c0_i32_1 = arith.constant 0 : i32
    return %c0_i32, %c0_i32_0 : i32, i32
  }
  func.func @transform_21(%arg0: i32) -> (i32, i32) {
    %c0_i32 = arith.constant 0 : i32
    %c0_i32_0 = arith.constant 0 : i32
    %c0_i32_1 = arith.constant 0 : i32
    return %c0_i32, %c0_i32_0 : i32, i32
  }
  func.func @transform_22(%arg0: i32) -> (i32, i32) {
    %c0_i32 = arith.constant 0 : i32
    %c0_i32_0 = arith.constant 0 : i32
    %c0_i32_1 = arith.constant 0 : i32
    return %c0_i32, %c0_i32_0 : i32, i32
  }
  func.func @transform_23(%arg0: i32) -> (i32, i32) {
    %c0_i32 = arith.constant 0 : i32
    %c0_i32_0 = arith.constant 0 : i32
    %c0_i32_1 = arith.constant 0 : i32
    return %c0_i32, %c0_i32_0 : i32, i32
  }
  func.func @transform_24(%arg0: i32) -> (i32, i32) {
    %c0_i32 = arith.constant 0 : i32
    %c0_i32_0 = arith.constant 0 : i32
    %c0_i32_1 = arith.constant 0 : i32
    return %c0_i32, %c0_i32_0 : i32, i32
  }
}

</mosaic_0001>

<llo_original>
// kernel: branchnet_forward.1
$region0: #{branchnet_forward.1}
  #allocation0 [shape = 'u32[]', space=smem, size = 0x4, offset = 0x4, fixed_abs, tag = 'smem constant byte address 0x4 - core index']
  #allocation1 [shape = 'u32[144,128]{1,0:T(1,128)}', space=vmem, size = 0x12000, scoped, tag = 'internal scratch']
  #allocation2 [shape = 'f32[2,15,4]{2,1,0:T(8,128)}', space=vmem, size = 0x4000, scoped, tag = 'scratch operand']
  #allocation3 [shape = 'f32[2,8,32]{2,1,0:T(8,128)}', space=vmem, size = 0x2000, scoped, tag = 'scratch operand']
  #allocation4 [shape = 'f32[2,8,32]{2,1,0:T(8,128)}', space=vmem, size = 0x2000, scoped, tag = 'scratch operand']
  %s0 = inlined_call_operand.vmem [shape: f32[2,8,4], index: 0, kind: input, shape index: {}]
  %s1 = inlined_call_operand.vmem [shape: f32[2,4], index: 1, kind: input, shape index: {}]
  %s2 = inlined_call_operand.vmem [shape: f32[32,512], index: 2, kind: input, shape index: {}]
  %s3 = inlined_call_operand.vmem [shape: f32[1,512], index: 3, kind: input, shape index: {}]
  %s4 = inlined_call_operand.vmem [shape: f32[512,32], index: 4, kind: input, shape index: {}]
  %s5 = inlined_call_operand.vmem [shape: f32[1,32], index: 5, kind: input, shape index: {}]
  %s6 = inlined_call_operand.vmem [shape: f32[8,32], index: 6, kind: input, shape index: {}]
  %s7 = inlined_call_operand.vmem [shape: f32[4,32,8], index: 7, kind: input, shape index: {}]
  %s8 = inlined_call_operand.vmem [shape: f32[4,32,8], index: 8, kind: input, shape index: {}]
  %s9 = inlined_call_operand.vmem [shape: f32[4,32,8], index: 9, kind: input, shape index: {}]
  %s10 = inlined_call_operand.vmem [shape: f32[1,32], index: 10, kind: input, shape index: {}]
  %s11 = inlined_call_operand.vmem [shape: f32[1,32], index: 11, kind: input, shape index: {}]
  %s12 = inlined_call_operand.vmem [shape: f32[32,64], index: 12, kind: input, shape index: {}]
  %s13 = inlined_call_operand.vmem [shape: f32[1,64], index: 13, kind: input, shape index: {}]
  %s14 = inlined_call_operand.vmem [shape: f32[64,32], index: 14, kind: input, shape index: {}]
  %s15 = inlined_call_operand.vmem [shape: f32[1,32], index: 15, kind: input, shape index: {}]
  %s16 = inlined_call_operand.vmem [shape: f32[1,32], index: 16, kind: input, shape index: {}]
  %s17 = inlined_call_operand.vmem [shape: f32[1,32], index: 17, kind: input, shape index: {}]
  %s18 = inlined_call_operand.vmem [shape: f32[32,96], index: 18, kind: input, shape index: {}]
  %s19 = inlined_call_operand.vmem [shape: f32[1,96], index: 19, kind: input, shape index: {}]
  %s20 = inlined_call_operand.vmem [shape: f32[4,3], index: 20, kind: input, shape index: {}]
  %s21 = inlined_call_operand.vmem [shape: f32[1,3], index: 21, kind: input, shape index: {}]
  %s22 = inlined_call_operand.vmem [shape: f32[32,3], index: 22, kind: input, shape index: {}]
  %s23 = inlined_call_operand.vmem [shape: f32[1,3], index: 23, kind: input, shape index: {}]
  %s24 = inlined_call_operand.hbm [shape: f32[2,3], index: 24, kind: output, shape index: {}]
  %s25 = sld [smem:[#allocation0]]
  $region106: #{branchnet_forward.1} parent=0
    _
  %s27 = ssub.s32 1, %s25
  %s28 = scalar_select 0, %s27, %s25
  $region1: #{branchnet_forward.1} parent=0
    #allocation5 [shape = 'u8[1024]{0}', space=vmem, size = 0x400, scoped, tag = 'output window, operand 0, single buffered']
    #allocation6 [shape = 's32[1]{0}', space=sflag, size = 0x4, scoped, tag = 'scoped memory for branchnet_forward.1']
    %29 = vsyncpa [#allocation6], 0
    // Predicated region
    $region2: #{branchnet_forward.1} parent=1 // pred_check
      _
    $region3: #{branchnet_forward.1} parent=1 // pred_check_branch
      %31 = sbr.rel (0) target = $region5
    $region4: #{branchnet_forward.1} parent=1 // pred_region
      _
    $region5: #{branchnet_forward.1} parent=1 // pred_fallthru
      _
    // Predicated region
    $region6: #{branchnet_forward.1} parent=1 // pred_check
      _
    $region7: #{branchnet_forward.1} parent=1 // pred_check_branch
      %33 = sbr.rel (0) target = $region9
    $region8: #{branchnet_forward.1} parent=1 // pred_region
      _
    $region9: #{branchnet_forward.1} parent=1 // pred_fallthru
      _
    // Predicated region
    $region10: #{branchnet_forward.1} parent=1 // pred_check
      _
    $region11: #{branchnet_forward.1} parent=1 // pred_check_branch
      %35 = sbr.rel (0) target = $region13
    $region12: #{branchnet_forward.1} parent=1 // pred_region
      _
    $region13: #{branchnet_forward.1} parent=1 // pred_fallthru
      _
    // Predicated region
    $region14: #{branchnet_forward.1} parent=1 // pred_check
      _
    $region15: #{branchnet_forward.1} parent=1 // pred_check_branch
      %37 = sbr.rel (0) target = $region17
    $region16: #{branchnet_forward.1} parent=1 // pred_region
      _
    $region17: #{branchnet_forward.1} parent=1 // pred_fallthru
      _
    // Predicated region
    $region18: #{branchnet_forward.1} parent=1 // pred_check
      _
    $region19: #{branchnet_forward.1} parent=1 // pred_check_branch
      %39 = sbr.rel (0) target = $region21
    $region20: #{branchnet_forward.1} parent=1 // pred_region
      _
    $region21: #{branchnet_forward.1} parent=1 // pred_fallthru
      _
    // Predicated region
    $region22: #{branchnet_forward.1} parent=1 // pred_check
      _
    $region23: #{branchnet_forward.1} parent=1 // pred_check_branch
      %41 = sbr.rel (0) target = $region25
    $region24: #{branchnet_forward.1} parent=1 // pred_region
      _
    $region25: #{branchnet_forward.1} parent=1 // pred_fallthru
      _
    // Predicated region
    $region26: #{branchnet_forward.1} parent=1 // pred_check
      _
    $region27: #{branchnet_forward.1} parent=1 // pred_check_branch
      %43 = sbr.rel (0) target = $region29
    $region28: #{branchnet_forward.1} parent=1 // pred_region
      _
    $region29: #{branchnet_forward.1} parent=1 // pred_fallthru
      _
    // Predicated region
    $region30: #{branchnet_forward.1} parent=1 // pred_check
      _
    $region31: #{branchnet_forward.1} parent=1 // pred_check_branch
      %45 = sbr.rel (0) target = $region33
    $region32: #{branchnet_forward.1} parent=1 // pred_region
      _
    $region33: #{branchnet_forward.1} parent=1 // pred_fallthru
      _
    // Predicated region
    $region34: #{branchnet_forward.1} parent=1 // pred_check
      _
    $region35: #{branchnet_forward.1} parent=1 // pred_check_branch
      %47 = sbr.rel (0) target = $region37
    $region36: #{branchnet_forward.1} parent=1 // pred_region
      _
    $region37: #{branchnet_forward.1} parent=1 // pred_fallthru
      _
    // Predicated region
    $region38: #{branchnet_forward.1} parent=1 // pred_check
      _
    $region39: #{branchnet_forward.1} parent=1 // pred_check_branch
      %49 = sbr.rel (0) target = $region41
    $region40: #{branchnet_forward.1} parent=1 // pred_region
      _
    $region41: #{branchnet_forward.1} parent=1 // pred_fallthru
      _
    // Predicated region
    $region42: #{branchnet_forward.1} parent=1 // pred_check
      _
    $region43: #{branchnet_forward.1} parent=1 // pred_check_branch
      %51 = sbr.rel (0) target = $region45
    $region44: #{branchnet_forward.1} parent=1 // pred_region
      _
    $region45: #{branchnet_forward.1} parent=1 // pred_fallthru
      _
    // Predicated region
    $region46: #{branchnet_forward.1} parent=1 // pred_check
      _
    $region47: #{branchnet_forward.1} parent=1 // pred_check_branch
      %53 = sbr.rel (0) target = $region49
    $region48: #{branchnet_forward.1} parent=1 // pred_region
      _
    $region49: #{branchnet_forward.1} parent=1 // pred_fallthru
      _
    // Predicated region
    $region50: #{branchnet_forward.1} parent=1 // pred_check
      _
    $region51: #{branchnet_forward.1} parent=1 // pred_check_branch
      %55 = sbr.rel (0) target = $region53
    $region52: #{branchnet_forward.1} parent=1 // pred_region
      _
    $region53: #{branchnet_forward.1} parent=1 // pred_fallthru
      _
    // Predicated region
    $region54: #{branchnet_forward.1} parent=1 // pred_check
      _
    $region55: #{branchnet_forward.1} parent=1 // pred_check_branch
      %57 = sbr.rel (0) target = $region57
    $region56: #{branchnet_forward.1} parent=1 // pred_region
      _
    $region57: #{branchnet_forward.1} parent=1 // pred_fallthru
      _
    // Predicated region
    $region58: #{branchnet_forward.1} parent=1 // pred_check
      _
    $region59: #{branchnet_forward.1} parent=1 // pred_check_branch
      %59 = sbr.rel (0) target = $region61
    $region60: #{branchnet_forward.1} parent=1 // pred_region
      _
    $region61: #{branchnet_forward.1} parent=1 // pred_fallthru
      _
    // Predicated region
    $region62: #{branchnet_forward.1} parent=1 // pred_check
      _
    $region63: #{branchnet_forward.1} parent=1 // pred_check_branch
      %61 = sbr.rel (0) target = $region65
    $region64: #{branchnet_forward.1} parent=1 // pred_region
      _
    $region65: #{branchnet_forward.1} parent=1 // pred_fallthru
      _
    // Predicated region
    $region66: #{branchnet_forward.1} parent=1 // pred_check
      _
    $region67: #{branchnet_forward.1} parent=1 // pred_check_branch
      %63 = sbr.rel (0) target = $region69
    $region68: #{branchnet_forward.1} parent=1 // pred_region
      _
    $region69: #{branchnet_forward.1} parent=1 // pred_fallthru
      _
    // Predicated region
    $region70: #{branchnet_forward.1} parent=1 // pred_check
      _
    $region71: #{branchnet_forward.1} parent=1 // pred_check_branch
      %65 = sbr.rel (0) target = $region73
    $region72: #{branchnet_forward.1} parent=1 // pred_region
      _
    $region73: #{branchnet_forward.1} parent=1 // pred_fallthru
      _
    // Predicated region
    $region74: #{branchnet_forward.1} parent=1 // pred_check
      _
    $region75: #{branchnet_forward.1} parent=1 // pred_check_branch
      %67 = sbr.rel (0) target = $region77
    $region76: #{branchnet_forward.1} parent=1 // pred_region
      _
    $region77: #{branchnet_forward.1} parent=1 // pred_fallthru
      _
    // Predicated region
    $region78: #{branchnet_forward.1} parent=1 // pred_check
      _
    $region79: #{branchnet_forward.1} parent=1 // pred_check_branch
      %69 = sbr.rel (0) target = $region81
    $region80: #{branchnet_forward.1} parent=1 // pred_region
      _
    $region81: #{branchnet_forward.1} parent=1 // pred_fallthru
      _
    // Predicated region
    $region82: #{branchnet_forward.1} parent=1 // pred_check
      _
    $region83: #{branchnet_forward.1} parent=1 // pred_check_branch
      %71 = sbr.rel (0) target = $region85
    $region84: #{branchnet_forward.1} parent=1 // pred_region
      _
    $region85: #{branchnet_forward.1} parent=1 // pred_fallthru
      _
    // Predicated region
    $region86: #{branchnet_forward.1} parent=1 // pred_check
      _
    $region87: #{branchnet_forward.1} parent=1 // pred_check_branch
      %73 = sbr.rel (0) target = $region89
    $region88: #{branchnet_forward.1} parent=1 // pred_region
      _
    $region89: #{branchnet_forward.1} parent=1 // pred_fallthru
      _
    // Predicated region
    $region90: #{branchnet_forward.1} parent=1 // pred_check
      _
    $region91: #{branchnet_forward.1} parent=1 // pred_check_branch
      %75 = sbr.rel (0) target = $region93
    $region92: #{branchnet_forward.1} parent=1 // pred_region
      _
    $region93: #{branchnet_forward.1} parent=1 // pred_fallthru
      _
    // Predicated region
    $region94: #{branchnet_forward.1} parent=1 // pred_check
      _
    $region95: #{branchnet_forward.1} parent=1 // pred_check_branch
      %77 = sbr.rel (0) target = $region97
    $region96: #{branchnet_forward.1} parent=1 // pred_region
      _
    $region97: #{branchnet_forward.1} parent=1 // pred_fallthru
      _
    %vm78 = vcmask 31744
    %79 = vst.msk [vmem:[#allocation2] sm:$0xff] %vm78, 0.0
    %vm80 = vcmask 30720
    %81 = vst.msk [vmem:[#allocation2 + $0x8] sm:$0x7f] %vm80, 0.0
    %82 = vst.msk [vmem:[#allocation2 + $0x10] sm:$0xff] %vm78, 0.0
    %83 = vst.msk [vmem:[#allocation2 + $0x18] sm:$0x7f] %vm80, 0.0
    %v84 = vld [vmem:[%s0] sm:$0xff]
    %v85 = vld [vmem:[%s0 + $0x8] sm:$0xff]
    %86 = vst.msk [vmem:[#allocation2 + $0x3] sm:$0xff] %vm78, %v84
    %87 = vst.msk [vmem:[#allocation2 + $0x13] sm:$0xff] %vm78, %v85
    %v88 = vld [vmem:[#allocation2] sm:$0xff]
    %v89 = vld [vmem:[#allocation2 + $0x10] sm:$0xff]
    %90 = vst.msk [vmem:[#allocation3] sm:$0xff] %vm78, %v88
    %91 = vst.msk [vmem:[#allocation3 + $0x8] sm:$0xff] %vm78, %v89
    %v92 = vld [vmem:[#allocation2 + $0x1] sm:$0xff]
    %v93 = vld [vmem:[#allocation2 + $0x11] sm:$0xff]
    %96 = vrot.lane.b32.xlu0 %v92, 4
    %v97 = vpop.permute.xlu0 %96
    %98 = vrot.lane.b32.xlu0 %v93, 4
    %v99 = vpop.permute.xlu0 %98
    %vm102 = vcmask 64544
    %103 = vst.msk [vmem:[#allocation3] sm:$0xff] %vm102, %v97
    %104 = vst.msk [vmem:[#allocation3 + $0x8] sm:$0xff] %vm102, %v99
    %v105 = vld [vmem:[#allocation2 + $0x2] sm:$0xff]
    %v106 = vld [vmem:[#allocation2 + $0x12] sm:$0xff]
    %109 = vrot.lane.b32.xlu0 %v105, 8
    %v110 = vpop.permute.xlu0 %109
    %111 = vrot.lane.b32.xlu0 %v106, 8
    %v112 = vpop.permute.xlu0 %111
    %vm115 = vcmask 97344
    %116 = vst.msk [vmem:[#allocation3] sm:$0xff] %vm115, %v110
    %117 = vst.msk [vmem:[#allocation3 + $0x8] sm:$0xff] %vm115, %v112
    %v118 = vld [vmem:[#allocation2 + $0x3] sm:$0xff]
    %v119 = vld [vmem:[#allocation2 + $0x13] sm:$0xff]
    %122 = vrot.lane.b32.xlu0 %v118, 12
    %v123 = vpop.permute.xlu0 %122
    %124 = vrot.lane.b32.xlu0 %v119, 12
    %v125 = vpop.permute.xlu0 %124
    %vm128 = vcmask 130144
    %129 = vst.msk [vmem:[#allocation3] sm:$0xff] %vm128, %v123
    %130 = vst.msk [vmem:[#allocation3 + $0x8] sm:$0xff] %vm128, %v125
    %v131 = vld [vmem:[#allocation2 + $0x4] sm:$0xff]
    %v132 = vld [vmem:[#allocation2 + $0x14] sm:$0xff]
    %135 = vrot.lane.b32.xlu0 %v131, 16
    %v136 = vpop.permute.xlu0 %135
    %137 = vrot.lane.b32.xlu0 %v132, 16
    %v138 = vpop.permute.xlu0 %137
    %vm141 = vcmask 162944
    %142 = vst.msk [vmem:[#allocation3] sm:$0xff] %vm141, %v136
    %143 = vst.msk [vmem:[#allocation3 + $0x8] sm:$0xff] %vm141, %v138
    %v144 = vld [vmem:[#allocation2 + $0x5] sm:$0xff]
    %v145 = vld [vmem:[#allocation2 + $0x15] sm:$0xff]
    %148 = vrot.lane.b32.xlu0 %v144, 20
    %v149 = vpop.permute.xlu0 %148
    %150 = vrot.lane.b32.xlu0 %v145, 20
    %v151 = vpop.permute.xlu0 %150
    %vm154 = vcmask 195744
    %155 = vst.msk [vmem:[#allocation3] sm:$0xff] %vm154, %v149
    %156 = vst.msk [vmem:[#allocation3 + $0x8] sm:$0xff] %vm154, %v151
    %v157 = vld [vmem:[#allocation2 + $0x6] sm:$0xff]
    %v158 = vld [vmem:[#allocation2 + $0x16] sm:$0xff]
    %161 = vrot.lane.b32.xlu0 %v157, 24
    %v162 = vpop.permute.xlu0 %161
    %163 = vrot.lane.b32.xlu0 %v158, 24
    %v164 = vpop.permute.xlu0 %163
    %vm167 = vcmask 228544
    %168 = vst.msk [vmem:[#allocation3] sm:$0xff] %vm167, %v162
    %169 = vst.msk [vmem:[#allocation3 + $0x8] sm:$0xff] %vm167, %v164
    %v170 = vld [vmem:[#allocation2 + $0x7] sm:$0xff]
    %v171 = vld [vmem:[#allocation2 + $0x17] sm:$0xff]
    %174 = vrot.lane.b32.xlu0 %v170, 28
    %v175 = vpop.permute.xlu0 %174
    %176 = vrot.lane.b32.xlu0 %v171, 28
    %v177 = vpop.permute.xlu0 %176
    %vm180 = vcmask 261344
    %181 = vst.msk [vmem:[#allocation3] sm:$0xff] %vm180, %v175
    %182 = vst.msk [vmem:[#allocation3 + $0x8] sm:$0xff] %vm180, %v177
    %v183 = vld [vmem:[#allocation3] sm:$0xff]
    %v184 = vld [vmem:[#allocation3 + $0x8] sm:$0xff]
    %v185 = vld [vmem:[%s2] sm:$0xff]
    %v186 = vld [vmem:[%s2 + $0x8] sm:$0xff]
    %v187 = vld [vmem:[%s2 + $0x10] sm:$0xff]
    %v188 = vld [vmem:[%s2 + $0x18] sm:$0xff]
    %v189 = vld [vmem:[%s2 + $0x20] sm:$0xff]
    %v190 = vld [vmem:[%s2 + $0x28] sm:$0xff]
    %v191 = vld [vmem:[%s2 + $0x30] sm:$0xff]
    %v192 = vld [vmem:[%s2 + $0x38] sm:$0xff]
    %v193 = vld [vmem:[%s2 + $0x40] sm:$0xff]
    %v194 = vld [vmem:[%s2 + $0x48] sm:$0xff]
    %v195 = vld [vmem:[%s2 + $0x50] sm:$0xff]
    %v196 = vld [vmem:[%s2 + $0x58] sm:$0xff]
    %v197 = vld [vmem:[%s2 + $0x60] sm:$0xff]
    %v198 = vld [vmem:[%s2 + $0x68] sm:$0xff]
    %v199 = vld [vmem:[%s2 + $0x70] sm:$0xff]
    %v200 = vld [vmem:[%s2 + $0x78] sm:$0xff]
    %v201 = vld [vmem:[%s3] sm:$0xf]
    %v203 = vlaneseq
    %v204 = vshrl.u32 %v203, 7
    %v205 = vsub.s32 0, %v204
    %v206 = vrot.slane %v201, %v205
    %v207 = vlaneseq
    %v208 = vshrl.u32 %v207, 7
    %v209 = vsub.s32 1, %v208
    %v210 = vrot.slane %v201, %v209
    %v211 = vlaneseq
    %v212 = vshrl.u32 %v211, 7
    %v213 = vsub.s32 2, %v212
    %v214 = vrot.slane %v201, %v213
    %v215 = vlaneseq
    %v216 = vshrl.u32 %v215, 7
    %v217 = vsub.s32 3, %v216
    %v218 = vrot.slane %v201, %v217
    %vm223 = vcmask 261120
    %v225 = vsel %vm223, %v183, 0
    %v228 = vsel %vm223, %v184, 0
    %230 = vmatprep.subr.mxu0 %v186
    %231 = vmatpush1.msra.mxu0 %v185
    %232 = vmatprep.subr.mxu0 %v190
    %233 = vmatpush1.msra.mxu0 %v189
    %234 = vmatprep.subr.mxu0 %v194
    %235 = vmatpush1.msra.mxu0 %v193
    %236 = vmatprep.subr.mxu0 %v198
    %237 = vmatpush1.msra.mxu0 %v197
    %238 = vmatprep.subr.mxu0 0.0
    %239 = vmatpush1.msra.mxu0 0.0
    %240 = vmatprep.subr.mxu0 0.0
    %241 = vmatpush1.msra.mxu0 0.0
    %242 = vmatprep.subr.mxu0 0.0
    %243 = vmatpush1.msra.mxu0 0.0
    %244 = vmatprep.subr.mxu0 0.0
    %245 = vmatpush1.msra.mxu0 0.0
    %246 = vmatprep.subr.mxu0 0.0
    %247 = vmatpush1.msra.mxu0 0.0
    %248 = vmatprep.subr.mxu0 0.0
    %249 = vmatpush1.msra.mxu0 0.0
    %250 = vmatprep.subr.mxu0 0.0
    %251 = vmatpush1.msra.mxu0 0.0
    %252 = vmatprep.subr.mxu0 0.0
    %253 = vmatpush1.msra.mxu0 0.0
    %254 = vmatprep.subr.mxu0 0.0
    %255 = vmatpush1.msra.mxu0 0.0
    %256 = vmatprep.subr.mxu0 0.0
    %257 = vmatpush1.msra.mxu0 0.0
    %258 = vmatprep.subr.mxu0 0.0
    %259 = vmatpush1.msra.mxu0 0.0
    %260 = vmatprep.subr.mxu0 0.0
    %261 = vmatpush1.msra.mxu0 0.0
    %262 = vmatprep.subr.mxu0 0.0
    %263 = vmatpush1.msra.mxu0 0.0
    %264 = vmatprep.subr.mxu0 0.0
    %265 = vmatpush1.msra.mxu0 0.0
    %266 = vmatprep.subr.mxu0 0.0
    %267 = vmatpush1.msra.mxu0 0.0
    %268 = vmatprep.subr.mxu0 0.0
    %269 = vmatpush1.msra.mxu0 0.0
    %270 = vmatprep.subr.mxu0 0.0
    %271 = vmatpush1.msra.mxu0 0.0
    %272 = vmatprep.subr.mxu0 0.0
    %273 = vmatpush1.msra.mxu0 0.0
    %274 = vmatprep.subr.mxu0 0.0
    %275 = vmatpush1.msra.mxu0 0.0
    %276 = vmatprep.subr.mxu0 0.0
    %277 = vmatpush1.msra.mxu0 0.0
    %278 = vmatprep.subr.mxu0 0.0
    %279 = vmatpush1.msra.mxu0 0.0
    %280 = vmatprep.subr.mxu0 0.0
    %281 = vmatpush1.msra.mxu0 0.0
    %282 = vmatprep.subr.mxu0 0.0
    %283 = vmatpush1.msra.mxu0 0.0
    %284 = vmatprep.subr.mxu0 0.0
    %285 = vmatpush1.msra.mxu0 0.0
    %286 = vmatprep.subr.mxu0 0.0
    %287 = vmatpush1.msra.mxu0 0.0
    %288 = vmatprep.subr.mxu0 0.0
    %289 = vmatpush1.msra.mxu0 0.0
    %290 = vmatprep.subr.mxu0 0.0
    %291 = vmatpush1.msra.mxu0 0.0
    %292 = vmatprep.subr.mxu0 0.0
    %293 = vmatpush1.msra.mxu0 0.0
    %294 = vmatprep.mubr.f32.mxu0 0.0
    %295 = vmatmul.mubr.f32.gmra.mrb[0].mxu0 %v225
    %v296 = vpop.f32.mrb[0].mxu0
    %v297 = vadd.f32 %v206, %v296
    %v298 = vpop.f32.mrb[0].mxu0
    %v299 = vadd.f32 %v210, %v298
    %300 = vmatprep.mubr.f32.mxu0 0.0
    %301 = vmatmul.mubr.f32.gmra.mrb[0].mxu0 %v228
    %v302 = vpop.f32.mrb[0].mxu0
    %v303 = vadd.f32 %v206, %v302
    %v304 = vpop.f32.mrb[0].mxu0
    %v305 = vadd.f32 %v210, %v304
    %306 = vdwg.mxu0
    %307 = vmatprep.subr.mxu0 %v188
    %308 = vmatpush1.msra.mxu0 %v187
    %309 = vmatprep.subr.mxu0 %v192
    %310 = vmatpush1.msra.mxu0 %v191
    %311 = vmatprep.subr.mxu0 %v196
    %312 = vmatpush1.msra.mxu0 %v195
    %313 = vmatprep.subr.mxu0 %v200
    %314 = vmatpush1.msra.mxu0 %v199
    %315 = vmatprep.subr.mxu0 0.0
    %316 = vmatpush1.msra.mxu0 0.0
    %317 = vmatprep.subr.mxu0 0.0
    %318 = vmatpush1.msra.mxu0 0.0
    %319 = vmatprep.subr.mxu0 0.0
    %320 = vmatpush1.msra.mxu0 0.0
    %321 = vmatprep.subr.mxu0 0.0
    %322 = vmatpush1.msra.mxu0 0.0
    %323 = vmatprep.subr.mxu0 0.0
    %324 = vmatpush1.msra.mxu0 0.0
    %325 = vmatprep.subr.mxu0 0.0
    %326 = vmatpush1.msra.mxu0 0.0
    %327 = vmatprep.subr.mxu0 0.0
    %328 = vmatpush1.msra.mxu0 0.0
    %329 = vmatprep.subr.mxu0 0.0
    %330 = vmatpush1.msra.mxu0 0.0
    %331 = vmatprep.subr.mxu0 0.0
    %332 = vmatpush1.msra.mxu0 0.0
    %333 = vmatprep.subr.mxu0 0.0
    %334 = vmatpush1.msra.mxu0 0.0
    %335 = vmatprep.subr.mxu0 0.0
    %336 = vmatpush1.msra.mxu0 0.0
    %337 = vmatprep.subr.mxu0 0.0
    %338 = vmatpush1.msra.mxu0 0.0
    %339 = vmatprep.subr.mxu0 0.0
    %340 = vmatpush1.msra.mxu0 0.0
    %341 = vmatprep.subr.mxu0 0.0
    %342 = vmatpush1.msra.mxu0 0.0
    %343 = vmatprep.subr.mxu0 0.0
    %344 = vmatpush1.msra.mxu0 0.0
    %345 = vmatprep.subr.mxu0 0.0
    %346 = vmatpush1.msra.mxu0 0.0
    %347 = vmatprep.subr.mxu0 0.0
    %348 = vmatpush1.msra.mxu0 0.0
    %349 = vmatprep.subr.mxu0 0.0
    %350 = vmatpush1.msra.mxu0 0.0
    %351 = vmatprep.subr.mxu0 0.0
    %352 = vmatpush1.msra.mxu0 0.0
    %353 = vmatprep.subr.mxu0 0.0
    %354 = vmatpush1.msra.mxu0 0.0
    %355 = vmatprep.subr.mxu0 0.0
    %356 = vmatpush1.msra.mxu0 0.0
    %357 = vmatprep.subr.mxu0 0.0
    %358 = vmatpush1.msra.mxu0 0.0
    %359 = vmatprep.subr.mxu0 0.0
    %360 = vmatpush1.msra.mxu0 0.0
    %361 = vmatprep.subr.mxu0 0.0
    %362 = vmatpush1.msra.mxu0 0.0
    %363 = vmatprep.subr.mxu0 0.0
    %364 = vmatpush1.msra.mxu0 0.0
    %365 = vmatprep.subr.mxu0 0.0
    %366 = vmatpush1.msra.mxu0 0.0
    %367 = vmatprep.subr.mxu0 0.0
    %368 = vmatpush1.msra.mxu0 0.0
    %369 = vmatprep.subr.mxu0 0.0
    %370 = vmatpush1.msra.mxu0 0.0
    %371 = vmatprep.mubr.f32.mxu0 0.0
    %372 = vmatmul.mubr.f32.gmra.mrb[0].mxu0 %v225
    %v373 = vpop.f32.mrb[0].mxu0
    %v374 = vadd.f32 %v214, %v373
    %v375 = vpop.f32.mrb[0].mxu0
    %v376 = vadd.f32 %v218, %v375
    %377 = vmatprep.mubr.f32.mxu0 0.0
    %378 = vmatmul.mubr.f32.gmra.mrb[0].mxu0 %v228
    %v379 = vpop.f32.mrb[0].mxu0
    %v380 = vadd.f32 %v214, %v379
    %v381 = vpop.f32.mrb[0].mxu0
    %v382 = vadd.f32 %v218, %v381
    %383 = vdwg.mxu0
    %v384 = vmul.f32 %v297, 0.5
    %v385 = vmul.f32 %v299, 0.5
    %v386 = vmul.f32 %v374, 0.5
    %v387 = vmul.f32 %v376, 0.5
    %v388 = vmul.f32 %v303, 0.5
    %v389 = vmul.f32 %v305, 0.5
    %v390 = vmul.f32 %v380, 0.5
    %v391 = vmul.f32 %v382, 0.5
    %v392 = vmul.f32 %v297, 0.044715
    %v393 = vmul.f32 %v299, 0.044715
    %v394 = vmul.f32 %v374, 0.044715
    %v395 = vmul.f32 %v376, 0.044715
    %v396 = vmul.f32 %v303, 0.044715
    %v397 = vmul.f32 %v305, 0.044715
    %v398 = vmul.f32 %v380, 0.044715
    %v399 = vmul.f32 %v382, 0.044715
    %v400 = vmul.f32 %v392, %v297
    %v401 = vmul.f32 %v393, %v299
    %v402 = vmul.f32 %v394, %v374
    %v403 = vmul.f32 %v395, %v376
    %v404 = vmul.f32 %v396, %v303
    %v405 = vmul.f32 %v397, %v305
    %v406 = vmul.f32 %v398, %v380
    %v407 = vmul.f32 %v399, %v382
    %v408 = vmul.f32 %v400, %v297
    %v409 = vmul.f32 %v401, %v299
    %v410 = vmul.f32 %v402, %v374
    %v411 = vmul.f32 %v403, %v376
    %v412 = vmul.f32 %v404, %v303
    %v413 = vmul.f32 %v405, %v305
    %v414 = vmul.f32 %v406, %v380
    %v415 = vmul.f32 %v407, %v382
    %v416 = vadd.f32 %v297, %v408
    %v417 = vadd.f32 %v299, %v409
    %v418 = vadd.f32 %v374, %v410
    %v419 = vadd.f32 %v376, %v411
    %v420 = vadd.f32 %v303, %v412
    %v421 = vadd.f32 %v305, %v413
    %v422 = vadd.f32 %v380, %v414
    %v423 = vadd.f32 %v382, %v415
    %v424 = vmul.f32 %v416, 0.7978846
    %v425 = vmul.f32 %v417, 0.7978846
    %v426 = vmul.f32 %v418, 0.7978846
    %v427 = vmul.f32 %v419, 0.7978846
    %v428 = vmul.f32 %v420, 0.7978846
    %v429 = vmul.f32 %v421, 0.7978846
    %v430 = vmul.f32 %v422, 0.7978846
    %v431 = vmul.f32 %v423, 0.7978846
    %v432 = vtanh.pop %v424
    %v433 = vtanh.pop %v425
    %v434 = vtanh.pop %v426
    %v435 = vtanh.pop %v427
    %v436 = vtanh.pop %v428
    %v437 = vtanh.pop %v429
    %v438 = vtanh.pop %v430
    %v439 = vtanh.pop %v431
    %v440 = vadd.f32 %v432, 1.0
    %v441 = vadd.f32 %v433, 1.0
    %v442 = vadd.f32 %v434, 1.0
    %v443 = vadd.f32 %v435, 1.0
    %v444 = vadd.f32 %v436, 1.0
    %v445 = vadd.f32 %v437, 1.0
    %v446 = vadd.f32 %v438, 1.0
    %v447 = vadd.f32 %v439, 1.0
    %v448 = vmul.f32 %v384, %v440
    %v449 = vmul.f32 %v385, %v441
    %v450 = vmul.f32 %v386, %v442
    %v451 = vmul.f32 %v387, %v443
    %v452 = vmul.f32 %v388, %v444
    %v453 = vmul.f32 %v389, %v445
    %v454 = vmul.f32 %v390, %v446
    %v455 = vmul.f32 %v391, %v447
    %v456 = vld [vmem:[%s4] sm:$0xff]
    %v457 = vld [vmem:[%s4 + $0x8] sm:$0xff]
    %v458 = vld [vmem:[%s4 + $0x10] sm:$0xff]
    %v459 = vld [vmem:[%s4 + $0x18] sm:$0xff]
    %v460 = vld [vmem:[%s4 + $0x20] sm:$0xff]
    %v461 = vld [vmem:[%s4 + $0x28] sm:$0xff]
    %v462 = vld [vmem:[%s4 + $0x30] sm:$0xff]
    %v463 = vld [vmem:[%s4 + $0x38] sm:$0xff]
    %v464 = vld [vmem:[%s4 + $0x40] sm:$0xff]
    %v465 = vld [vmem:[%s4 + $0x48] sm:$0xff]
    %v466 = vld [vmem:[%s4 + $0x50] sm:$0xff]
    %v467 = vld [vmem:[%s4 + $0x58] sm:$0xff]
    %v468 = vld [vmem:[%s4 + $0x60] sm:$0xff]
    %v469 = vld [vmem:[%s4 + $0x68] sm:$0xff]
    %v470 = vld [vmem:[%s4 + $0x70] sm:$0xff]
    %v471 = vld [vmem:[%s4 + $0x78] sm:$0xff]
    %v472 = vld [vmem:[%s4 + $0x80] sm:$0xff]
    %v473 = vld [vmem:[%s4 + $0x88] sm:$0xff]
    %v474 = vld [vmem:[%s4 + $0x90] sm:$0xff]
    %v475 = vld [vmem:[%s4 + $0x98] sm:$0xff]
    %v476 = vld [vmem:[%s4 + $0xa0] sm:$0xff]
    %v477 = vld [vmem:[%s4 + $0xa8] sm:$0xff]
    %v478 = vld [vmem:[%s4 + $0xb0] sm:$0xff]
    %v479 = vld [vmem:[%s4 + $0xb8] sm:$0xff]
    %v480 = vld [vmem:[%s4 + $0xc0] sm:$0xff]
    %v481 = vld [vmem:[%s4 + $0xc8] sm:$0xff]
    %v482 = vld [vmem:[%s4 + $0xd0] sm:$0xff]
    %v483 = vld [vmem:[%s4 + $0xd8] sm:$0xff]
    %v484 = vld [vmem:[%s4 + $0xe0] sm:$0xff]
    %v485 = vld [vmem:[%s4 + $0xe8] sm:$0xff]
    %v486 = vld [vmem:[%s4 + $0xf0] sm:$0xff]
    %v487 = vld [vmem:[%s4 + $0xf8] sm:$0xff]
    %v488 = vld [vmem:[%s4 + $0x100] sm:$0xff]
    %v489 = vld [vmem:[%s4 + $0x108] sm:$0xff]
    %v490 = vld [vmem:[%s4 + $0x110] sm:$0xff]
    %v491 = vld [vmem:[%s4 + $0x118] sm:$0xff]
    %v492 = vld [vmem:[%s4 + $0x120] sm:$0xff]
    %v493 = vld [vmem:[%s4 + $0x128] sm:$0xff]
    %v494 = vld [vmem:[%s4 + $0x130] sm:$0xff]
    %v495 = vld [vmem:[%s4 + $0x138] sm:$0xff]
    %v496 = vld [vmem:[%s4 + $0x140] sm:$0xff]
    %v497 = vld [vmem:[%s4 + $0x148] sm:$0xff]
    %v498 = vld [vmem:[%s4 + $0x150] sm:$0xff]
    %v499 = vld [vmem:[%s4 + $0x158] sm:$0xff]
    %v500 = vld [vmem:[%s4 + $0x160] sm:$0xff]
    %v501 = vld [vmem:[%s4 + $0x168] sm:$0xff]
    %v502 = vld [vmem:[%s4 + $0x170] sm:$0xff]
    %v503 = vld [vmem:[%s4 + $0x178] sm:$0xff]
    %v504 = vld [vmem:[%s4 + $0x180] sm:$0xff]
    %v505 = vld [vmem:[%s4 + $0x188] sm:$0xff]
    %v506 = vld [vmem:[%s4 + $0x190] sm:$0xff]
    %v507 = vld [vmem:[%s4 + $0x198] sm:$0xff]
    %v508 = vld [vmem:[%s4 + $0x1a0] sm:$0xff]
    %v509 = vld [vmem:[%s4 + $0x1a8] sm:$0xff]
    %v510 = vld [vmem:[%s4 + $0x1b0] sm:$0xff]
    %v511 = vld [vmem:[%s4 + $0x1b8] sm:$0xff]
    %v512 = vld [vmem:[%s4 + $0x1c0] sm:$0xff]
    %v513 = vld [vmem:[%s4 + $0x1c8] sm:$0xff]
    %v514 = vld [vmem:[%s4 + $0x1d0] sm:$0xff]
    %v515 = vld [vmem:[%s4 + $0x1d8] sm:$0xff]
    %v516 = vld [vmem:[%s4 + $0x1e0] sm:$0xff]
    %v517 = vld [vmem:[%s4 + $0x1e8] sm:$0xff]
    %v518 = vld [vmem:[%s4 + $0x1f0] sm:$0xff]
    %v519 = vld [vmem:[%s4 + $0x1f8] sm:$0xff]
    %v520 = vld [vmem:[%s5] sm:$0x1]
    %v522 = vlaneseq
    %v523 = vshrl.u32 %v522, 7
    %v524 = vsub.s32 0, %v523
    %v525 = vrot.slane %v520, %v524
    %527 = vmatprep.subr.mxu0 0.0
    %528 = vmatpush1.msra.mxu0 %v456
    %529 = vmatprep.subr.mxu0 0.0
    %530 = vmatpush1.msra.mxu0 %v457
    %531 = vmatprep.subr.mxu0 0.0
    %532 = vmatpush1.msra.mxu0 %v458
    %533 = vmatprep.subr.mxu0 0.0
    %534 = vmatpush1.msra.mxu0 %v459
    %535 = vmatprep.subr.mxu0 0.0
    %536 = vmatpush1.msra.mxu0 %v460
    %537 = vmatprep.subr.mxu0 0.0
    %538 = vmatpush1.msra.mxu0 %v461
    %539 = vmatprep.subr.mxu0 0.0
    %540 = vmatpush1.msra.mxu0 %v462
    %541 = vmatprep.subr.mxu0 0.0
    %542 = vmatpush1.msra.mxu0 %v463
    %543 = vmatprep.subr.mxu0 0.0
    %544 = vmatpush1.msra.mxu0 %v464
    %545 = vmatprep.subr.mxu0 0.0
    %546 = vmatpush1.msra.mxu0 %v465
    %547 = vmatprep.subr.mxu0 0.0
    %548 = vmatpush1.msra.mxu0 %v466
    %549 = vmatprep.subr.mxu0 0.0
    %550 = vmatpush1.msra.mxu0 %v467
    %551 = vmatprep.subr.mxu0 0.0
    %552 = vmatpush1.msra.mxu0 %v468
    %553 = vmatprep.subr.mxu0 0.0
    %554 = vmatpush1.msra.mxu0 %v469
    %555 = vmatprep.subr.mxu0 0.0
    %556 = vmatpush1.msra.mxu0 %v470
    %557 = vmatprep.subr.mxu0 0.0
    %558 = vmatpush1.msra.mxu0 %v471
    %559 = vmatprep.subr.mxu0 0.0
    %560 = vmatpush1.msra.mxu0 %v472
    %561 = vmatprep.subr.mxu0 0.0
    %562 = vmatpush1.msra.mxu0 %v473
    %563 = vmatprep.subr.mxu0 0.0
    %564 = vmatpush1.msra.mxu0 %v474
    %565 = vmatprep.subr.mxu0 0.0
    %566 = vmatpush1.msra.mxu0 %v475
    %567 = vmatprep.subr.mxu0 0.0
    %568 = vmatpush1.msra.mxu0 %v476
    %569 = vmatprep.subr.mxu0 0.0
    %570 = vmatpush1.msra.mxu0 %v477
    %571 = vmatprep.subr.mxu0 0.0
    %572 = vmatpush1.msra.mxu0 %v478
    %573 = vmatprep.subr.mxu0 0.0
    %574 = vmatpush1.msra.mxu0 %v479
    %575 = vmatprep.subr.mxu0 0.0
    %576 = vmatpush1.msra.mxu0 %v480
    %577 = vmatprep.subr.mxu0 0.0
    %578 = vmatpush1.msra.mxu0 %v481
    %579 = vmatprep.subr.mxu0 0.0
    %580 = vmatpush1.msra.mxu0 %v482
    %581 = vmatprep.subr.mxu0 0.0
    %582 = vmatpush1.msra.mxu0 %v483
    %583 = vmatprep.subr.mxu0 0.0
    %584 = vmatpush1.msra.mxu0 %v484
    %585 = vmatprep.subr.mxu0 0.0
    %586 = vmatpush1.msra.mxu0 %v485
    %587 = vmatprep.subr.mxu0 0.0
    %588 = vmatpush1.msra.mxu0 %v486
    %589 = vmatprep.subr.mxu0 0.0
    %590 = vmatpush1.msra.mxu0 %v487
    %591 = vmatprep.mubr.f32.mxu0 %v449
    %592 = vmatmul.mubr.f32.gmra.mrb[0].mxu0 %v448
    %v593 = vpop.f32.mrb[0].mxu0
    %v594 = vadd.f32 %v525, %v593
    %v595 = vpop.f32.mrb[0].mxu0
    %596 = vmatprep.mubr.f32.mxu0 %v453
    %597 = vmatmul.mubr.f32.gmra.mrb[0].mxu0 %v452
    %v598 = vpop.f32.mrb[0].mxu0
    %v599 = vadd.f32 %v525, %v598
    %v600 = vpop.f32.mrb[0].mxu0
    %601 = vdwg.mxu0
    %602 = vmatprep.subr.mxu0 0.0
    %603 = vmatpush1.msra.mxu0 %v488
    %604 = vmatprep.subr.mxu0 0.0
    %605 = vmatpush1.msra.mxu0 %v489
    %606 = vmatprep.subr.mxu0 0.0
    %607 = vmatpush1.msra.mxu0 %v490
    %608 = vmatprep.subr.mxu0 0.0
    %609 = vmatpush1.msra.mxu0 %v491
    %610 = vmatprep.subr.mxu0 0.0
    %611 = vmatpush1.msra.mxu0 %v492
    %612 = vmatprep.subr.mxu0 0.0
    %613 = vmatpush1.msra.mxu0 %v493
    %614 = vmatprep.subr.mxu0 0.0
    %615 = vmatpush1.msra.mxu0 %v494
    %616 = vmatprep.subr.mxu0 0.0
    %617 = vmatpush1.msra.mxu0 %v495
    %618 = vmatprep.subr.mxu0 0.0
    %619 = vmatpush1.msra.mxu0 %v496
    %620 = vmatprep.subr.mxu0 0.0
    %621 = vmatpush1.msra.mxu0 %v497
    %622 = vmatprep.subr.mxu0 0.0
    %623 = vmatpush1.msra.mxu0 %v498
    %624 = vmatprep.subr.mxu0 0.0
    %625 = vmatpush1.msra.mxu0 %v499
    %626 = vmatprep.subr.mxu0 0.0
    %627 = vmatpush1.msra.mxu0 %v500
    %628 = vmatprep.subr.mxu0 0.0
    %629 = vmatpush1.msra.mxu0 %v501
    %630 = vmatprep.subr.mxu0 0.0
    %631 = vmatpush1.msra.mxu0 %v502
    %632 = vmatprep.subr.mxu0 0.0
    %633 = vmatpush1.msra.mxu0 %v503
    %634 = vmatprep.subr.mxu0 0.0
    %635 = vmatpush1.msra.mxu0 %v504
    %636 = vmatprep.subr.mxu0 0.0
    %637 = vmatpush1.msra.mxu0 %v505
    %638 = vmatprep.subr.mxu0 0.0
    %639 = vmatpush1.msra.mxu0 %v506
    %640 = vmatprep.subr.mxu0 0.0
    %641 = vmatpush1.msra.mxu0 %v507
    %642 = vmatprep.subr.mxu0 0.0
    %643 = vmatpush1.msra.mxu0 %v508
    %644 = vmatprep.subr.mxu0 0.0
    %645 = vmatpush1.msra.mxu0 %v509
    %646 = vmatprep.subr.mxu0 0.0
    %647 = vmatpush1.msra.mxu0 %v510
    %648 = vmatprep.subr.mxu0 0.0
    %649 = vmatpush1.msra.mxu0 %v511
    %650 = vmatprep.subr.mxu0 0.0
    %651 = vmatpush1.msra.mxu0 %v512
    %652 = vmatprep.subr.mxu0 0.0
    %653 = vmatpush1.msra.mxu0 %v513
    %654 = vmatprep.subr.mxu0 0.0
    %655 = vmatpush1.msra.mxu0 %v514
    %656 = vmatprep.subr.mxu0 0.0
    %657 = vmatpush1.msra.mxu0 %v515
    %658 = vmatprep.subr.mxu0 0.0
    %659 = vmatpush1.msra.mxu0 %v516
    %660 = vmatprep.subr.mxu0 0.0
    %661 = vmatpush1.msra.mxu0 %v517
    %662 = vmatprep.subr.mxu0 0.0
    %663 = vmatpush1.msra.mxu0 %v518
    %664 = vmatprep.subr.mxu0 0.0
    %665 = vmatpush1.msra.mxu0 %v519
    %666 = vmatprep.mubr.f32.mxu0 %v451
    %667 = vmatmul.mubr.f32.gmra.mrb[0].mxu0 %v450
    %v668 = vpop.f32.mrb[0].mxu0
    %v669 = vadd.f32 %v594, %v668
    %v670 = vpop.f32.mrb[0].mxu0
    %671 = vmatprep.mubr.f32.mxu0 %v455
    %672 = vmatmul.mubr.f32.gmra.mrb[0].mxu0 %v454
    %v673 = vpop.f32.mrb[0].mxu0
    %v674 = vadd.f32 %v599, %v673
    %v675 = vpop.f32.mrb[0].mxu0
    %676 = vdwg.mxu0
    %v677 = vmul.f32 %v669, 0.5
    %v678 = vmul.f32 %v674, 0.5
    %v679 = vmul.f32 %v669, 0.044715
    %v680 = vmul.f32 %v674, 0.044715
    %v681 = vmul.f32 %v679, %v669
    %v682 = vmul.f32 %v680, %v674
    %v683 = vmul.f32 %v681, %v669
    %v684 = vmul.f32 %v682, %v674
    %v685 = vadd.f32 %v669, %v683
    %v686 = vadd.f32 %v674, %v684
    %v687 = vmul.f32 %v685, 0.7978846
    %v688 = vmul.f32 %v686, 0.7978846
    %v689 = vtanh.pop %v687
    %v690 = vtanh.pop %v688
    %v691 = vadd.f32 %v689, 1.0
    %v692 = vadd.f32 %v690, 1.0
    %v693 = vmul.f32 %v677, %v691
    %v694 = vmul.f32 %v678, %v692
    %v695 = vld [vmem:[%s6] sm:$0xff]
    %v696 = vadd.f32 %v693, %v695
    %v697 = vadd.f32 %v694, %v695
    %v698 = vld [vmem:[%s7] sm:$0xff]
    %v699 = vld [vmem:[%s7 + $0x8] sm:$0xff]
    %v700 = vld [vmem:[%s7 + $0x10] sm:$0xff]
    %v701 = vld [vmem:[%s7 + $0x18] sm:$0xff]
    %v702 = vld [vmem:[%s7 + $0x20] sm:$0xff]
    %v703 = vld [vmem:[%s7 + $0x28] sm:$0xff]
    %v704 = vld [vmem:[%s7 + $0x30] sm:$0xff]
    %v705 = vld [vmem:[%s7 + $0x38] sm:$0xff]
    %v706 = vld [vmem:[%s7 + $0x40] sm:$0xff]
    %v707 = vld [vmem:[%s7 + $0x48] sm:$0xff]
    %v708 = vld [vmem:[%s7 + $0x50] sm:$0xff]
    %v709 = vld [vmem:[%s7 + $0x58] sm:$0xff]
    %v710 = vld [vmem:[%s7 + $0x60] sm:$0xff]
    %v711 = vld [vmem:[%s7 + $0x68] sm:$0xff]
    %v712 = vld [vmem:[%s7 + $0x70] sm:$0xff]
    %v713 = vld [vmem:[%s7 + $0x78] sm:$0xff]
    %v714 = vld [vmem:[%s8] sm:$0xff]
    %v715 = vld [vmem:[%s8 + $0x8] sm:$0xff]
    %v716 = vld [vmem:[%s8 + $0x10] sm:$0xff]
    %v717 = vld [vmem:[%s8 + $0x18] sm:$0xff]
    %v718 = vld [vmem:[%s8 + $0x20] sm:$0xff]
    %v719 = vld [vmem:[%s8 + $0x28] sm:$0xff]
    %v720 = vld [vmem:[%s8 + $0x30] sm:$0xff]
    %v721 = vld [vmem:[%s8 + $0x38] sm:$0xff]
    %v722 = vld [vmem:[%s8 + $0x40] sm:$0xff]
    %v723 = vld [vmem:[%s8 + $0x48] sm:$0xff]
    %v724 = vld [vmem:[%s8 + $0x50] sm:$0xff]
    %v725 = vld [vmem:[%s8 + $0x58] sm:$0xff]
    %v726 = vld [vmem:[%s8 + $0x60] sm:$0xff]
    %v727 = vld [vmem:[%s8 + $0x68] sm:$0xff]
    %v728 = vld [vmem:[%s8 + $0x70] sm:$0xff]
    %v729 = vld [vmem:[%s8 + $0x78] sm:$0xff]
    %v730 = vld [vmem:[%s9] sm:$0xff]
    %v731 = vld [vmem:[%s9 + $0x8] sm:$0xff]
    %v732 = vld [vmem:[%s9 + $0x10] sm:$0xff]
    %v733 = vld [vmem:[%s9 + $0x18] sm:$0xff]
    %v734 = vld [vmem:[%s9 + $0x20] sm:$0xff]
    %v735 = vld [vmem:[%s9 + $0x28] sm:$0xff]
    %v736 = vld [vmem:[%s9 + $0x30] sm:$0xff]
    %v737 = vld [vmem:[%s9 + $0x38] sm:$0xff]
    %v738 = vld [vmem:[%s9 + $0x40] sm:$0xff]
    %v739 = vld [vmem:[%s9 + $0x48] sm:$0xff]
    %v740 = vld [vmem:[%s9 + $0x50] sm:$0xff]
    %v741 = vld [vmem:[%s9 + $0x58] sm:$0xff]
    %v742 = vld [vmem:[%s9 + $0x60] sm:$0xff]
    %v743 = vld [vmem:[%s9 + $0x68] sm:$0xff]
    %v744 = vld [vmem:[%s9 + $0x70] sm:$0xff]
    %v745 = vld [vmem:[%s9 + $0x78] sm:$0xff]
    %v747 = vsel %vm223, %v696, 0
    %749 = vmatprep.subr.mxu0 0.0
    %750 = vmatpush1.msra.mxu0 %v698
    %751 = vmatprep.subr.mxu0 0.0
    %752 = vmatpush1.msra.mxu0 %v699
    %753 = vmatprep.subr.mxu0 0.0
    %754 = vmatpush1.msra.mxu0 %v700
    %755 = vmatprep.subr.mxu0 0.0
    %756 = vmatpush1.msra.mxu0 %v701
    %757 = vmatprep.subr.mxu0 0.0
    %758 = vmatpush1.msra.mxu0 0.0
    %759 = vmatprep.subr.mxu0 0.0
    %760 = vmatpush1.msra.mxu0 0.0
    %761 = vmatprep.subr.mxu0 0.0
    %762 = vmatpush1.msra.mxu0 0.0
    %763 = vmatprep.subr.mxu0 0.0
    %764 = vmatpush1.msra.mxu0 0.0
    %765 = vmatprep.subr.mxu0 0.0
    %766 = vmatpush1.msra.mxu0 0.0
    %767 = vmatprep.subr.mxu0 0.0
    %768 = vmatpush1.msra.mxu0 0.0
    %769 = vmatprep.subr.mxu0 0.0
    %770 = vmatpush1.msra.mxu0 0.0
    %771 = vmatprep.subr.mxu0 0.0
    %772 = vmatpush1.msra.mxu0 0.0
    %773 = vmatprep.subr.mxu0 0.0
    %774 = vmatpush1.msra.mxu0 0.0
    %775 = vmatprep.subr.mxu0 0.0
    %776 = vmatpush1.msra.mxu0 0.0
    %777 = vmatprep.subr.mxu0 0.0
    %778 = vmatpush1.msra.mxu0 0.0
    %779 = vmatprep.subr.mxu0 0.0
    %780 = vmatpush1.msra.mxu0 0.0
    %781 = vmatprep.subr.mxu0 0.0
    %782 = vmatpush1.msra.mxu0 0.0
    %783 = vmatprep.subr.mxu0 0.0
    %784 = vmatpush1.msra.mxu0 0.0
    %785 = vmatprep.subr.mxu0 0.0
    %786 = vmatpush1.msra.mxu0 0.0
    %787 = vmatprep.subr.mxu0 0.0
    %788 = vmatpush1.msra.mxu0 0.0
    %789 = vmatprep.subr.mxu0 0.0
    %790 = vmatpush1.msra.mxu0 0.0
    %791 = vmatprep.subr.mxu0 0.0
    %792 = vmatpush1.msra.mxu0 0.0
    %793 = vmatprep.subr.mxu0 0.0
    %794 = vmatpush1.msra.mxu0 0.0
    %795 = vmatprep.subr.mxu0 0.0
    %796 = vmatpush1.msra.mxu0 0.0
    %797 = vmatprep.subr.mxu0 0.0
    %798 = vmatpush1.msra.mxu0 0.0
    %799 = vmatprep.subr.mxu0 0.0
    %800 = vmatpush1.msra.mxu0 0.0
    %801 = vmatprep.subr.mxu0 0.0
    %802 = vmatpush1.msra.mxu0 0.0
    %803 = vmatprep.subr.mxu0 0.0
    %804 = vmatpush1.msra.mxu0 0.0
    %805 = vmatprep.subr.mxu0 0.0
    %806 = vmatpush1.msra.mxu0 0.0
    %807 = vmatprep.subr.mxu0 0.0
    %808 = vmatpush1.msra.mxu0 0.0
    %809 = vmatprep.subr.mxu0 0.0
    %810 = vmatpush1.msra.mxu0 0.0
    %811 = vmatprep.subr.mxu0 0.0
    %812 = vmatpush1.msra.mxu0 0.0
    %813 = vmatprep.mubr.f32.mxu0 0.0
    %814 = vmatmul.mubr.f32.gmra.mrb[0].mxu0 %v747
    %v815 = vpop.f32.mrb[0].mxu0
    %v816 = vadd.f32 0.0, %v815
    %v817 = vpop.f32.mrb[0].mxu0
    %818 = vdwg.mxu0
    %819 = vmatprep.subr.mxu0 0.0
    %820 = vmatpush1.msra.mxu0 %v702
    %821 = vmatprep.subr.mxu0 0.0
    %822 = vmatpush1.msra.mxu0 %v703
    %823 = vmatprep.subr.mxu0 0.0
    %824 = vmatpush1.msra.mxu0 %v704
    %825 = vmatprep.subr.mxu0 0.0
    %826 = vmatpush1.msra.mxu0 %v705
    %827 = vmatprep.subr.mxu0 0.0
    %828 = vmatpush1.msra.mxu0 0.0
    %829 = vmatprep.subr.mxu0 0.0
    %830 = vmatpush1.msra.mxu0 0.0
    %831 = vmatprep.subr.mxu0 0.0
    %832 = vmatpush1.msra.mxu0 0.0
    %833 = vmatprep.subr.mxu0 0.0
    %834 = vmatpush1.msra.mxu0 0.0
    %835 = vmatprep.subr.mxu0 0.0
    %836 = vmatpush1.msra.mxu0 0.0
    %837 = vmatprep.subr.mxu0 0.0
    %838 = vmatpush1.msra.mxu0 0.0
    %839 = vmatprep.subr.mxu0 0.0
    %840 = vmatpush1.msra.mxu0 0.0
    %841 = vmatprep.subr.mxu0 0.0
    %842 = vmatpush1.msra.mxu0 0.0
    %843 = vmatprep.subr.mxu0 0.0
    %844 = vmatpush1.msra.mxu0 0.0
    %845 = vmatprep.subr.mxu0 0.0
    %846 = vmatpush1.msra.mxu0 0.0
    %847 = vmatprep.subr.mxu0 0.0
    %848 = vmatpush1.msra.mxu0 0.0
    %849 = vmatprep.subr.mxu0 0.0
    %850 = vmatpush1.msra.mxu0 0.0
    %851 = vmatprep.subr.mxu0 0.0
    %852 = vmatpush1.msra.mxu0 0.0
    %853 = vmatprep.subr.mxu0 0.0
    %854 = vmatpush1.msra.mxu0 0.0
    %855 = vmatprep.subr.mxu0 0.0
    %856 = vmatpush1.msra.mxu0 0.0
    %857 = vmatprep.subr.mxu0 0.0
    %858 = vmatpush1.msra.mxu0 0.0
    %859 = vmatprep.subr.mxu0 0.0
    %860 = vmatpush1.msra.mxu0 0.0
    %861 = vmatprep.subr.mxu0 0.0
    %862 = vmatpush1.msra.mxu0 0.0
    %863 = vmatprep.subr.mxu0 0.0
    %864 = vmatpush1.msra.mxu0 0.0
    %865 = vmatprep.subr.mxu0 0.0
    %866 = vmatpush1.msra.mxu0 0.0
    %867 = vmatprep.subr.mxu0 0.0
    %868 = vmatpush1.msra.mxu0 0.0
    %869 = vmatprep.subr.mxu0 0.0
    %870 = vmatpush1.msra.mxu0 0.0
    %871 = vmatprep.subr.mxu0 0.0
    %872 = vmatpush1.msra.mxu0 0.0
    %873 = vmatprep.subr.mxu0 0.0
    %874 = vmatpush1.msra.mxu0 0.0
    %875 = vmatprep.subr.mxu0 0.0
    %876 = vmatpush1.msra.mxu0 0.0
    %877 = vmatprep.subr.mxu0 0.0
    %878 = vmatpush1.msra.mxu0 0.0
    %879 = vmatprep.subr.mxu0 0.0
    %880 = vmatpush1.msra.mxu0 0.0
    %881 = vmatprep.subr.mxu0 0.0
    %882 = vmatpush1.msra.mxu0 0.0
    %883 = vmatprep.mubr.f32.mxu0 0.0
    %884 = vmatmul.mubr.f32.gmra.mrb[0].mxu0 %v747
    %v885 = vpop.f32.mrb[0].mxu0
    %v886 = vadd.f32 0.0, %v885
    %v887 = vpop.f32.mrb[0].mxu0
    %888 = vdwg.mxu0
    %889 = vmatprep.subr.mxu0 0.0
    %890 = vmatpush1.msra.mxu0 %v706
    %891 = vmatprep.subr.mxu0 0.0
    %892 = vmatpush1.msra.mxu0 %v707
    %893 = vmatprep.subr.mxu0 0.0
    %894 = vmatpush1.msra.mxu0 %v708
    %895 = vmatprep.subr.mxu0 0.0
    %896 = vmatpush1.msra.mxu0 %v709
    %897 = vmatprep.subr.mxu0 0.0
    %898 = vmatpush1.msra.mxu0 0.0
    %899 = vmatprep.subr.mxu0 0.0
    %900 = vmatpush1.msra.mxu0 0.0
    %901 = vmatprep.subr.mxu0 0.0
    %902 = vmatpush1.msra.mxu0 0.0
    %903 = vmatprep.subr.mxu0 0.0
    %904 = vmatpush1.msra.mxu0 0.0
    %905 = vmatprep.subr.mxu0 0.0
    %906 = vmatpush1.msra.mxu0 0.0
    %907 = vmatprep.subr.mxu0 0.0
    %908 = vmatpush1.msra.mxu0 0.0
    %909 = vmatprep.subr.mxu0 0.0
    %910 = vmatpush1.msra.mxu0 0.0
    %911 = vmatprep.subr.mxu0 0.0
    %912 = vmatpush1.msra.mxu0 0.0
    %913 = vmatprep.subr.mxu0 0.0
    %914 = vmatpush1.msra.mxu0 0.0
    %915 = vmatprep.subr.mxu0 0.0
    %916 = vmatpush1.msra.mxu0 0.0
    %917 = vmatprep.subr.mxu0 0.0
    %918 = vmatpush1.msra.mxu0 0.0
    %919 = vmatprep.subr.mxu0 0.0
    %920 = vmatpush1.msra.mxu0 0.0
    %921 = vmatprep.subr.mxu0 0.0
    %922 = vmatpush1.msra.mxu0 0.0
    %923 = vmatprep.subr.mxu0 0.0
    %924 = vmatpush1.msra.mxu0 0.0
    %925 = vmatprep.subr.mxu0 0.0
    %926 = vmatpush1.msra.mxu0 0.0
    %927 = vmatprep.subr.mxu0 0.0
    %928 = vmatpush1.msra.mxu0 0.0
    %929 = vmatprep.subr.mxu0 0.0
    %930 = vmatpush1.msra.mxu0 0.0
    %931 = vmatprep.subr.mxu0 0.0
    %932 = vmatpush1.msra.mxu0 0.0
    %933 = vmatprep.subr.mxu0 0.0
    %934 = vmatpush1.msra.mxu0 0.0
    %935 = vmatprep.subr.mxu0 0.0
    %936 = vmatpush1.msra.mxu0 0.0
    %937 = vmatprep.subr.mxu0 0.0
    %938 = vmatpush1.msra.mxu0 0.0
    %939 = vmatprep.subr.mxu0 0.0
    %940 = vmatpush1.msra.mxu0 0.0
    %941 = vmatprep.subr.mxu0 0.0
    %942 = vmatpush1.msra.mxu0 0.0
    %943 = vmatprep.subr.mxu0 0.0
    %944 = vmatpush1.msra.mxu0 0.0
    %945 = vmatprep.subr.mxu0 0.0
    %946 = vmatpush1.msra.mxu0 0.0
    %947 = vmatprep.subr.mxu0 0.0
    %948 = vmatpush1.msra.mxu0 0.0
    %949 = vmatprep.subr.mxu0 0.0
    %950 = vmatpush1.msra.mxu0 0.0
    %951 = vmatprep.subr.mxu0 0.0
    %952 = vmatpush1.msra.mxu0 0.0
    %953 = vmatprep.mubr.f32.mxu0 0.0
    %954 = vmatmul.mubr.f32.gmra.mrb[0].mxu0 %v747
    %v955 = vpop.f32.mrb[0].mxu0
    %v956 = vadd.f32 0.0, %v955
    %v957 = vpop.f32.mrb[0].mxu0
    %958 = vdwg.mxu0
    %959 = vmatprep.subr.mxu0 0.0
    %960 = vmatpush1.msra.mxu0 %v710
    %961 = vmatprep.subr.mxu0 0.0
    %962 = vmatpush1.msra.mxu0 %v711
    %963 = vmatprep.subr.mxu0 0.0
    %964 = vmatpush1.msra.mxu0 %v712
    %965 = vmatprep.subr.mxu0 0.0
    %966 = vmatpush1.msra.mxu0 %v713
    %967 = vmatprep.subr.mxu0 0.0
    %968 = vmatpush1.msra.mxu0 0.0
    %969 = vmatprep.subr.mxu0 0.0
    %970 = vmatpush1.msra.mxu0 0.0
    %971 = vmatprep.subr.mxu0 0.0
    %972 = vmatpush1.msra.mxu0 0.0
    %973 = vmatprep.subr.mxu0 0.0
    %974 = vmatpush1.msra.mxu0 0.0
    %975 = vmatprep.subr.mxu0 0.0
    %976 = vmatpush1.msra.mxu0 0.0
    %977 = vmatprep.subr.mxu0 0.0
    %978 = vmatpush1.msra.mxu0 0.0
    %979 = vmatprep.subr.mxu0 0.0
    %980 = vmatpush1.msra.mxu0 0.0
    %981 = vmatprep.subr.mxu0 0.0
    %982 = vmatpush1.msra.mxu0 0.0
    %983 = vmatprep.subr.mxu0 0.0
    %984 = vmatpush1.msra.mxu0 0.0
    %985 = vmatprep.subr.mxu0 0.0
    %986 = vmatpush1.msra.mxu0 0.0
    %987 = vmatprep.subr.mxu0 0.0
    %988 = vmatpush1.msra.mxu0 0.0
    %989 = vmatprep.subr.mxu0 0.0
    %990 = vmatpush1.msra.mxu0 0.0
    %991 = vmatprep.subr.mxu0 0.0
    %992 = vmatpush1.msra.mxu0 0.0
    %993 = vmatprep.subr.mxu0 0.0
    %994 = vmatpush1.msra.mxu0 0.0
    %995 = vmatprep.subr.mxu0 0.0
    %996 = vmatpush1.msra.mxu0 0.0
    %997 = vmatprep.subr.mxu0 0.0
    %998 = vmatpush1.msra.mxu0 0.0
    %999 = vmatprep.subr.mxu0 0.0
    %1000 = vmatpush1.msra.mxu0 0.0
    %1001 = vmatprep.subr.mxu0 0.0
    %1002 = vmatpush1.msra.mxu0 0.0
    %1003 = vmatprep.subr.mxu0 0.0
    %1004 = vmatpush1.msra.mxu0 0.0
    %1005 = vmatprep.subr.mxu0 0.0
    %1006 = vmatpush1.msra.mxu0 0.0
    %1007 = vmatprep.subr.mxu0 0.0
    %1008 = vmatpush1.msra.mxu0 0.0
    %1009 = vmatprep.subr.mxu0 0.0
    %1010 = vmatpush1.msra.mxu0 0.0
    %1011 = vmatprep.subr.mxu0 0.0
    %1012 = vmatpush1.msra.mxu0 0.0
    %1013 = vmatprep.subr.mxu0 0.0
    %1014 = vmatpush1.msra.mxu0 0.0
    %1015 = vmatprep.subr.mxu0 0.0
    %1016 = vmatpush1.msra.mxu0 0.0
    %1017 = vmatprep.subr.mxu0 0.0
    %1018 = vmatpush1.msra.mxu0 0.0
    %1019 = vmatprep.subr.mxu0 0.0
    %1020 = vmatpush1.msra.mxu0 0.0
    %1021 = vmatprep.subr.mxu0 0.0
    %1022 = vmatpush1.msra.mxu0 0.0
    %1023 = vmatprep.mubr.f32.mxu0 0.0
    %1024 = vmatmul.mubr.f32.gmra.mrb[0].mxu0 %v747
    %v1025 = vpop.f32.mrb[0].mxu0
    %v1026 = vadd.f32 0.0, %v1025
    %v1027 = vpop.f32.mrb[0].mxu0
    %1028 = vdwg.mxu0
    %v1030 = vsel %vm223, %v697, 0
    %1032 = vmatprep.subr.mxu0 0.0
    %1033 = vmatpush1.msra.mxu0 %v698
    %1034 = vmatprep.subr.mxu0 0.0
    %1035 = vmatpush1.msra.mxu0 %v699
    %1036 = vmatprep.subr.mxu0 0.0
    %1037 = vmatpush1.msra.mxu0 %v700
    %1038 = vmatprep.subr.mxu0 0.0
    %1039 = vmatpush1.msra.mxu0 %v701
    %1040 = vmatprep.subr.mxu0 0.0
    %1041 = vmatpush1.msra.mxu0 0.0
    %1042 = vmatprep.subr.mxu0 0.0
    %1043 = vmatpush1.msra.mxu0 0.0
    %1044 = vmatprep.subr.mxu0 0.0
    %1045 = vmatpush1.msra.mxu0 0.0
    %1046 = vmatprep.subr.mxu0 0.0
    %1047 = vmatpush1.msra.mxu0 0.0
    %1048 = vmatprep.subr.mxu0 0.0
    %1049 = vmatpush1.msra.mxu0 0.0
    %1050 = vmatprep.subr.mxu0 0.0
    %1051 = vmatpush1.msra.mxu0 0.0
    %1052 = vmatprep.subr.mxu0 0.0
    %1053 = vmatpush1.msra.mxu0 0.0
    %1054 = vmatprep.subr.mxu0 0.0
    %1055 = vmatpush1.msra.mxu0 0.0
    %1056 = vmatprep.subr.mxu0 0.0
    %1057 = vmatpush1.msra.mxu0 0.0
    %1058 = vmatprep.subr.mxu0 0.0
    %1059 = vmatpush1.msra.mxu0 0.0
    %1060 = vmatprep.subr.mxu0 0.0
    %1061 = vmatpush1.msra.mxu0 0.0
    %1062 = vmatprep.subr.mxu0 0.0
    %1063 = vmatpush1.msra.mxu0 0.0
    %1064 = vmatprep.subr.mxu0 0.0
    %1065 = vmatpush1.msra.mxu0 0.0
    %1066 = vmatprep.subr.mxu0 0.0
    %1067 = vmatpush1.msra.mxu0 0.0
    %1068 = vmatprep.subr.mxu0 0.0
    %1069 = vmatpush1.msra.mxu0 0.0
    %1070 = vmatprep.subr.mxu0 0.0
    %1071 = vmatpush1.msra.mxu0 0.0
    %1072 = vmatprep.subr.mxu0 0.0
    %1073 = vmatpush1.msra.mxu0 0.0
    %1074 = vmatprep.subr.mxu0 0.0
    %1075 = vmatpush1.msra.mxu0 0.0
    %1076 = vmatprep.subr.mxu0 0.0
    %1077 = vmatpush1.msra.mxu0 0.0
    %1078 = vmatprep.subr.mxu0 0.0
    %1079 = vmatpush1.msra.mxu0 0.0
    %1080 = vmatprep.subr.mxu0 0.0
    %1081 = vmatpush1.msra.mxu0 0.0
    %1082 = vmatprep.subr.mxu0 0.0
    %1083 = vmatpush1.msra.mxu0 0.0
    %1084 = vmatprep.subr.mxu0 0.0
    %1085 = vmatpush1.msra.mxu0 0.0
    %1086 = vmatprep.subr.mxu0 0.0
    %1087 = vmatpush1.msra.mxu0 0.0
    %1088 = vmatprep.subr.mxu0 0.0
    %1089 = vmatpush1.msra.mxu0 0.0
    %1090 = vmatprep.subr.mxu0 0.0
    %1091 = vmatpush1.msra.mxu0 0.0
    %1092 = vmatprep.subr.mxu0 0.0
    %1093 = vmatpush1.msra.mxu0 0.0
    %1094 = vmatprep.subr.mxu0 0.0
    %1095 = vmatpush1.msra.mxu0 0.0
    %1096 = vmatprep.mubr.f32.mxu0 0.0
    %1097 = vmatmul.mubr.f32.gmra.mrb[0].mxu0 %v1030
    %v1098 = vpop.f32.mrb[0].mxu0
    %v1099 = vadd.f32 0.0, %v1098
    %v1100 = vpop.f32.mrb[0].mxu0
    %1101 = vdwg.mxu0
    %1102 = vmatprep.subr.mxu0 0.0
    %1103 = vmatpush1.msra.mxu0 %v702
    %1104 = vmatprep.subr.mxu0 0.0
    %1105 = vmatpush1.msra.mxu0 %v703
    %1106 = vmatprep.subr.mxu0 0.0
    %1107 = vmatpush1.msra.mxu0 %v704
    %1108 = vmatprep.subr.mxu0 0.0
    %1109 = vmatpush1.msra.mxu0 %v705
    %1110 = vmatprep.subr.mxu0 0.0
    %1111 = vmatpush1.msra.mxu0 0.0
    %1112 = vmatprep.subr.mxu0 0.0
    %1113 = vmatpush1.msra.mxu0 0.0
    %1114 = vmatprep.subr.mxu0 0.0
    %1115 = vmatpush1.msra.mxu0 0.0
    %1116 = vmatprep.subr.mxu0 0.0
    %1117 = vmatpush1.msra.mxu0 0.0
    %1118 = vmatprep.subr.mxu0 0.0
    %1119 = vmatpush1.msra.mxu0 0.0
    %1120 = vmatprep.subr.mxu0 0.0
    %1121 = vmatpush1.msra.mxu0 0.0
    %1122 = vmatprep.subr.mxu0 0.0
    %1123 = vmatpush1.msra.mxu0 0.0
    %1124 = vmatprep.subr.mxu0 0.0
    %1125 = vmatpush1.msra.mxu0 0.0
    %1126 = vmatprep.subr.mxu0 0.0
    %1127 = vmatpush1.msra.mxu0 0.0
    %1128 = vmatprep.subr.mxu0 0.0
    %1129 = vmatpush1.msra.mxu0 0.0
    %1130 = vmatprep.subr.mxu0 0.0
    %1131 = vmatpush1.msra.mxu0 0.0
    %1132 = vmatprep.subr.mxu0 0.0
    %1133 = vmatpush1.msra.mxu0 0.0
    %1134 = vmatprep.subr.mxu0 0.0
    %1135 = vmatpush1.msra.mxu0 0.0
    %1136 = vmatprep.subr.mxu0 0.0
    %1137 = vmatpush1.msra.mxu0 0.0
    %1138 = vmatprep.subr.mxu0 0.0
    %1139 = vmatpush1.msra.mxu0 0.0
    %1140 = vmatprep.subr.mxu0 0.0
    %1141 = vmatpush1.msra.mxu0 0.0
    %1142 = vmatprep.subr.mxu0 0.0
    %1143 = vmatpush1.msra.mxu0 0.0
    %1144 = vmatprep.subr.mxu0 0.0
    %1145 = vmatpush1.msra.mxu0 0.0
    %1146 = vmatprep.subr.mxu0 0.0
    %1147 = vmatpush1.msra.mxu0 0.0
    %1148 = vmatprep.subr.mxu0 0.0
    %1149 = vmatpush1.msra.mxu0 0.0
    %1150 = vmatprep.subr.mxu0 0.0
    %1151 = vmatpush1.msra.mxu0 0.0
    %1152 = vmatprep.subr.mxu0 0.0
    %1153 = vmatpush1.msra.mxu0 0.0
    %1154 = vmatprep.subr.mxu0 0.0
    %1155 = vmatpush1.msra.mxu0 0.0
    %1156 = vmatprep.subr.mxu0 0.0
    %1157 = vmatpush1.msra.mxu0 0.0
    %1158 = vmatprep.subr.mxu0 0.0
    %1159 = vmatpush1.msra.mxu0 0.0
    %1160 = vmatprep.subr.mxu0 0.0
    %1161 = vmatpush1.msra.mxu0 0.0
    %1162 = vmatprep.subr.mxu0 0.0
    %1163 = vmatpush1.msra.mxu0 0.0
    %1164 = vmatprep.subr.mxu0 0.0
    %1165 = vmatpush1.msra.mxu0 0.0
    %1166 = vmatprep.mubr.f32.mxu0 0.0
    %1167 = vmatmul.mubr.f32.gmra.mrb[0].mxu0 %v1030
    %v1168 = vpop.f32.mrb[0].mxu0
    %v1169 = vadd.f32 0.0, %v1168
    %v1170 = vpop.f32.mrb[0].mxu0
    %1171 = vdwg.mxu0
    %1172 = vmatprep.subr.mxu0 0.0
    %1173 = vmatpush1.msra.mxu0 %v706
    %1174 = vmatprep.subr.mxu0 0.0
    %1175 = vmatpush1.msra.mxu0 %v707
    %1176 = vmatprep.subr.mxu0 0.0
    %1177 = vmatpush1.msra.mxu0 %v708
    %1178 = vmatprep.subr.mxu0 0.0
    %1179 = vmatpush1.msra.mxu0 %v709
    %1180 = vmatprep.subr.mxu0 0.0
    %1181 = vmatpush1.msra.mxu0 0.0
    %1182 = vmatprep.subr.mxu0 0.0
    %1183 = vmatpush1.msra.mxu0 0.0
    %1184 = vmatprep.subr.mxu0 0.0
    %1185 = vmatpush1.msra.mxu0 0.0
    %1186 = vmatprep.subr.mxu0 0.0
    %1187 = vmatpush1.msra.mxu0 0.0
    %1188 = vmatprep.subr.mxu0 0.0
    %1189 = vmatpush1.msra.mxu0 0.0
    %1190 = vmatprep.subr.mxu0 0.0
    %1191 = vmatpush1.msra.mxu0 0.0
    %1192 = vmatprep.subr.mxu0 0.0
    %1193 = vmatpush1.msra.mxu0 0.0
    %1194 = vmatprep.subr.mxu0 0.0
    %1195 = vmatpush1.msra.mxu0 0.0
    %1196 = vmatprep.subr.mxu0 0.0
    %1197 = vmatpush1.msra.mxu0 0.0
    %1198 = vmatprep.subr.mxu0 0.0
    %1199 = vmatpush1.msra.mxu0 0.0
    %1200 = vmatprep.subr.mxu0 0.0
    %1201 = vmatpush1.msra.mxu0 0.0
    %1202 = vmatprep.subr.mxu0 0.0
    %1203 = vmatpush1.msra.mxu0 0.0
    %1204 = vmatprep.subr.mxu0 0.0
    %1205 = vmatpush1.msra.mxu0 0.0
    %1206 = vmatprep.subr.mxu0 0.0
    %1207 = vmatpush1.msra.mxu0 0.0
    %1208 = vmatprep.subr.mxu0 0.0
    %1209 = vmatpush1.msra.mxu0 0.0
    %1210 = vmatprep.subr.mxu0 0.0
    %1211 = vmatpush1.msra.mxu0 0.0
    %1212 = vmatprep.subr.mxu0 0.0
    %1213 = vmatpush1.msra.mxu0 0.0
    %1214 = vmatprep.subr.mxu0 0.0
    %1215 = vmatpush1.msra.mxu0 0.0
    %1216 = vmatprep.subr.mxu0 0.0
    %1217 = vmatpush1.msra.mxu0 0.0
    %1218 = vmatprep.subr.mxu0 0.0
    %1219 = vmatpush1.msra.mxu0 0.0
    %1220 = vmatprep.subr.mxu0 0.0
    %1221 = vmatpush1.msra.mxu0 0.0
    %1222 = vmatprep.subr.mxu0 0.0
    %1223 = vmatpush1.msra.mxu0 0.0
    %1224 = vmatprep.subr.mxu0 0.0
    %1225 = vmatpush1.msra.mxu0 0.0
    %1226 = vmatprep.subr.mxu0 0.0
    %1227 = vmatpush1.msra.mxu0 0.0
    %1228 = vmatprep.subr.mxu0 0.0
    %1229 = vmatpush1.msra.mxu0 0.0
    %1230 = vmatprep.subr.mxu0 0.0
    %1231 = vmatpush1.msra.mxu0 0.0
    %1232 = vmatprep.subr.mxu0 0.0
    %1233 = vmatpush1.msra.mxu0 0.0
    %1234 = vmatprep.subr.mxu0 0.0
    %1235 = vmatpush1.msra.mxu0 0.0
    %1236 = vmatprep.mubr.f32.mxu0 0.0
    %1237 = vmatmul.mubr.f32.gmra.mrb[0].mxu0 %v1030
    %v1238 = vpop.f32.mrb[0].mxu0
    %v1239 = vadd.f32 0.0, %v1238
    %v1240 = vpop.f32.mrb[0].mxu0
    %1241 = vdwg.mxu0
    %1242 = vmatprep.subr.mxu0 0.0
    %1243 = vmatpush1.msra.mxu0 %v710
    %1244 = vmatprep.subr.mxu0 0.0
    %1245 = vmatpush1.msra.mxu0 %v711
    %1246 = vmatprep.subr.mxu0 0.0
    %1247 = vmatpush1.msra.mxu0 %v712
    %1248 = vmatprep.subr.mxu0 0.0
    %1249 = vmatpush1.msra.mxu0 %v713
    %1250 = vmatprep.subr.mxu0 0.0
    %1251 = vmatpush1.msra.mxu0 0.0
    %1252 = vmatprep.subr.mxu0 0.0
    %1253 = vmatpush1.msra.mxu0 0.0
    %1254 = vmatprep.subr.mxu0 0.0
    %1255 = vmatpush1.msra.mxu0 0.0
    %1256 = vmatprep.subr.mxu0 0.0
    %1257 = vmatpush1.msra.mxu0 0.0
    %1258 = vmatprep.subr.mxu0 0.0
    %1259 = vmatpush1.msra.mxu0 0.0
    %1260 = vmatprep.subr.mxu0 0.0
    %1261 = vmatpush1.msra.mxu0 0.0
    %1262 = vmatprep.subr.mxu0 0.0
    %1263 = vmatpush1.msra.mxu0 0.0
    %1264 = vmatprep.subr.mxu0 0.0
    %1265 = vmatpush1.msra.mxu0 0.0
    %1266 = vmatprep.subr.mxu0 0.0
    %1267 = vmatpush1.msra.mxu0 0.0
    %1268 = vmatprep.subr.mxu0 0.0
    %1269 = vmatpush1.msra.mxu0 0.0
    %1270 = vmatprep.subr.mxu0 0.0
    %1271 = vmatpush1.msra.mxu0 0.0
    %1272 = vmatprep.subr.mxu0 0.0
    %1273 = vmatpush1.msra.mxu0 0.0
    %1274 = vmatprep.subr.mxu0 0.0
    %1275 = vmatpush1.msra.mxu0 0.0
    %1276 = vmatprep.subr.mxu0 0.0
    %1277 = vmatpush1.msra.mxu0 0.0
    %1278 = vmatprep.subr.mxu0 0.0
    %1279 = vmatpush1.msra.mxu0 0.0
    %1280 = vmatprep.subr.mxu0 0.0
    %1281 = vmatpush1.msra.mxu0 0.0
    %1282 = vmatprep.subr.mxu0 0.0
    %1283 = vmatpush1.msra.mxu0 0.0
    %1284 = vmatprep.subr.mxu0 0.0
    %1285 = vmatpush1.msra.mxu0 0.0
    %1286 = vmatprep.subr.mxu0 0.0
    %1287 = vmatpush1.msra.mxu0 0.0
    %1288 = vmatprep.subr.mxu0 0.0
    %1289 = vmatpush1.msra.mxu0 0.0
    %1290 = vmatprep.subr.mxu0 0.0
    %1291 = vmatpush1.msra.mxu0 0.0
    %1292 = vmatprep.subr.mxu0 0.0
    %1293 = vmatpush1.msra.mxu0 0.0
    %1294 = vmatprep.subr.mxu0 0.0
    %1295 = vmatpush1.msra.mxu0 0.0
    %1296 = vmatprep.subr.mxu0 0.0
    %1297 = vmatpush1.msra.mxu0 0.0
    %1298 = vmatprep.subr.mxu0 0.0
    %1299 = vmatpush1.msra.mxu0 0.0
    %1300 = vmatprep.subr.mxu0 0.0
    %1301 = vmatpush1.msra.mxu0 0.0
    %1302 = vmatprep.subr.mxu0 0.0
    %1303 = vmatpush1.msra.mxu0 0.0
    %1304 = vmatprep.subr.mxu0 0.0
    %1305 = vmatpush1.msra.mxu0 0.0
    %1306 = vmatprep.mubr.f32.mxu0 0.0
    %1307 = vmatmul.mubr.f32.gmra.mrb[0].mxu0 %v1030
    %v1308 = vpop.f32.mrb[0].mxu0
    %v1309 = vadd.f32 0.0, %v1308
    %v1310 = vpop.f32.mrb[0].mxu0
    %1311 = vdwg.mxu0
    %1312 = vmatprep.subr.mxu0 0.0
    %1313 = vmatpush1.msra.mxu0 %v714
    %1314 = vmatprep.subr.mxu0 0.0
    %1315 = vmatpush1.msra.mxu0 %v715
    %1316 = vmatprep.subr.mxu0 0.0
    %1317 = vmatpush1.msra.mxu0 %v716
    %1318 = vmatprep.subr.mxu0 0.0
    %1319 = vmatpush1.msra.mxu0 %v717
    %1320 = vmatprep.subr.mxu0 0.0
    %1321 = vmatpush1.msra.mxu0 0.0
    %1322 = vmatprep.subr.mxu0 0.0
    %1323 = vmatpush1.msra.mxu0 0.0
    %1324 = vmatprep.subr.mxu0 0.0
    %1325 = vmatpush1.msra.mxu0 0.0
    %1326 = vmatprep.subr.mxu0 0.0
    %1327 = vmatpush1.msra.mxu0 0.0
    %1328 = vmatprep.subr.mxu0 0.0
    %1329 = vmatpush1.msra.mxu0 0.0
    %1330 = vmatprep.subr.mxu0 0.0
    %1331 = vmatpush1.msra.mxu0 0.0
    %1332 = vmatprep.subr.mxu0 0.0
    %1333 = vmatpush1.msra.mxu0 0.0
    %1334 = vmatprep.subr.mxu0 0.0
    %1335 = vmatpush1.msra.mxu0 0.0
    %1336 = vmatprep.subr.mxu0 0.0
    %1337 = vmatpush1.msra.mxu0 0.0
    %1338 = vmatprep.subr.mxu0 0.0
    %1339 = vmatpush1.msra.mxu0 0.0
    %1340 = vmatprep.subr.mxu0 0.0
    %1341 = vmatpush1.msra.mxu0 0.0
    %1342 = vmatprep.subr.mxu0 0.0
    %1343 = vmatpush1.msra.mxu0 0.0
    %1344 = vmatprep.subr.mxu0 0.0
    %1345 = vmatpush1.msra.mxu0 0.0
    %1346 = vmatprep.subr.mxu0 0.0
    %1347 = vmatpush1.msra.mxu0 0.0
    %1348 = vmatprep.subr.mxu0 0.0
    %1349 = vmatpush1.msra.mxu0 0.0
    %1350 = vmatprep.subr.mxu0 0.0
    %1351 = vmatpush1.msra.mxu0 0.0
    %1352 = vmatprep.subr.mxu0 0.0
    %1353 = vmatpush1.msra.mxu0 0.0
    %1354 = vmatprep.subr.mxu0 0.0
    %1355 = vmatpush1.msra.mxu0 0.0
    %1356 = vmatprep.subr.mxu0 0.0
    %1357 = vmatpush1.msra.mxu0 0.0
    %1358 = vmatprep.subr.mxu0 0.0
    %1359 = vmatpush1.msra.mxu0 0.0
    %1360 = vmatprep.subr.mxu0 0.0
    %1361 = vmatpush1.msra.mxu0 0.0
    %1362 = vmatprep.subr.mxu0 0.0
    %1363 = vmatpush1.msra.mxu0 0.0
    %1364 = vmatprep.subr.mxu0 0.0
    %1365 = vmatpush1.msra.mxu0 0.0
    %1366 = vmatprep.subr.mxu0 0.0
    %1367 = vmatpush1.msra.mxu0 0.0
    %1368 = vmatprep.subr.mxu0 0.0
    %1369 = vmatpush1.msra.mxu0 0.0
    %1370 = vmatprep.subr.mxu0 0.0
    %1371 = vmatpush1.msra.mxu0 0.0
    %1372 = vmatprep.subr.mxu0 0.0
    %1373 = vmatpush1.msra.mxu0 0.0
    %1374 = vmatprep.subr.mxu0 0.0
    %1375 = vmatpush1.msra.mxu0 0.0
    %1376 = vmatprep.mubr.f32.mxu0 0.0
    %1377 = vmatmul.mubr.f32.gmra.mrb[0].mxu0 %v747
    %v1378 = vpop.f32.mrb[0].mxu0
    %v1379 = vadd.f32 0.0, %v1378
    %v1380 = vpop.f32.mrb[0].mxu0
    %1381 = vdwg.mxu0
    %1382 = vmatprep.subr.mxu0 0.0
    %1383 = vmatpush1.msra.mxu0 %v718
    %1384 = vmatprep.subr.mxu0 0.0
    %1385 = vmatpush1.msra.mxu0 %v719
    %1386 = vmatprep.subr.mxu0 0.0
    %1387 = vmatpush1.msra.mxu0 %v720
    %1388 = vmatprep.subr.mxu0 0.0
    %1389 = vmatpush1.msra.mxu0 %v721
    %1390 = vmatprep.subr.mxu0 0.0
    %1391 = vmatpush1.msra.mxu0 0.0
    %1392 = vmatprep.subr.mxu0 0.0
    %1393 = vmatpush1.msra.mxu0 0.0
    %1394 = vmatprep.subr.mxu0 0.0
    %1395 = vmatpush1.msra.mxu0 0.0
    %1396 = vmatprep.subr.mxu0 0.0
    %1397 = vmatpush1.msra.mxu0 0.0
    %1398 = vmatprep.subr.mxu0 0.0
    %1399 = vmatpush1.msra.mxu0 0.0
    %1400 = vmatprep.subr.mxu0 0.0
    %1401 = vmatpush1.msra.mxu0 0.0
    %1402 = vmatprep.subr.mxu0 0.0
    %1403 = vmatpush1.msra.mxu0 0.0
    %1404 = vmatprep.subr.mxu0 0.0
    %1405 = vmatpush1.msra.mxu0 0.0
    %1406 = vmatprep.subr.mxu0 0.0
    %1407 = vmatpush1.msra.mxu0 0.0
    %1408 = vmatprep.subr.mxu0 0.0
    %1409 = vmatpush1.msra.mxu0 0.0
    %1410 = vmatprep.subr.mxu0 0.0
    %1411 = vmatpush1.msra.mxu0 0.0
    %1412 = vmatprep.subr.mxu0 0.0
    %1413 = vmatpush1.msra.mxu0 0.0
    %1414 = vmatprep.subr.mxu0 0.0
    %1415 = vmatpush1.msra.mxu0 0.0
    %1416 = vmatprep.subr.mxu0 0.0
    %1417 = vmatpush1.msra.mxu0 0.0
    %1418 = vmatprep.subr.mxu0 0.0
    %1419 = vmatpush1.msra.mxu0 0.0
    %1420 = vmatprep.subr.mxu0 0.0
    %1421 = vmatpush1.msra.mxu0 0.0
    %1422 = vmatprep.subr.mxu0 0.0
    %1423 = vmatpush1.msra.mxu0 0.0
    %1424 = vmatprep.subr.mxu0 0.0
    %1425 = vmatpush1.msra.mxu0 0.0
    %1426 = vmatprep.subr.mxu0 0.0
    %1427 = vmatpush1.msra.mxu0 0.0
    %1428 = vmatprep.subr.mxu0 0.0
    %1429 = vmatpush1.msra.mxu0 0.0
    %1430 = vmatprep.subr.mxu0 0.0
    %1431 = vmatpush1.msra.mxu0 0.0
    %1432 = vmatprep.subr.mxu0 0.0
    %1433 = vmatpush1.msra.mxu0 0.0
    %1434 = vmatprep.subr.mxu0 0.0
    %1435 = vmatpush1.msra.mxu0 0.0
    %1436 = vmatprep.subr.mxu0 0.0
    %1437 = vmatpush1.msra.mxu0 0.0
    %1438 = vmatprep.subr.mxu0 0.0
    %1439 = vmatpush1.msra.mxu0 0.0
    %1440 = vmatprep.subr.mxu0 0.0
    %1441 = vmatpush1.msra.mxu0 0.0
    %1442 = vmatprep.subr.mxu0 0.0
    %1443 = vmatpush1.msra.mxu0 0.0
    %1444 = vmatprep.subr.mxu0 0.0
    %1445 = vmatpush1.msra.mxu0 0.0
    %1446 = vmatprep.mubr.f32.mxu0 0.0
    %1447 = vmatmul.mubr.f32.gmra.mrb[0].mxu0 %v747
    %v1448 = vpop.f32.mrb[0].mxu0
    %v1449 = vadd.f32 0.0, %v1448
    %v1450 = vpop.f32.mrb[0].mxu0
    %1451 = vdwg.mxu0
    %1452 = vmatprep.subr.mxu0 0.0
    %1453 = vmatpush1.msra.mxu0 %v722
    %1454 = vmatprep.subr.mxu0 0.0
    %1455 = vmatpush1.msra.mxu0 %v723
    %1456 = vmatprep.subr.mxu0 0.0
    %1457 = vmatpush1.msra.mxu0 %v724
    %1458 = vmatprep.subr.mxu0 0.0
    %1459 = vmatpush1.msra.mxu0 %v725
    %1460 = vmatprep.subr.mxu0 0.0
    %1461 = vmatpush1.msra.mxu0 0.0
    %1462 = vmatprep.subr.mxu0 0.0
    %1463 = vmatpush1.msra.mxu0 0.0
    %1464 = vmatprep.subr.mxu0 0.0
    %1465 = vmatpush1.msra.mxu0 0.0
    %1466 = vmatprep.subr.mxu0 0.0
    %1467 = vmatpush1.msra.mxu0 0.0
    %1468 = vmatprep.subr.mxu0 0.0
    %1469 = vmatpush1.msra.mxu0 0.0
    %1470 = vmatprep.subr.mxu0 0.0
    %1471 = vmatpush1.msra.mxu0 0.0
    %1472 = vmatprep.subr.mxu0 0.0
    %1473 = vmatpush1.msra.mxu0 0.0
    %1474 = vmatprep.subr.mxu0 0.0
    %1475 = vmatpush1.msra.mxu0 0.0
    %1476 = vmatprep.subr.mxu0 0.0
    %1477 = vmatpush1.msra.mxu0 0.0
    %1478 = vmatprep.subr.mxu0 0.0
    %1479 = vmatpush1.msra.mxu0 0.0
    %1480 = vmatprep.subr.mxu0 0.0
    %1481 = vmatpush1.msra.mxu0 0.0
    %1482 = vmatprep.subr.mxu0 0.0
    %1483 = vmatpush1.msra.mxu0 0.0
    %1484 = vmatprep.subr.mxu0 0.0
    %1485 = vmatpush1.msra.mxu0 0.0
    %1486 = vmatprep.subr.mxu0 0.0
    %1487 = vmatpush1.msra.mxu0 0.0
    %1488 = vmatprep.subr.mxu0 0.0
    %1489 = vmatpush1.msra.mxu0 0.0
    %1490 = vmatprep.subr.mxu0 0.0
    %1491 = vmatpush1.msra.mxu0 0.0
    %1492 = vmatprep.subr.mxu0 0.0
    %1493 = vmatpush1.msra.mxu0 0.0
    %1494 = vmatprep.subr.mxu0 0.0
    %1495 = vmatpush1.msra.mxu0 0.0
    %1496 = vmatprep.subr.mxu0 0.0
    %1497 = vmatpush1.msra.mxu0 0.0
    %1498 = vmatprep.subr.mxu0 0.0
    %1499 = vmatpush1.msra.mxu0 0.0
    %1500 = vmatprep.subr.mxu0 0.0
    %1501 = vmatpush1.msra.mxu0 0.0
    %1502 = vmatprep.subr.mxu0 0.0
    %1503 = vmatpush1.msra.mxu0 0.0
    %1504 = vmatprep.subr.mxu0 0.0
    %1505 = vmatpush1.msra.mxu0 0.0
    %1506 = vmatprep.subr.mxu0 0.0
    %1507 = vmatpush1.msra.mxu0 0.0
    %1508 = vmatprep.subr.mxu0 0.0
    %1509 = vmatpush1.msra.mxu0 0.0
    %1510 = vmatprep.subr.mxu0 0.0
    %1511 = vmatpush1.msra.mxu0 0.0
    %1512 = vmatprep.subr.mxu0 0.0
    %1513 = vmatpush1.msra.mxu0 0.0
    %1514 = vmatprep.subr.mxu0 0.0
    %1515 = vmatpush1.msra.mxu0 0.0
    %1516 = vmatprep.mubr.f32.mxu0 0.0
    %1517 = vmatmul.mubr.f32.gmra.mrb[0].mxu0 %v747
    %v1518 = vpop.f32.mrb[0].mxu0
    %v1519 = vadd.f32 0.0, %v1518
    %v1520 = vpop.f32.mrb[0].mxu0
    %1521 = vdwg.mxu0
    %1522 = vmatprep.subr.mxu0 0.0
    %1523 = vmatpush1.msra.mxu0 %v726
    %1524 = vmatprep.subr.mxu0 0.0
    %1525 = vmatpush1.msra.mxu0 %v727
    %1526 = vmatprep.subr.mxu0 0.0
    %1527 = vmatpush1.msra.mxu0 %v728
    %1528 = vmatprep.subr.mxu0 0.0
    %1529 = vmatpush1.msra.mxu0 %v729
    %1530 = vmatprep.subr.mxu0 0.0
    %1531 = vmatpush1.msra.mxu0 0.0
    %1532 = vmatprep.subr.mxu0 0.0
    %1533 = vmatpush1.msra.mxu0 0.0
    %1534 = vmatprep.subr.mxu0 0.0
    %1535 = vmatpush1.msra.mxu0 0.0
    %1536 = vmatprep.subr.mxu0 0.0
    %1537 = vmatpush1.msra.mxu0 0.0
    %1538 = vmatprep.subr.mxu0 0.0
    %1539 = vmatpush1.msra.mxu0 0.0
    %1540 = vmatprep.subr.mxu0 0.0
    %1541 = vmatpush1.msra.mxu0 0.0
    %1542 = vmatprep.subr.mxu0 0.0
    %1543 = vmatpush1.msra.mxu0 0.0
    %1544 = vmatprep.subr.mxu0 0.0
    %1545 = vmatpush1.msra.mxu0 0.0
    %1546 = vmatprep.subr.mxu0 0.0
    %1547 = vmatpush1.msra.mxu0 0.0
    %1548 = vmatprep.subr.mxu0 0.0
    %1549 = vmatpush1.msra.mxu0 0.0
    %1550 = vmatprep.subr.mxu0 0.0
    %1551 = vmatpush1.msra.mxu0 0.0
    %1552 = vmatprep.subr.mxu0 0.0
    %1553 = vmatpush1.msra.mxu0 0.0
    %1554 = vmatprep.subr.mxu0 0.0
    %1555 = vmatpush1.msra.mxu0 0.0
    %1556 = vmatprep.subr.mxu0 0.0
    %1557 = vmatpush1.msra.mxu0 0.0
    %1558 = vmatprep.subr.mxu0 0.0
    %1559 = vmatpush1.msra.mxu0 0.0
    %1560 = vmatprep.subr.mxu0 0.0
    %1561 = vmatpush1.msra.mxu0 0.0
    %1562 = vmatprep.subr.mxu0 0.0
    %1563 = vmatpush1.msra.mxu0 0.0
    %1564 = vmatprep.subr.mxu0 0.0
    %1565 = vmatpush1.msra.mxu0 0.0
    %1566 = vmatprep.subr.mxu0 0.0
    %1567 = vmatpush1.msra.mxu0 0.0
    %1568 = vmatprep.subr.mxu0 0.0
    %1569 = vmatpush1.msra.mxu0 0.0
    %1570 = vmatprep.subr.mxu0 0.0
    %1571 = vmatpush1.msra.mxu0 0.0
    %1572 = vmatprep.subr.mxu0 0.0
    %1573 = vmatpush1.msra.mxu0 0.0
    %1574 = vmatprep.subr.mxu0 0.0
    %1575 = vmatpush1.msra.mxu0 0.0
    %1576 = vmatprep.subr.mxu0 0.0
    %1577 = vmatpush1.msra.mxu0 0.0
    %1578 = vmatprep.subr.mxu0 0.0
    %1579 = vmatpush1.msra.mxu0 0.0
    %1580 = vmatprep.subr.mxu0 0.0
    %1581 = vmatpush1.msra.mxu0 0.0
    %1582 = vmatprep.subr.mxu0 0.0
    %1583 = vmatpush1.msra.mxu0 0.0
    %1584 = vmatprep.subr.mxu0 0.0
    %1585 = vmatpush1.msra.mxu0 0.0
    %1586 = vmatprep.mubr.f32.mxu0 0.0
    %1587 = vmatmul.mubr.f32.gmra.mrb[0].mxu0 %v747
    %v1588 = vpop.f32.mrb[0].mxu0
    %v1589 = vadd.f32 0.0, %v1588
    %v1590 = vpop.f32.mrb[0].mxu0
    %1591 = vdwg.mxu0
    %1592 = vmatprep.subr.mxu0 0.0
    %1593 = vmatpush1.msra.mxu0 %v714
    %1594 = vmatprep.subr.mxu0 0.0
    %1595 = vmatpush1.msra.mxu0 %v715
    %1596 = vmatprep.subr.mxu0 0.0
    %1597 = vmatpush1.msra.mxu0 %v716
    %1598 = vmatprep.subr.mxu0 0.0
    %1599 = vmatpush1.msra.mxu0 %v717
    %1600 = vmatprep.subr.mxu0 0.0
    %1601 = vmatpush1.msra.mxu0 0.0
    %1602 = vmatprep.subr.mxu0 0.0
    %1603 = vmatpush1.msra.mxu0 0.0
    %1604 = vmatprep.subr.mxu0 0.0
    %1605 = vmatpush1.msra.mxu0 0.0
    %1606 = vmatprep.subr.mxu0 0.0
    %1607 = vmatpush1.msra.mxu0 0.0
    %1608 = vmatprep.subr.mxu0 0.0
    %1609 = vmatpush1.msra.mxu0 0.0
    %1610 = vmatprep.subr.mxu0 0.0
    %1611 = vmatpush1.msra.mxu0 0.0
    %1612 = vmatprep.subr.mxu0 0.0
    %1613 = vmatpush1.msra.mxu0 0.0
    %1614 = vmatprep.subr.mxu0 0.0
    %1615 = vmatpush1.msra.mxu0 0.0
    %1616 = vmatprep.subr.mxu0 0.0
    %1617 = vmatpush1.msra.mxu0 0.0
    %1618 = vmatprep.subr.mxu0 0.0
    %1619 = vmatpush1.msra.mxu0 0.0
    %1620 = vmatprep.subr.mxu0 0.0
    %1621 = vmatpush1.msra.mxu0 0.0
    %1622 = vmatprep.subr.mxu0 0.0
    %1623 = vmatpush1.msra.mxu0 0.0
    %1624 = vmatprep.subr.mxu0 0.0
    %1625 = vmatpush1.msra.mxu0 0.0
    %1626 = vmatprep.subr.mxu0 0.0
    %1627 = vmatpush1.msra.mxu0 0.0
    %1628 = vmatprep.subr.mxu0 0.0
    %1629 = vmatpush1.msra.mxu0 0.0
    %1630 = vmatprep.subr.mxu0 0.0
    %1631 = vmatpush1.msra.mxu0 0.0
    %1632 = vmatprep.subr.mxu0 0.0
    %1633 = vmatpush1.msra.mxu0 0.0
    %1634 = vmatprep.subr.mxu0 0.0
    %1635 = vmatpush1.msra.mxu0 0.0
    %1636 = vmatprep.subr.mxu0 0.0
    %1637 = vmatpush1.msra.mxu0 0.0
    %1638 = vmatprep.subr.mxu0 0.0
    %1639 = vmatpush1.msra.mxu0 0.0
    %1640 = vmatprep.subr.mxu0 0.0
    %1641 = vmatpush1.msra.mxu0 0.0
    %1642 = vmatprep.subr.mxu0 0.0
    %1643 = vmatpush1.msra.mxu0 0.0
    %1644 = vmatprep.subr.mxu0 0.0
    %1645 = vmatpush1.msra.mxu0 0.0
    %1646 = vmatprep.subr.mxu0 0.0
    %1647 = vmatpush1.msra.mxu0 0.0
    %1648 = vmatprep.subr.mxu0 0.0
    %1649 = vmatpush1.msra.mxu0 0.0
    %1650 = vmatprep.subr.mxu0 0.0
    %1651 = vmatpush1.msra.mxu0 0.0
    %1652 = vmatprep.subr.mxu0 0.0
    %1653 = vmatpush1.msra.mxu0 0.0
    %1654 = vmatprep.subr.mxu0 0.0
    %1655 = vmatpush1.msra.mxu0 0.0
    %1656 = vmatprep.mubr.f32.mxu0 0.0
    %1657 = vmatmul.mubr.f32.gmra.mrb[0].mxu0 %v1030
    %v1658 = vpop.f32.mrb[0].mxu0
    %v1659 = vadd.f32 0.0, %v1658
    %v1660 = vpop.f32.mrb[0].mxu0
    %1661 = vdwg.mxu0
    %1662 = vmatprep.subr.mxu0 0.0
    %1663 = vmatpush1.msra.mxu0 %v718
    %1664 = vmatprep.subr.mxu0 0.0
    %1665 = vmatpush1.msra.mxu0 %v719
    %1666 = vmatprep.subr.mxu0 0.0
    %1667 = vmatpush1.msra.mxu0 %v720
    %1668 = vmatprep.subr.mxu0 0.0
    %1669 = vmatpush1.msra.mxu0 %v721
    %1670 = vmatprep.subr.mxu0 0.0
    %1671 = vmatpush1.msra.mxu0 0.0
    %1672 = vmatprep.subr.mxu0 0.0
    %1673 = vmatpush1.msra.mxu0 0.0
    %1674 = vmatprep.subr.mxu0 0.0
    %1675 = vmatpush1.msra.mxu0 0.0
    %1676 = vmatprep.subr.mxu0 0.0
    %1677 = vmatpush1.msra.mxu0 0.0
    %1678 = vmatprep.subr.mxu0 0.0
    %1679 = vmatpush1.msra.mxu0 0.0
    %1680 = vmatprep.subr.mxu0 0.0
    %1681 = vmatpush1.msra.mxu0 0.0
    %1682 = vmatprep.subr.mxu0 0.0
    %1683 = vmatpush1.msra.mxu0 0.0
    %1684 = vmatprep.subr.mxu0 0.0
    %1685 = vmatpush1.msra.mxu0 0.0
    %1686 = vmatprep.subr.mxu0 0.0
    %1687 = vmatpush1.msra.mxu0 0.0
    %1688 = vmatprep.subr.mxu0 0.0
    %1689 = vmatpush1.msra.mxu0 0.0
    %1690 = vmatprep.subr.mxu0 0.0
    %1691 = vmatpush1.msra.mxu0 0.0
    %1692 = vmatprep.subr.mxu0 0.0
    %1693 = vmatpush1.msra.mxu0 0.0
    %1694 = vmatprep.subr.mxu0 0.0
    %1695 = vmatpush1.msra.mxu0 0.0
    %1696 = vmatprep.subr.mxu0 0.0
    %1697 = vmatpush1.msra.mxu0 0.0
    %1698 = vmatprep.subr.mxu0 0.0
    %1699 = vmatpush1.msra.mxu0 0.0
    %1700 = vmatprep.subr.mxu0 0.0
    %1701 = vmatpush1.msra.mxu0 0.0
    %1702 = vmatprep.subr.mxu0 0.0
    %1703 = vmatpush1.msra.mxu0 0.0
    %1704 = vmatprep.subr.mxu0 0.0
    %1705 = vmatpush1.msra.mxu0 0.0
    %1706 = vmatprep.subr.mxu0 0.0
    %1707 = vmatpush1.msra.mxu0 0.0
    %1708 = vmatprep.subr.mxu0 0.0
    %1709 = vmatpush1.msra.mxu0 0.0
    %1710 = vmatprep.subr.mxu0 0.0
    %1711 = vmatpush1.msra.mxu0 0.0
    %1712 = vmatprep.subr.mxu0 0.0
    %1713 = vmatpush1.msra.mxu0 0.0
    %1714 = vmatprep.subr.mxu0 0.0
    %1715 = vmatpush1.msra.mxu0 0.0
    %1716 = vmatprep.subr.mxu0 0.0
    %1717 = vmatpush1.msra.mxu0 0.0
    %1718 = vmatprep.subr.mxu0 0.0
    %1719 = vmatpush1.msra.mxu0 0.0
    %1720 = vmatprep.subr.mxu0 0.0
    %1721 = vmatpush1.msra.mxu0 0.0
    %1722 = vmatprep.subr.mxu0 0.0
    %1723 = vmatpush1.msra.mxu0 0.0
    %1724 = vmatprep.subr.mxu0 0.0
    %1725 = vmatpush1.msra.mxu0 0.0
    %1726 = vmatprep.mubr.f32.mxu0 0.0
    %1727 = vmatmul.mubr.f32.gmra.mrb[0].mxu0 %v1030
    %v1728 = vpop.f32.mrb[0].mxu0
    %v1729 = vadd.f32 0.0, %v1728
    %v1730 = vpop.f32.mrb[0].mxu0
    %1731 = vdwg.mxu0
    %1732 = vmatprep.subr.mxu0 0.0
    %1733 = vmatpush1.msra.mxu0 %v722
    %1734 = vmatprep.subr.mxu0 0.0
    %1735 = vmatpush1.msra.mxu0 %v723
    %1736 = vmatprep.subr.mxu0 0.0
    %1737 = vmatpush1.msra.mxu0 %v724
    %1738 = vmatprep.subr.mxu0 0.0
    %1739 = vmatpush1.msra.mxu0 %v725
    %1740 = vmatprep.subr.mxu0 0.0
    %1741 = vmatpush1.msra.mxu0 0.0
    %1742 = vmatprep.subr.mxu0 0.0
    %1743 = vmatpush1.msra.mxu0 0.0
    %1744 = vmatprep.subr.mxu0 0.0
    %1745 = vmatpush1.msra.mxu0 0.0
    %1746 = vmatprep.subr.mxu0 0.0
    %1747 = vmatpush1.msra.mxu0 0.0
    %1748 = vmatprep.subr.mxu0 0.0
    %1749 = vmatpush1.msra.mxu0 0.0
    %1750 = vmatprep.subr.mxu0 0.0
    %1751 = vmatpush1.msra.mxu0 0.0
    %1752 = vmatprep.subr.mxu0 0.0
    %1753 = vmatpush1.msra.mxu0 0.0
    %1754 = vmatprep.subr.mxu0 0.0
    %1755 = vmatpush1.msra.mxu0 0.0
    %1756 = vmatprep.subr.mxu0 0.0
    %1757 = vmatpush1.msra.mxu0 0.0
    %1758 = vmatprep.subr.mxu0 0.0
    %1759 = vmatpush1.msra.mxu0 0.0
    %1760 = vmatprep.subr.mxu0 0.0
    %1761 = vmatpush1.msra.mxu0 0.0
    %1762 = vmatprep.subr.mxu0 0.0
    %1763 = vmatpush1.msra.mxu0 0.0
    %1764 = vmatprep.subr.mxu0 0.0
    %1765 = vmatpush1.msra.mxu0 0.0
    %1766 = vmatprep.subr.mxu0 0.0
    %1767 = vmatpush1.msra.mxu0 0.0
    %1768 = vmatprep.subr.mxu0 0.0
    %1769 = vmatpush1.msra.mxu0 0.0
    %1770 = vmatprep.subr.mxu0 0.0
    %1771 = vmatpush1.msra.mxu0 0.0
    %1772 = vmatprep.subr.mxu0 0.0
    %1773 = vmatpush1.msra.mxu0 0.0
    %1774 = vmatprep.subr.mxu0 0.0
    %1775 = vmatpush1.msra.mxu0 0.0
    %1776 = vmatprep.subr.mxu0 0.0
    %1777 = vmatpush1.msra.mxu0 0.0
    %1778 = vmatprep.subr.mxu0 0.0
    %1779 = vmatpush1.msra.mxu0 0.0
    %1780 = vmatprep.subr.mxu0 0.0
    %1781 = vmatpush1.msra.mxu0 0.0
    %1782 = vmatprep.subr.mxu0 0.0
    %1783 = vmatpush1.msra.mxu0 0.0
    %1784 = vmatprep.subr.mxu0 0.0
    %1785 = vmatpush1.msra.mxu0 0.0
    %1786 = vmatprep.subr.mxu0 0.0
    %1787 = vmatpush1.msra.mxu0 0.0
    %1788 = vmatprep.subr.mxu0 0.0
    %1789 = vmatpush1.msra.mxu0 0.0
    %1790 = vmatprep.subr.mxu0 0.0
    %1791 = vmatpush1.msra.mxu0 0.0
    %1792 = vmatprep.subr.mxu0 0.0
    %1793 = vmatpush1.msra.mxu0 0.0
    %1794 = vmatprep.subr.mxu0 0.0
    %1795 = vmatpush1.msra.mxu0 0.0
    %1796 = vmatprep.mubr.f32.mxu0 0.0
    %1797 = vmatmul.mubr.f32.gmra.mrb[0].mxu0 %v1030
    %v1798 = vpop.f32.mrb[0].mxu0
    %v1799 = vadd.f32 0.0, %v1798
    %v1800 = vpop.f32.mrb[0].mxu0
    %1801 = vdwg.mxu0
    %1802 = vmatprep.subr.mxu0 0.0
    %1803 = vmatpush1.msra.mxu0 %v726
    %1804 = vmatprep.subr.mxu0 0.0
    %1805 = vmatpush1.msra.mxu0 %v727
    %1806 = vmatprep.subr.mxu0 0.0
    %1807 = vmatpush1.msra.mxu0 %v728
    %1808 = vmatprep.subr.mxu0 0.0
    %1809 = vmatpush1.msra.mxu0 %v729
    %1810 = vmatprep.subr.mxu0 0.0
    %1811 = vmatpush1.msra.mxu0 0.0
    %1812 = vmatprep.subr.mxu0 0.0
    %1813 = vmatpush1.msra.mxu0 0.0
    %1814 = vmatprep.subr.mxu0 0.0
    %1815 = vmatpush1.msra.mxu0 0.0
    %1816 = vmatprep.subr.mxu0 0.0
    %1817 = vmatpush1.msra.mxu0 0.0
    %1818 = vmatprep.subr.mxu0 0.0
    %1819 = vmatpush1.msra.mxu0 0.0
    %1820 = vmatprep.subr.mxu0 0.0
    %1821 = vmatpush1.msra.mxu0 0.0
    %1822 = vmatprep.subr.mxu0 0.0
    %1823 = vmatpush1.msra.mxu0 0.0
    %1824 = vmatprep.subr.mxu0 0.0
    %1825 = vmatpush1.msra.mxu0 0.0
    %1826 = vmatprep.subr.mxu0 0.0
    %1827 = vmatpush1.msra.mxu0 0.0
    %1828 = vmatprep.subr.mxu0 0.0
    %1829 = vmatpush1.msra.mxu0 0.0
    %1830 = vmatprep.subr.mxu0 0.0
    %1831 = vmatpush1.msra.mxu0 0.0
    %1832 = vmatprep.subr.mxu0 0.0
    %1833 = vmatpush1.msra.mxu0 0.0
    %1834 = vmatprep.subr.mxu0 0.0
    %1835 = vmatpush1.msra.mxu0 0.0
    %1836 = vmatprep.subr.mxu0 0.0
    %1837 = vmatpush1.msra.mxu0 0.0
    %1838 = vmatprep.subr.mxu0 0.0
    %1839 = vmatpush1.msra.mxu0 0.0
    %1840 = vmatprep.subr.mxu0 0.0
    %1841 = vmatpush1.msra.mxu0 0.0
    %1842 = vmatprep.subr.mxu0 0.0
    %1843 = vmatpush1.msra.mxu0 0.0
    %1844 = vmatprep.subr.mxu0 0.0
    %1845 = vmatpush1.msra.mxu0 0.0
    %1846 = vmatprep.subr.mxu0 0.0
    %1847 = vmatpush1.msra.mxu0 0.0
    %1848 = vmatprep.subr.mxu0 0.0
    %1849 = vmatpush1.msra.mxu0 0.0
    %1850 = vmatprep.subr.mxu0 0.0
    %1851 = vmatpush1.msra.mxu0 0.0
    %1852 = vmatprep.subr.mxu0 0.0
    %1853 = vmatpush1.msra.mxu0 0.0
    %1854 = vmatprep.subr.mxu0 0.0
    %1855 = vmatpush1.msra.mxu0 0.0
    %1856 = vmatprep.subr.mxu0 0.0
    %1857 = vmatpush1.msra.mxu0 0.0
    %1858 = vmatprep.subr.mxu0 0.0
    %1859 = vmatpush1.msra.mxu0 0.0
    %1860 = vmatprep.subr.mxu0 0.0
    %1861 = vmatpush1.msra.mxu0 0.0
    %1862 = vmatprep.subr.mxu0 0.0
    %1863 = vmatpush1.msra.mxu0 0.0
    %1864 = vmatprep.subr.mxu0 0.0
    %1865 = vmatpush1.msra.mxu0 0.0
    %1866 = vmatprep.mubr.f32.mxu0 0.0
    %1867 = vmatmul.mubr.f32.gmra.mrb[0].mxu0 %v1030
    %v1868 = vpop.f32.mrb[0].mxu0
    %v1869 = vadd.f32 0.0, %v1868
    %v1870 = vpop.f32.mrb[0].mxu0
    %1871 = vdwg.mxu0
    %1872 = vmatprep.subr.mxu0 0.0
    %1873 = vmatpush1.msra.mxu0 %v730
    %1874 = vmatprep.subr.mxu0 0.0
    %1875 = vmatpush1.msra.mxu0 %v731
    %1876 = vmatprep.subr.mxu0 0.0
    %1877 = vmatpush1.msra.mxu0 %v732
    %1878 = vmatprep.subr.mxu0 0.0
    %1879 = vmatpush1.msra.mxu0 %v733
    %1880 = vmatprep.subr.mxu0 0.0
    %1881 = vmatpush1.msra.mxu0 0.0
    %1882 = vmatprep.subr.mxu0 0.0
    %1883 = vmatpush1.msra.mxu0 0.0
    %1884 = vmatprep.subr.mxu0 0.0
    %1885 = vmatpush1.msra.mxu0 0.0
    %1886 = vmatprep.subr.mxu0 0.0
    %1887 = vmatpush1.msra.mxu0 0.0
    %1888 = vmatprep.subr.mxu0 0.0
    %1889 = vmatpush1.msra.mxu0 0.0
    %1890 = vmatprep.subr.mxu0 0.0
    %1891 = vmatpush1.msra.mxu0 0.0
    %1892 = vmatprep.subr.mxu0 0.0
    %1893 = vmatpush1.msra.mxu0 0.0
    %1894 = vmatprep.subr.mxu0 0.0
    %1895 = vmatpush1.msra.mxu0 0.0
    %1896 = vmatprep.subr.mxu0 0.0
    %1897 = vmatpush1.msra.mxu0 0.0
    %1898 = vmatprep.subr.mxu0 0.0
    %1899 = vmatpush1.msra.mxu0 0.0
    %1900 = vmatprep.subr.mxu0 0.0
    %1901 = vmatpush1.msra.mxu0 0.0
    %1902 = vmatprep.subr.mxu0 0.0
    %1903 = vmatpush1.msra.mxu0 0.0
    %1904 = vmatprep.subr.mxu0 0.0
    %1905 = vmatpush1.msra.mxu0 0.0
    %1906 = vmatprep.subr.mxu0 0.0
    %1907 = vmatpush1.msra.mxu0 0.0
    %1908 = vmatprep.subr.mxu0 0.0
    %1909 = vmatpush1.msra.mxu0 0.0
    %1910 = vmatprep.subr.mxu0 0.0
    %1911 = vmatpush1.msra.mxu0 0.0
    %1912 = vmatprep.subr.mxu0 0.0
    %1913 = vmatpush1.msra.mxu0 0.0
    %1914 = vmatprep.subr.mxu0 0.0
    %1915 = vmatpush1.msra.mxu0 0.0
    %1916 = vmatprep.subr.mxu0 0.0
    %1917 = vmatpush1.msra.mxu0 0.0
    %1918 = vmatprep.subr.mxu0 0.0
    %1919 = vmatpush1.msra.mxu0 0.0
    %1920 = vmatprep.subr.mxu0 0.0
    %1921 = vmatpush1.msra.mxu0 0.0
    %1922 = vmatprep.subr.mxu0 0.0
    %1923 = vmatpush1.msra.mxu0 0.0
    %1924 = vmatprep.subr.mxu0 0.0
    %1925 = vmatpush1.msra.mxu0 0.0
    %1926 = vmatprep.subr.mxu0 0.0
    %1927 = vmatpush1.msra.mxu0 0.0
    %1928 = vmatprep.subr.mxu0 0.0
    %1929 = vmatpush1.msra.mxu0 0.0
    %1930 = vmatprep.subr.mxu0 0.0
    %1931 = vmatpush1.msra.mxu0 0.0
    %1932 = vmatprep.subr.mxu0 0.0
    %1933 = vmatpush1.msra.mxu0 0.0
    %1934 = vmatprep.subr.mxu0 0.0
    %1935 = vmatpush1.msra.mxu0 0.0
    %1936 = vmatprep.mubr.f32.mxu0 0.0
    %1937 = vmatmul.mubr.f32.gmra.mrb[0].mxu0 %v747
    %v1938 = vpop.f32.mrb[0].mxu0
    %v1939 = vadd.f32 0.0, %v1938
    %v1940 = vpop.f32.mrb[0].mxu0
    %1941 = vdwg.mxu0
    %1942 = vmatprep.subr.mxu0 0.0
    %1943 = vmatpush1.msra.mxu0 %v734
    %1944 = vmatprep.subr.mxu0 0.0
    %1945 = vmatpush1.msra.mxu0 %v735
    %1946 = vmatprep.subr.mxu0 0.0
    %1947 = vmatpush1.msra.mxu0 %v736
    %1948 = vmatprep.subr.mxu0 0.0
    %1949 = vmatpush1.msra.mxu0 %v737
    %1950 = vmatprep.subr.mxu0 0.0
    %1951 = vmatpush1.msra.mxu0 0.0
    %1952 = vmatprep.subr.mxu0 0.0
    %1953 = vmatpush1.msra.mxu0 0.0
    %1954 = vmatprep.subr.mxu0 0.0
    %1955 = vmatpush1.msra.mxu0 0.0
    %1956 = vmatprep.subr.mxu0 0.0
    %1957 = vmatpush1.msra.mxu0 0.0
    %1958 = vmatprep.subr.mxu0 0.0
    %1959 = vmatpush1.msra.mxu0 0.0
    %1960 = vmatprep.subr.mxu0 0.0
    %1961 = vmatpush1.msra.mxu0 0.0
    %1962 = vmatprep.subr.mxu0 0.0
    %1963 = vmatpush1.msra.mxu0 0.0
    %1964 = vmatprep.subr.mxu0 0.0
    %1965 = vmatpush1.msra.mxu0 0.0
    %1966 = vmatprep.subr.mxu0 0.0
    %1967 = vmatpush1.msra.mxu0 0.0
    %1968 = vmatprep.subr.mxu0 0.0
    %1969 = vmatpush1.msra.mxu0 0.0
    %1970 = vmatprep.subr.mxu0 0.0
    %1971 = vmatpush1.msra.mxu0 0.0
    %1972 = vmatprep.subr.mxu0 0.0
    %1973 = vmatpush1.msra.mxu0 0.0
    %1974 = vmatprep.subr.mxu0 0.0
    %1975 = vmatpush1.msra.mxu0 0.0
    %1976 = vmatprep.subr.mxu0 0.0
    %1977 = vmatpush1.msra.mxu0 0.0
    %1978 = vmatprep.subr.mxu0 0.0
    %1979 = vmatpush1.msra.mxu0 0.0
    %1980 = vmatprep.subr.mxu0 0.0
    %1981 = vmatpush1.msra.mxu0 0.0
    %1982 = vmatprep.subr.mxu0 0.0
    %1983 = vmatpush1.msra.mxu0 0.0
    %1984 = vmatprep.subr.mxu0 0.0
    %1985 = vmatpush1.msra.mxu0 0.0
    %1986 = vmatprep.subr.mxu0 0.0
    %1987 = vmatpush1.msra.mxu0 0.0
    %1988 = vmatprep.subr.mxu0 0.0
    %1989 = vmatpush1.msra.mxu0 0.0
    %1990 = vmatprep.subr.mxu0 0.0
    %1991 = vmatpush1.msra.mxu0 0.0
    %1992 = vmatprep.subr.mxu0 0.0
    %1993 = vmatpush1.msra.mxu0 0.0
    %1994 = vmatprep.subr.mxu0 0.0
    %1995 = vmatpush1.msra.mxu0 0.0
    %1996 = vmatprep.subr.mxu0 0.0
    %1997 = vmatpush1.msra.mxu0 0.0
    %1998 = vmatprep.subr.mxu0 0.0
    %1999 = vmatpush1.msra.mxu0 0.0
    %2000 = vmatprep.subr.mxu0 0.0
    %2001 = vmatpush1.msra.mxu0 0.0
    %2002 = vmatprep.subr.mxu0 0.0
    %2003 = vmatpush1.msra.mxu0 0.0
    %2004 = vmatprep.subr.mxu0 0.0
    %2005 = vmatpush1.msra.mxu0 0.0
    %2006 = vmatprep.mubr.f32.mxu0 0.0
    %2007 = vmatmul.mubr.f32.gmra.mrb[0].mxu0 %v747
    %v2008 = vpop.f32.mrb[0].mxu0
    %v2009 = vadd.f32 0.0, %v2008
    %v2010 = vpop.f32.mrb[0].mxu0
    %2011 = vdwg.mxu0
    %2012 = vmatprep.subr.mxu0 0.0
    %2013 = vmatpush1.msra.mxu0 %v738
    %2014 = vmatprep.subr.mxu0 0.0
    %2015 = vmatpush1.msra.mxu0 %v739
    %2016 = vmatprep.subr.mxu0 0.0
    %2017 = vmatpush1.msra.mxu0 %v740
    %2018 = vmatprep.subr.mxu0 0.0
    %2019 = vmatpush1.msra.mxu0 %v741
    %2020 = vmatprep.subr.mxu0 0.0
    %2021 = vmatpush1.msra.mxu0 0.0
    %2022 = vmatprep.subr.mxu0 0.0
    %2023 = vmatpush1.msra.mxu0 0.0
    %2024 = vmatprep.subr.mxu0 0.0
    %2025 = vmatpush1.msra.mxu0 0.0
    %2026 = vmatprep.subr.mxu0 0.0
    %2027 = vmatpush1.msra.mxu0 0.0
    %2028 = vmatprep.subr.mxu0 0.0
    %2029 = vmatpush1.msra.mxu0 0.0
    %2030 = vmatprep.subr.mxu0 0.0
    %2031 = vmatpush1.msra.mxu0 0.0
    %2032 = vmatprep.subr.mxu0 0.0
    %2033 = vmatpush1.msra.mxu0 0.0
    %2034 = vmatprep.subr.mxu0 0.0
    %2035 = vmatpush1.msra.mxu0 0.0
    %2036 = vmatprep.subr.mxu0 0.0
    %2037 = vmatpush1.msra.mxu0 0.0
    %2038 = vmatprep.subr.mxu0 0.0
    %2039 = vmatpush1.msra.mxu0 0.0
    %2040 = vmatprep.subr.mxu0 0.0
    %2041 = vmatpush1.msra.mxu0 0.0
    %2042 = vmatprep.subr.mxu0 0.0
    %2043 = vmatpush1.msra.mxu0 0.0
    %2044 = vmatprep.subr.mxu0 0.0
    %2045 = vmatpush1.msra.mxu0 0.0
    %2046 = vmatprep.subr.mxu0 0.0
    %2047 = vmatpush1.msra.mxu0 0.0
    %2048 = vmatprep.subr.mxu0 0.0
    %2049 = vmatpush1.msra.mxu0 0.0
    %2050 = vmatprep.subr.mxu0 0.0
    %2051 = vmatpush1.msra.mxu0 0.0
    %2052 = vmatprep.subr.mxu0 0.0
    %2053 = vmatpush1.msra.mxu0 0.0
    %2054 = vmatprep.subr.mxu0 0.0
    %2055 = vmatpush1.msra.mxu0 0.0
    %2056 = vmatprep.subr.mxu0 0.0
    %2057 = vmatpush1.msra.mxu0 0.0
    %2058 = vmatprep.subr.mxu0 0.0
    %2059 = vmatpush1.msra.mxu0 0.0
    %2060 = vmatprep.subr.mxu0 0.0
    %2061 = vmatpush1.msra.mxu0 0.0
    %2062 = vmatprep.subr.mxu0 0.0
    %2063 = vmatpush1.msra.mxu0 0.0
    %2064 = vmatprep.subr.mxu0 0.0
    %2065 = vmatpush1.msra.mxu0 0.0
    %2066 = vmatprep.subr.mxu0 0.0
    %2067 = vmatpush1.msra.mxu0 0.0
    %2068 = vmatprep.subr.mxu0 0.0
    %2069 = vmatpush1.msra.mxu0 0.0
    %2070 = vmatprep.subr.mxu0 0.0
    %2071 = vmatpush1.msra.mxu0 0.0
    %2072 = vmatprep.subr.mxu0 0.0
    %2073 = vmatpush1.msra.mxu0 0.0
    %2074 = vmatprep.subr.mxu0 0.0
    %2075 = vmatpush1.msra.mxu0 0.0
    %2076 = vmatprep.mubr.f32.mxu0 0.0
    %2077 = vmatmul.mubr.f32.gmra.mrb[0].mxu0 %v747
    %v2078 = vpop.f32.mrb[0].mxu0
    %v2079 = vadd.f32 0.0, %v2078
    %v2080 = vpop.f32.mrb[0].mxu0
    %2081 = vdwg.mxu0
    %2082 = vmatprep.subr.mxu0 0.0
    %2083 = vmatpush1.msra.mxu0 %v742
    %2084 = vmatprep.subr.mxu0 0.0
    %2085 = vmatpush1.msra.mxu0 %v743
    %2086 = vmatprep.subr.mxu0 0.0
    %2087 = vmatpush1.msra.mxu0 %v744
    %2088 = vmatprep.subr.mxu0 0.0
    %2089 = vmatpush1.msra.mxu0 %v745
    %2090 = vmatprep.subr.mxu0 0.0
    %2091 = vmatpush1.msra.mxu0 0.0
    %2092 = vmatprep.subr.mxu0 0.0
    %2093 = vmatpush1.msra.mxu0 0.0
    %2094 = vmatprep.subr.mxu0 0.0
    %2095 = vmatpush1.msra.mxu0 0.0
    %2096 = vmatprep.subr.mxu0 0.0
    %2097 = vmatpush1.msra.mxu0 0.0
    %2098 = vmatprep.subr.mxu0 0.0
    %2099 = vmatpush1.msra.mxu0 0.0
    %2100 = vmatprep.subr.mxu0 0.0
    %2101 = vmatpush1.msra.mxu0 0.0
    %2102 = vmatprep.subr.mxu0 0.0
    %2103 = vmatpush1.msra.mxu0 0.0
    %2104 = vmatprep.subr.mxu0 0.0
    %2105 = vmatpush1.msra.mxu0 0.0
    %2106 = vmatprep.subr.mxu0 0.0
    %2107 = vmatpush1.msra.mxu0 0.0
    %2108 = vmatprep.subr.mxu0 0.0
    %2109 = vmatpush1.msra.mxu0 0.0
    %2110 = vmatprep.subr.mxu0 0.0
    %2111 = vmatpush1.msra.mxu0 0.0
    %2112 = vmatprep.subr.mxu0 0.0
    %2113 = vmatpush1.msra.mxu0 0.0
    %2114 = vmatprep.subr.mxu0 0.0
    %2115 = vmatpush1.msra.mxu0 0.0
    %2116 = vmatprep.subr.mxu0 0.0
    %2117 = vmatpush1.msra.mxu0 0.0
    %2118 = vmatprep.subr.mxu0 0.0
    %2119 = vmatpush1.msra.mxu0 0.0
    %2120 = vmatprep.subr.mxu0 0.0
    %2121 = vmatpush1.msra.mxu0 0.0
    %2122 = vmatprep.subr.mxu0 0.0
    %2123 = vmatpush1.msra.mxu0 0.0
    %2124 = vmatprep.subr.mxu0 0.0
    %2125 = vmatpush1.msra.mxu0 0.0
    %2126 = vmatprep.subr.mxu0 0.0
    %2127 = vmatpush1.msra.mxu0 0.0
    %2128 = vmatprep.subr.mxu0 0.0
    %2129 = vmatpush1.msra.mxu0 0.0
    %2130 = vmatprep.subr.mxu0 0.0
    %2131 = vmatpush1.msra.mxu0 0.0
    %2132 = vmatprep.subr.mxu0 0.0
    %2133 = vmatpush1.msra.mxu0 0.0
    %2134 = vmatprep.subr.mxu0 0.0
    %2135 = vmatpush1.msra.mxu0 0.0
    %2136 = vmatprep.subr.mxu0 0.0
    %2137 = vmatpush1.msra.mxu0 0.0
    %2138 = vmatprep.subr.mxu0 0.0
    %2139 = vmatpush1.msra.mxu0 0.0
    %2140 = vmatprep.subr.mxu0 0.0
    %2141 = vmatpush1.msra.mxu0 0.0
    %2142 = vmatprep.subr.mxu0 0.0
    %2143 = vmatpush1.msra.mxu0 0.0
    %2144 = vmatprep.subr.mxu0 0.0
    %2145 = vmatpush1.msra.mxu0 0.0
    %2146 = vmatprep.mubr.f32.mxu0 0.0
    %2147 = vmatmul.mubr.f32.gmra.mrb[0].mxu0 %v747
    %v2148 = vpop.f32.mrb[0].mxu0
    %v2149 = vadd.f32 0.0, %v2148
    %v2150 = vpop.f32.mrb[0].mxu0
    %2151 = vdwg.mxu0
    %2152 = vmatprep.subr.mxu0 0.0
    %2153 = vmatpush1.msra.mxu0 %v730
    %2154 = vmatprep.subr.mxu0 0.0
    %2155 = vmatpush1.msra.mxu0 %v731
    %2156 = vmatprep.subr.mxu0 0.0
    %2157 = vmatpush1.msra.mxu0 %v732
    %2158 = vmatprep.subr.mxu0 0.0
    %2159 = vmatpush1.msra.mxu0 %v733
    %2160 = vmatprep.subr.mxu0 0.0
    %2161 = vmatpush1.msra.mxu0 0.0
    %2162 = vmatprep.subr.mxu0 0.0
    %2163 = vmatpush1.msra.mxu0 0.0
    %2164 = vmatprep.subr.mxu0 0.0
    %2165 = vmatpush1.msra.mxu0 0.0
    %2166 = vmatprep.subr.mxu0 0.0
    %2167 = vmatpush1.msra.mxu0 0.0
    %2168 = vmatprep.subr.mxu0 0.0
    %2169 = vmatpush1.msra.mxu0 0.0
    %2170 = vmatprep.subr.mxu0 0.0
    %2171 = vmatpush1.msra.mxu0 0.0
    %2172 = vmatprep.subr.mxu0 0.0
    %2173 = vmatpush1.msra.mxu0 0.0
    %2174 = vmatprep.subr.mxu0 0.0
    %2175 = vmatpush1.msra.mxu0 0.0
    %2176 = vmatprep.subr.mxu0 0.0
    %2177 = vmatpush1.msra.mxu0 0.0
    %2178 = vmatprep.subr.mxu0 0.0
    %2179 = vmatpush1.msra.mxu0 0.0
    %2180 = vmatprep.subr.mxu0 0.0
    %2181 = vmatpush1.msra.mxu0 0.0
    %2182 = vmatprep.subr.mxu0 0.0
    %2183 = vmatpush1.msra.mxu0 0.0
    %2184 = vmatprep.subr.mxu0 0.0
    %2185 = vmatpush1.msra.mxu0 0.0
    %2186 = vmatprep.subr.mxu0 0.0
    %2187 = vmatpush1.msra.mxu0 0.0
    %2188 = vmatprep.subr.mxu0 0.0
    %2189 = vmatpush1.msra.mxu0 0.0
    %2190 = vmatprep.subr.mxu0 0.0
    %2191 = vmatpush1.msra.mxu0 0.0
    %2192 = vmatprep.subr.mxu0 0.0
    %2193 = vmatpush1.msra.mxu0 0.0
    %2194 = vmatprep.subr.mxu0 0.0
    %2195 = vmatpush1.msra.mxu0 0.0
    %2196 = vmatprep.subr.mxu0 0.0
    %2197 = vmatpush1.msra.mxu0 0.0
    %2198 = vmatprep.subr.mxu0 0.0
    %2199 = vmatpush1.msra.mxu0 0.0
    %2200 = vmatprep.subr.mxu0 0.0
    %2201 = vmatpush1.msra.mxu0 0.0
    %2202 = vmatprep.subr.mxu0 0.0
    %2203 = vmatpush1.msra.mxu0 0.0
    %2204 = vmatprep.subr.mxu0 0.0
    %2205 = vmatpush1.msra.mxu0 0.0
    %2206 = vmatprep.subr.mxu0 0.0
    %2207 = vmatpush1.msra.mxu0 0.0
    %2208 = vmatprep.subr.mxu0 0.0
    %2209 = vmatpush1.msra.mxu0 0.0
    %2210 = vmatprep.subr.mxu0 0.0
    %2211 = vmatpush1.msra.mxu0 0.0
    %2212 = vmatprep.subr.mxu0 0.0
    %2213 = vmatpush1.msra.mxu0 0.0
    %2214 = vmatprep.subr.mxu0 0.0
    %2215 = vmatpush1.msra.mxu0 0.0
    %2216 = vmatprep.mubr.f32.mxu0 0.0
    %2217 = vmatmul.mubr.f32.gmra.mrb[0].mxu0 %v1030
    %v2218 = vpop.f32.mrb[0].mxu0
    %v2219 = vadd.f32 0.0, %v2218
    %v2220 = vpop.f32.mrb[0].mxu0
    %2221 = vdwg.mxu0
    %2222 = vmatprep.subr.mxu0 0.0
    %2223 = vmatpush1.msra.mxu0 %v734
    %2224 = vmatprep.subr.mxu0 0.0
    %2225 = vmatpush1.msra.mxu0 %v735
    %2226 = vmatprep.subr.mxu0 0.0
    %2227 = vmatpush1.msra.mxu0 %v736
    %2228 = vmatprep.subr.mxu0 0.0
    %2229 = vmatpush1.msra.mxu0 %v737
    %2230 = vmatprep.subr.mxu0 0.0
    %2231 = vmatpush1.msra.mxu0 0.0
    %2232 = vmatprep.subr.mxu0 0.0
    %2233 = vmatpush1.msra.mxu0 0.0
    %2234 = vmatprep.subr.mxu0 0.0
    %2235 = vmatpush1.msra.mxu0 0.0
    %2236 = vmatprep.subr.mxu0 0.0
    %2237 = vmatpush1.msra.mxu0 0.0
    %2238 = vmatprep.subr.mxu0 0.0
    %2239 = vmatpush1.msra.mxu0 0.0
    %2240 = vmatprep.subr.mxu0 0.0
    %2241 = vmatpush1.msra.mxu0 0.0
    %2242 = vmatprep.subr.mxu0 0.0
    %2243 = vmatpush1.msra.mxu0 0.0
    %2244 = vmatprep.subr.mxu0 0.0
    %2245 = vmatpush1.msra.mxu0 0.0
    %2246 = vmatprep.subr.mxu0 0.0
    %2247 = vmatpush1.msra.mxu0 0.0
    %2248 = vmatprep.subr.mxu0 0.0
    %2249 = vmatpush1.msra.mxu0 0.0
    %2250 = vmatprep.subr.mxu0 0.0
    %2251 = vmatpush1.msra.mxu0 0.0
    %2252 = vmatprep.subr.mxu0 0.0
    %2253 = vmatpush1.msra.mxu0 0.0
    %2254 = vmatprep.subr.mxu0 0.0
    %2255 = vmatpush1.msra.mxu0 0.0
    %2256 = vmatprep.subr.mxu0 0.0
    %2257 = vmatpush1.msra.mxu0 0.0
    %2258 = vmatprep.subr.mxu0 0.0
    %2259 = vmatpush1.msra.mxu0 0.0
    %2260 = vmatprep.subr.mxu0 0.0
    %2261 = vmatpush1.msra.mxu0 0.0
    %2262 = vmatprep.subr.mxu0 0.0
    %2263 = vmatpush1.msra.mxu0 0.0
    %2264 = vmatprep.subr.mxu0 0.0
    %2265 = vmatpush1.msra.mxu0 0.0
    %2266 = vmatprep.subr.mxu0 0.0
    %2267 = vmatpush1.msra.mxu0 0.0
    %2268 = vmatprep.subr.mxu0 0.0
    %2269 = vmatpush1.msra.mxu0 0.0
    %2270 = vmatprep.subr.mxu0 0.0
    %2271 = vmatpush1.msra.mxu0 0.0
    %2272 = vmatprep.subr.mxu0 0.0
    %2273 = vmatpush1.msra.mxu0 0.0
    %2274 = vmatprep.subr.mxu0 0.0
    %2275 = vmatpush1.msra.mxu0 0.0
    %2276 = vmatprep.subr.mxu0 0.0
    %2277 = vmatpush1.msra.mxu0 0.0
    %2278 = vmatprep.subr.mxu0 0.0
    %2279 = vmatpush1.msra.mxu0 0.0
    %2280 = vmatprep.subr.mxu0 0.0
    %2281 = vmatpush1.msra.mxu0 0.0
    %2282 = vmatprep.subr.mxu0 0.0
    %2283 = vmatpush1.msra.mxu0 0.0
    %2284 = vmatprep.subr.mxu0 0.0
    %2285 = vmatpush1.msra.mxu0 0.0
    %2286 = vmatprep.mubr.f32.mxu0 0.0
    %2287 = vmatmul.mubr.f32.gmra.mrb[0].mxu0 %v1030
    %v2288 = vpop.f32.mrb[0].mxu0
    %v2289 = vadd.f32 0.0, %v2288
    %v2290 = vpop.f32.mrb[0].mxu0
    %2291 = vdwg.mxu0
    %2292 = vmatprep.subr.mxu0 0.0
    %2293 = vmatpush1.msra.mxu0 %v738
    %2294 = vmatprep.subr.mxu0 0.0
    %2295 = vmatpush1.msra.mxu0 %v739
    %2296 = vmatprep.subr.mxu0 0.0
    %2297 = vmatpush1.msra.mxu0 %v740
    %2298 = vmatprep.subr.mxu0 0.0
    %2299 = vmatpush1.msra.mxu0 %v741
    %2300 = vmatprep.subr.mxu0 0.0
    %2301 = vmatpush1.msra.mxu0 0.0
    %2302 = vmatprep.subr.mxu0 0.0
    %2303 = vmatpush1.msra.mxu0 0.0
    %2304 = vmatprep.subr.mxu0 0.0
    %2305 = vmatpush1.msra.mxu0 0.0
    %2306 = vmatprep.subr.mxu0 0.0
    %2307 = vmatpush1.msra.mxu0 0.0
    %2308 = vmatprep.subr.mxu0 0.0
    %2309 = vmatpush1.msra.mxu0 0.0
    %2310 = vmatprep.subr.mxu0 0.0
    %2311 = vmatpush1.msra.mxu0 0.0
    %2312 = vmatprep.subr.mxu0 0.0
    %2313 = vmatpush1.msra.mxu0 0.0
    %2314 = vmatprep.subr.mxu0 0.0
    %2315 = vmatpush1.msra.mxu0 0.0
    %2316 = vmatprep.subr.mxu0 0.0
    %2317 = vmatpush1.msra.mxu0 0.0
    %2318 = vmatprep.subr.mxu0 0.0
    %2319 = vmatpush1.msra.mxu0 0.0
    %2320 = vmatprep.subr.mxu0 0.0
    %2321 = vmatpush1.msra.mxu0 0.0
    %2322 = vmatprep.subr.mxu0 0.0
    %2323 = vmatpush1.msra.mxu0 0.0
    %2324 = vmatprep.subr.mxu0 0.0
    %2325 = vmatpush1.msra.mxu0 0.0
    %2326 = vmatprep.subr.mxu0 0.0
    %2327 = vmatpush1.msra.mxu0 0.0
    %2328 = vmatprep.subr.mxu0 0.0
    %2329 = vmatpush1.msra.mxu0 0.0
    %2330 = vmatprep.subr.mxu0 0.0
    %2331 = vmatpush1.msra.mxu0 0.0
    %2332 = vmatprep.subr.mxu0 0.0
    %2333 = vmatpush1.msra.mxu0 0.0
    %2334 = vmatprep.subr.mxu0 0.0
    %2335 = vmatpush1.msra.mxu0 0.0
    %2336 = vmatprep.subr.mxu0 0.0
    %2337 = vmatpush1.msra.mxu0 0.0
    %2338 = vmatprep.subr.mxu0 0.0
    %2339 = vmatpush1.msra.mxu0 0.0
    %2340 = vmatprep.subr.mxu0 0.0
    %2341 = vmatpush1.msra.mxu0 0.0
    %2342 = vmatprep.subr.mxu0 0.0
    %2343 = vmatpush1.msra.mxu0 0.0
    %2344 = vmatprep.subr.mxu0 0.0
    %2345 = vmatpush1.msra.mxu0 0.0
    %2346 = vmatprep.subr.mxu0 0.0
    %2347 = vmatpush1.msra.mxu0 0.0
    %2348 = vmatprep.subr.mxu0 0.0
    %2349 = vmatpush1.msra.mxu0 0.0
    %2350 = vmatprep.subr.mxu0 0.0
    %2351 = vmatpush1.msra.mxu0 0.0
    %2352 = vmatprep.subr.mxu0 0.0
    %2353 = vmatpush1.msra.mxu0 0.0
    %2354 = vmatprep.subr.mxu0 0.0
    %2355 = vmatpush1.msra.mxu0 0.0
    %2356 = vmatprep.mubr.f32.mxu0 0.0
    %2357 = vmatmul.mubr.f32.gmra.mrb[0].mxu0 %v1030
    %v2358 = vpop.f32.mrb[0].mxu0
    %v2359 = vadd.f32 0.0, %v2358
    %v2360 = vpop.f32.mrb[0].mxu0
    %2361 = vdwg.mxu0
    %2362 = vmatprep.subr.mxu0 0.0
    %2363 = vmatpush1.msra.mxu0 %v742
    %2364 = vmatprep.subr.mxu0 0.0
    %2365 = vmatpush1.msra.mxu0 %v743
    %2366 = vmatprep.subr.mxu0 0.0
    %2367 = vmatpush1.msra.mxu0 %v744
    %2368 = vmatprep.subr.mxu0 0.0
    %2369 = vmatpush1.msra.mxu0 %v745
    %2370 = vmatprep.subr.mxu0 0.0
    %2371 = vmatpush1.msra.mxu0 0.0
    %2372 = vmatprep.subr.mxu0 0.0
    %2373 = vmatpush1.msra.mxu0 0.0
    %2374 = vmatprep.subr.mxu0 0.0
    %2375 = vmatpush1.msra.mxu0 0.0
    %2376 = vmatprep.subr.mxu0 0.0
    %2377 = vmatpush1.msra.mxu0 0.0
    %2378 = vmatprep.subr.mxu0 0.0
    %2379 = vmatpush1.msra.mxu0 0.0
    %2380 = vmatprep.subr.mxu0 0.0
    %2381 = vmatpush1.msra.mxu0 0.0
    %2382 = vmatprep.subr.mxu0 0.0
    %2383 = vmatpush1.msra.mxu0 0.0
    %2384 = vmatprep.subr.mxu0 0.0
    %2385 = vmatpush1.msra.mxu0 0.0
    %2386 = vmatprep.subr.mxu0 0.0
    %2387 = vmatpush1.msra.mxu0 0.0
    %2388 = vmatprep.subr.mxu0 0.0
    %2389 = vmatpush1.msra.mxu0 0.0
    %2390 = vmatprep.subr.mxu0 0.0
    %2391 = vmatpush1.msra.mxu0 0.0
    %2392 = vmatprep.subr.mxu0 0.0
    %2393 = vmatpush1.msra.mxu0 0.0
    %2394 = vmatprep.subr.mxu0 0.0
    %2395 = vmatpush1.msra.mxu0 0.0
    %2396 = vmatprep.subr.mxu0 0.0
    %2397 = vmatpush1.msra.mxu0 0.0
    %2398 = vmatprep.subr.mxu0 0.0
    %2399 = vmatpush1.msra.mxu0 0.0
    %2400 = vmatprep.subr.mxu0 0.0
    %2401 = vmatpush1.msra.mxu0 0.0
    %2402 = vmatprep.subr.mxu0 0.0
    %2403 = vmatpush1.msra.mxu0 0.0
    %2404 = vmatprep.subr.mxu0 0.0
    %2405 = vmatpush1.msra.mxu0 0.0
    %2406 = vmatprep.subr.mxu0 0.0
    %2407 = vmatpush1.msra.mxu0 0.0
    %2408 = vmatprep.subr.mxu0 0.0
    %2409 = vmatpush1.msra.mxu0 0.0
    %2410 = vmatprep.subr.mxu0 0.0
    %2411 = vmatpush1.msra.mxu0 0.0
    %2412 = vmatprep.subr.mxu0 0.0
    %2413 = vmatpush1.msra.mxu0 0.0
    %2414 = vmatprep.subr.mxu0 0.0
    %2415 = vmatpush1.msra.mxu0 0.0
    %2416 = vmatprep.subr.mxu0 0.0
    %2417 = vmatpush1.msra.mxu0 0.0
    %2418 = vmatprep.subr.mxu0 0.0
    %2419 = vmatpush1.msra.mxu0 0.0
    %2420 = vmatprep.subr.mxu0 0.0
    %2421 = vmatpush1.msra.mxu0 0.0
    %2422 = vmatprep.subr.mxu0 0.0
    %2423 = vmatpush1.msra.mxu0 0.0
    %2424 = vmatprep.subr.mxu0 0.0
    %2425 = vmatpush1.msra.mxu0 0.0
    %2426 = vmatprep.mubr.f32.mxu0 0.0
    %2427 = vmatmul.mubr.f32.gmra.mrb[0].mxu0 %v1030
    %v2428 = vpop.f32.mrb[0].mxu0
    %v2429 = vadd.f32 0.0, %v2428
    %v2430 = vpop.f32.mrb[0].mxu0
    %2431 = vdwg.mxu0
    %vm2432 = vcmask 64512
    %v2434 = vsel %vm2432, %v816, 0
    %v2437 = vsel %vm2432, %v1379, 0
    %2439 = vmatprep.subr.mxu0 0.0
    %2440 = vmatpush1.xpose.msra.mxu0 %v2437
    %2441 = vmatprep.subr.mxu0 0.0
    %2442 = vmatpush1.xpose.msra.mxu0 0.0
    %2443 = vmatprep.subr.mxu0 0.0
    %2444 = vmatpush1.xpose.msra.mxu0 0.0
    %2445 = vmatprep.subr.mxu0 0.0
    %2446 = vmatpush1.xpose.msra.mxu0 0.0
    %2447 = vmatprep.subr.mxu0 0.0
    %2448 = vmatpush1.xpose.msra.mxu0 0.0
    %2449 = vmatprep.subr.mxu0 0.0
    %2450 = vmatpush1.xpose.msra.mxu0 0.0
    %2451 = vmatprep.subr.mxu0 0.0
    %2452 = vmatpush1.xpose.msra.mxu0 0.0
    %2453 = vmatprep.subr.mxu0 0.0
    %2454 = vmatpush1.xpose.msra.mxu0 0.0
    %2455 = vmatprep.subr.mxu0 0.0
    %2456 = vmatpush1.xpose.msra.mxu0 0.0
    %2457 = vmatprep.subr.mxu0 0.0
    %2458 = vmatpush1.xpose.msra.mxu0 0.0
    %2459 = vmatprep.subr.mxu0 0.0
    %2460 = vmatpush1.xpose.msra.mxu0 0.0
    %2461 = vmatprep.subr.mxu0 0.0
    %2462 = vmatpush1.xpose.msra.mxu0 0.0
    %2463 = vmatprep.subr.mxu0 0.0
    %2464 = vmatpush1.xpose.msra.mxu0 0.0
    %2465 = vmatprep.subr.mxu0 0.0
    %2466 = vmatpush1.xpose.msra.mxu0 0.0
    %2467 = vmatprep.subr.mxu0 0.0
    %2468 = vmatpush1.xpose.msra.mxu0 0.0
    %2469 = vmatprep.subr.mxu0 0.0
    %2470 = vmatpush1.xpose.msra.mxu0 0.0
    %2471 = vmatprep.subr.mxu0 0.0
    %2472 = vmatpush1.xpose.msra.mxu0 0.0
    %2473 = vmatprep.subr.mxu0 0.0
    %2474 = vmatpush1.xpose.msra.mxu0 0.0
    %2475 = vmatprep.subr.mxu0 0.0
    %2476 = vmatpush1.xpose.msra.mxu0 0.0
    %2477 = vmatprep.subr.mxu0 0.0
    %2478 = vmatpush1.xpose.msra.mxu0 0.0
    %2479 = vmatprep.subr.mxu0 0.0
    %2480 = vmatpush1.xpose.msra.mxu0 0.0
    %2481 = vmatprep.subr.mxu0 0.0
    %2482 = vmatpush1.xpose.msra.mxu0 0.0
    %2483 = vmatprep.subr.mxu0 0.0
    %2484 = vmatpush1.xpose.msra.mxu0 0.0
    %2485 = vmatprep.subr.mxu0 0.0
    %2486 = vmatpush1.xpose.msra.mxu0 0.0
    %2487 = vmatprep.subr.mxu0 0.0
    %2488 = vmatpush1.xpose.msra.mxu0 0.0
    %2489 = vmatprep.subr.mxu0 0.0
    %2490 = vmatpush1.xpose.msra.mxu0 0.0
    %2491 = vmatprep.subr.mxu0 0.0
    %2492 = vmatpush1.xpose.msra.mxu0 0.0
    %2493 = vmatprep.subr.mxu0 0.0
    %2494 = vmatpush1.xpose.msra.mxu0 0.0
    %2495 = vmatprep.subr.mxu0 0.0
    %2496 = vmatpush1.xpose.msra.mxu0 0.0
    %2497 = vmatprep.subr.mxu0 0.0
    %2498 = vmatpush1.xpose.msra.mxu0 0.0
    %2499 = vmatprep.subr.mxu0 0.0
    %2500 = vmatpush1.xpose.msra.mxu0 0.0
    %2501 = vmatprep.subr.mxu0 0.0
    %2502 = vmatpush1.xpose.msra.mxu0 0.0
    %2503 = vmatprep.mubr.f32.mxu0 0.0
    %2504 = vmatmul.mubr.f32.gmra.mrb[0].mxu0 %v2434
    %v2505 = vpop.f32.mrb[0].mxu0
    %v2506 = vadd.f32 0.0, %v2505
    %v2507 = vpop.f32.mrb[0].mxu0
    %2508 = vdwg.mxu0
    %v2510 = vsel %vm2432, %v886, 0
    %v2513 = vsel %vm2432, %v1449, 0
    %2515 = vmatprep.subr.mxu0 0.0
    %2516 = vmatpush1.xpose.msra.mxu0 %v2513
    %2517 = vmatprep.subr.mxu0 0.0
    %2518 = vmatpush1.xpose.msra.mxu0 0.0
    %2519 = vmatprep.subr.mxu0 0.0
    %2520 = vmatpush1.xpose.msra.mxu0 0.0
    %2521 = vmatprep.subr.mxu0 0.0
    %2522 = vmatpush1.xpose.msra.mxu0 0.0
    %2523 = vmatprep.subr.mxu0 0.0
    %2524 = vmatpush1.xpose.msra.mxu0 0.0
    %2525 = vmatprep.subr.mxu0 0.0
    %2526 = vmatpush1.xpose.msra.mxu0 0.0
    %2527 = vmatprep.subr.mxu0 0.0
    %2528 = vmatpush1.xpose.msra.mxu0 0.0
    %2529 = vmatprep.subr.mxu0 0.0
    %2530 = vmatpush1.xpose.msra.mxu0 0.0
    %2531 = vmatprep.subr.mxu0 0.0
    %2532 = vmatpush1.xpose.msra.mxu0 0.0
    %2533 = vmatprep.subr.mxu0 0.0
    %2534 = vmatpush1.xpose.msra.mxu0 0.0
    %2535 = vmatprep.subr.mxu0 0.0
    %2536 = vmatpush1.xpose.msra.mxu0 0.0
    %2537 = vmatprep.subr.mxu0 0.0
    %2538 = vmatpush1.xpose.msra.mxu0 0.0
    %2539 = vmatprep.subr.mxu0 0.0
    %2540 = vmatpush1.xpose.msra.mxu0 0.0
    %2541 = vmatprep.subr.mxu0 0.0
    %2542 = vmatpush1.xpose.msra.mxu0 0.0
    %2543 = vmatprep.subr.mxu0 0.0
    %2544 = vmatpush1.xpose.msra.mxu0 0.0
    %2545 = vmatprep.subr.mxu0 0.0
    %2546 = vmatpush1.xpose.msra.mxu0 0.0
    %2547 = vmatprep.subr.mxu0 0.0
    %2548 = vmatpush1.xpose.msra.mxu0 0.0
    %2549 = vmatprep.subr.mxu0 0.0
    %2550 = vmatpush1.xpose.msra.mxu0 0.0
    %2551 = vmatprep.subr.mxu0 0.0
    %2552 = vmatpush1.xpose.msra.mxu0 0.0
    %2553 = vmatprep.subr.mxu0 0.0
    %2554 = vmatpush1.xpose.msra.mxu0 0.0
    %2555 = vmatprep.subr.mxu0 0.0
    %2556 = vmatpush1.xpose.msra.mxu0 0.0
    %2557 = vmatprep.subr.mxu0 0.0
    %2558 = vmatpush1.xpose.msra.mxu0 0.0
    %2559 = vmatprep.subr.mxu0 0.0
    %2560 = vmatpush1.xpose.msra.mxu0 0.0
    %2561 = vmatprep.subr.mxu0 0.0
    %2562 = vmatpush1.xpose.msra.mxu0 0.0
    %2563 = vmatprep.subr.mxu0 0.0
    %2564 = vmatpush1.xpose.msra.mxu0 0.0
    %2565 = vmatprep.subr.mxu0 0.0
    %2566 = vmatpush1.xpose.msra.mxu0 0.0
    %2567 = vmatprep.subr.mxu0 0.0
    %2568 = vmatpush1.xpose.msra.mxu0 0.0
    %2569 = vmatprep.subr.mxu0 0.0
    %2570 = vmatpush1.xpose.msra.mxu0 0.0
    %2571 = vmatprep.subr.mxu0 0.0
    %2572 = vmatpush1.xpose.msra.mxu0 0.0
    %2573 = vmatprep.subr.mxu0 0.0
    %2574 = vmatpush1.xpose.msra.mxu0 0.0
    %2575 = vmatprep.subr.mxu0 0.0
    %2576 = vmatpush1.xpose.msra.mxu0 0.0
    %2577 = vmatprep.subr.mxu0 0.0
    %2578 = vmatpush1.xpose.msra.mxu0 0.0
    %2579 = vmatprep.mubr.f32.mxu0 0.0
    %2580 = vmatmul.mubr.f32.gmra.mrb[0].mxu0 %v2510
    %v2581 = vpop.f32.mrb[0].mxu0
    %v2582 = vadd.f32 0.0, %v2581
    %v2583 = vpop.f32.mrb[0].mxu0
    %2584 = vdwg.mxu0
    %v2586 = vsel %vm2432, %v956, 0
    %v2589 = vsel %vm2432, %v1519, 0
    %2591 = vmatprep.subr.mxu0 0.0
    %2592 = vmatpush1.xpose.msra.mxu0 %v2589
    %2593 = vmatprep.subr.mxu0 0.0
    %2594 = vmatpush1.xpose.msra.mxu0 0.0
    %2595 = vmatprep.subr.mxu0 0.0
    %2596 = vmatpush1.xpose.msra.mxu0 0.0
    %2597 = vmatprep.subr.mxu0 0.0
    %2598 = vmatpush1.xpose.msra.mxu0 0.0
    %2599 = vmatprep.subr.mxu0 0.0
    %2600 = vmatpush1.xpose.msra.mxu0 0.0
    %2601 = vmatprep.subr.mxu0 0.0
    %2602 = vmatpush1.xpose.msra.mxu0 0.0
    %2603 = vmatprep.subr.mxu0 0.0
    %2604 = vmatpush1.xpose.msra.mxu0 0.0
    %2605 = vmatprep.subr.mxu0 0.0
    %2606 = vmatpush1.xpose.msra.mxu0 0.0
    %2607 = vmatprep.subr.mxu0 0.0
    %2608 = vmatpush1.xpose.msra.mxu0 0.0
    %2609 = vmatprep.subr.mxu0 0.0
    %2610 = vmatpush1.xpose.msra.mxu0 0.0
    %2611 = vmatprep.subr.mxu0 0.0
    %2612 = vmatpush1.xpose.msra.mxu0 0.0
    %2613 = vmatprep.subr.mxu0 0.0
    %2614 = vmatpush1.xpose.msra.mxu0 0.0
    %2615 = vmatprep.subr.mxu0 0.0
    %2616 = vmatpush1.xpose.msra.mxu0 0.0
    %2617 = vmatprep.subr.mxu0 0.0
    %2618 = vmatpush1.xpose.msra.mxu0 0.0
    %2619 = vmatprep.subr.mxu0 0.0
    %2620 = vmatpush1.xpose.msra.mxu0 0.0
    %2621 = vmatprep.subr.mxu0 0.0
    %2622 = vmatpush1.xpose.msra.mxu0 0.0
    %2623 = vmatprep.subr.mxu0 0.0
    %2624 = vmatpush1.xpose.msra.mxu0 0.0
    %2625 = vmatprep.subr.mxu0 0.0
    %2626 = vmatpush1.xpose.msra.mxu0 0.0
    %2627 = vmatprep.subr.mxu0 0.0
    %2628 = vmatpush1.xpose.msra.mxu0 0.0
    %2629 = vmatprep.subr.mxu0 0.0
    %2630 = vmatpush1.xpose.msra.mxu0 0.0
    %2631 = vmatprep.subr.mxu0 0.0
    %2632 = vmatpush1.xpose.msra.mxu0 0.0
    %2633 = vmatprep.subr.mxu0 0.0
    %2634 = vmatpush1.xpose.msra.mxu0 0.0
    %2635 = vmatprep.subr.mxu0 0.0
    %2636 = vmatpush1.xpose.msra.mxu0 0.0
    %2637 = vmatprep.subr.mxu0 0.0
    %2638 = vmatpush1.xpose.msra.mxu0 0.0
    %2639 = vmatprep.subr.mxu0 0.0
    %2640 = vmatpush1.xpose.msra.mxu0 0.0
    %2641 = vmatprep.subr.mxu0 0.0
    %2642 = vmatpush1.xpose.msra.mxu0 0.0
    %2643 = vmatprep.subr.mxu0 0.0
    %2644 = vmatpush1.xpose.msra.mxu0 0.0
    %2645 = vmatprep.subr.mxu0 0.0
    %2646 = vmatpush1.xpose.msra.mxu0 0.0
    %2647 = vmatprep.subr.mxu0 0.0
    %2648 = vmatpush1.xpose.msra.mxu0 0.0
    %2649 = vmatprep.subr.mxu0 0.0
    %2650 = vmatpush1.xpose.msra.mxu0 0.0
    %2651 = vmatprep.subr.mxu0 0.0
    %2652 = vmatpush1.xpose.msra.mxu0 0.0
    %2653 = vmatprep.subr.mxu0 0.0
    %2654 = vmatpush1.xpose.msra.mxu0 0.0
    %2655 = vmatprep.mubr.f32.mxu0 0.0
    %2656 = vmatmul.mubr.f32.gmra.mrb[0].mxu0 %v2586
    %v2657 = vpop.f32.mrb[0].mxu0
    %v2658 = vadd.f32 0.0, %v2657
    %v2659 = vpop.f32.mrb[0].mxu0
    %2660 = vdwg.mxu0
    %v2662 = vsel %vm2432, %v1026, 0
    %v2665 = vsel %vm2432, %v1589, 0
    %2667 = vmatprep.subr.mxu0 0.0
    %2668 = vmatpush1.xpose.msra.mxu0 %v2665
    %2669 = vmatprep.subr.mxu0 0.0
    %2670 = vmatpush1.xpose.msra.mxu0 0.0
    %2671 = vmatprep.subr.mxu0 0.0
    %2672 = vmatpush1.xpose.msra.mxu0 0.0
    %2673 = vmatprep.subr.mxu0 0.0
    %2674 = vmatpush1.xpose.msra.mxu0 0.0
    %2675 = vmatprep.subr.mxu0 0.0
    %2676 = vmatpush1.xpose.msra.mxu0 0.0
    %2677 = vmatprep.subr.mxu0 0.0
    %2678 = vmatpush1.xpose.msra.mxu0 0.0
    %2679 = vmatprep.subr.mxu0 0.0
    %2680 = vmatpush1.xpose.msra.mxu0 0.0
    %2681 = vmatprep.subr.mxu0 0.0
    %2682 = vmatpush1.xpose.msra.mxu0 0.0
    %2683 = vmatprep.subr.mxu0 0.0
    %2684 = vmatpush1.xpose.msra.mxu0 0.0
    %2685 = vmatprep.subr.mxu0 0.0
    %2686 = vmatpush1.xpose.msra.mxu0 0.0
    %2687 = vmatprep.subr.mxu0 0.0
    %2688 = vmatpush1.xpose.msra.mxu0 0.0
    %2689 = vmatprep.subr.mxu0 0.0
    %2690 = vmatpush1.xpose.msra.mxu0 0.0
    %2691 = vmatprep.subr.mxu0 0.0
    %2692 = vmatpush1.xpose.msra.mxu0 0.0
    %2693 = vmatprep.subr.mxu0 0.0
    %2694 = vmatpush1.xpose.msra.mxu0 0.0
    %2695 = vmatprep.subr.mxu0 0.0
    %2696 = vmatpush1.xpose.msra.mxu0 0.0
    %2697 = vmatprep.subr.mxu0 0.0
    %2698 = vmatpush1.xpose.msra.mxu0 0.0
    %2699 = vmatprep.subr.mxu0 0.0
    %2700 = vmatpush1.xpose.msra.mxu0 0.0
    %2701 = vmatprep.subr.mxu0 0.0
    %2702 = vmatpush1.xpose.msra.mxu0 0.0
    %2703 = vmatprep.subr.mxu0 0.0
    %2704 = vmatpush1.xpose.msra.mxu0 0.0
    %2705 = vmatprep.subr.mxu0 0.0
    %2706 = vmatpush1.xpose.msra.mxu0 0.0
    %2707 = vmatprep.subr.mxu0 0.0
    %2708 = vmatpush1.xpose.msra.mxu0 0.0
    %2709 = vmatprep.subr.mxu0 0.0
    %2710 = vmatpush1.xpose.msra.mxu0 0.0
    %2711 = vmatprep.subr.mxu0 0.0
    %2712 = vmatpush1.xpose.msra.mxu0 0.0
    %2713 = vmatprep.subr.mxu0 0.0
    %2714 = vmatpush1.xpose.msra.mxu0 0.0
    %2715 = vmatprep.subr.mxu0 0.0
    %2716 = vmatpush1.xpose.msra.mxu0 0.0
    %2717 = vmatprep.subr.mxu0 0.0
    %2718 = vmatpush1.xpose.msra.mxu0 0.0
    %2719 = vmatprep.subr.mxu0 0.0
    %2720 = vmatpush1.xpose.msra.mxu0 0.0
    %2721 = vmatprep.subr.mxu0 0.0
    %2722 = vmatpush1.xpose.msra.mxu0 0.0
    %2723 = vmatprep.subr.mxu0 0.0
    %2724 = vmatpush1.xpose.msra.mxu0 0.0
    %2725 = vmatprep.subr.mxu0 0.0
    %2726 = vmatpush1.xpose.msra.mxu0 0.0
    %2727 = vmatprep.subr.mxu0 0.0
    %2728 = vmatpush1.xpose.msra.mxu0 0.0
    %2729 = vmatprep.subr.mxu0 0.0
    %2730 = vmatpush1.xpose.msra.mxu0 0.0
    %2731 = vmatprep.mubr.f32.mxu0 0.0
    %2732 = vmatmul.mubr.f32.gmra.mrb[0].mxu0 %v2662
    %v2733 = vpop.f32.mrb[0].mxu0
    %v2734 = vadd.f32 0.0, %v2733
    %v2735 = vpop.f32.mrb[0].mxu0
    %2736 = vdwg.mxu0
    %v2738 = vsel %vm2432, %v1099, 0
    %v2741 = vsel %vm2432, %v1659, 0
    %2743 = vmatprep.subr.mxu0 0.0
    %2744 = vmatpush1.xpose.msra.mxu0 %v2741
    %2745 = vmatprep.subr.mxu0 0.0
    %2746 = vmatpush1.xpose.msra.mxu0 0.0
    %2747 = vmatprep.subr.mxu0 0.0
    %2748 = vmatpush1.xpose.msra.mxu0 0.0
    %2749 = vmatprep.subr.mxu0 0.0
    %2750 = vmatpush1.xpose.msra.mxu0 0.0
    %2751 = vmatprep.subr.mxu0 0.0
    %2752 = vmatpush1.xpose.msra.mxu0 0.0
    %2753 = vmatprep.subr.mxu0 0.0
    %2754 = vmatpush1.xpose.msra.mxu0 0.0
    %2755 = vmatprep.subr.mxu0 0.0
    %2756 = vmatpush1.xpose.msra.mxu0 0.0
    %2757 = vmatprep.subr.mxu0 0.0
    %2758 = vmatpush1.xpose.msra.mxu0 0.0
    %2759 = vmatprep.subr.mxu0 0.0
    %2760 = vmatpush1.xpose.msra.mxu0 0.0
    %2761 = vmatprep.subr.mxu0 0.0
    %2762 = vmatpush1.xpose.msra.mxu0 0.0
    %2763 = vmatprep.subr.mxu0 0.0
    %2764 = vmatpush1.xpose.msra.mxu0 0.0
    %2765 = vmatprep.subr.mxu0 0.0
    %2766 = vmatpush1.xpose.msra.mxu0 0.0
    %2767 = vmatprep.subr.mxu0 0.0
    %2768 = vmatpush1.xpose.msra.mxu0 0.0
    %2769 = vmatprep.subr.mxu0 0.0
    %2770 = vmatpush1.xpose.msra.mxu0 0.0
    %2771 = vmatprep.subr.mxu0 0.0
    %2772 = vmatpush1.xpose.msra.mxu0 0.0
    %2773 = vmatprep.subr.mxu0 0.0
    %2774 = vmatpush1.xpose.msra.mxu0 0.0
    %2775 = vmatprep.subr.mxu0 0.0
    %2776 = vmatpush1.xpose.msra.mxu0 0.0
    %2777 = vmatprep.subr.mxu0 0.0
    %2778 = vmatpush1.xpose.msra.mxu0 0.0
    %2779 = vmatprep.subr.mxu0 0.0
    %2780 = vmatpush1.xpose.msra.mxu0 0.0
    %2781 = vmatprep.subr.mxu0 0.0
    %2782 = vmatpush1.xpose.msra.mxu0 0.0
    %2783 = vmatprep.subr.mxu0 0.0
    %2784 = vmatpush1.xpose.msra.mxu0 0.0
    %2785 = vmatprep.subr.mxu0 0.0
    %2786 = vmatpush1.xpose.msra.mxu0 0.0
    %2787 = vmatprep.subr.mxu0 0.0
    %2788 = vmatpush1.xpose.msra.mxu0 0.0
    %2789 = vmatprep.subr.mxu0 0.0
    %2790 = vmatpush1.xpose.msra.mxu0 0.0
    %2791 = vmatprep.subr.mxu0 0.0
    %2792 = vmatpush1.xpose.msra.mxu0 0.0
    %2793 = vmatprep.subr.mxu0 0.0
    %2794 = vmatpush1.xpose.msra.mxu0 0.0
    %2795 = vmatprep.subr.mxu0 0.0
    %2796 = vmatpush1.xpose.msra.mxu0 0.0
    %2797 = vmatprep.subr.mxu0 0.0
    %2798 = vmatpush1.xpose.msra.mxu0 0.0
    %2799 = vmatprep.subr.mxu0 0.0
    %2800 = vmatpush1.xpose.msra.mxu0 0.0
    %2801 = vmatprep.subr.mxu0 0.0
    %2802 = vmatpush1.xpose.msra.mxu0 0.0
    %2803 = vmatprep.subr.mxu0 0.0
    %2804 = vmatpush1.xpose.msra.mxu0 0.0
    %2805 = vmatprep.subr.mxu0 0.0
    %2806 = vmatpush1.xpose.msra.mxu0 0.0
    %2807 = vmatprep.mubr.f32.mxu0 0.0
    %2808 = vmatmul.mubr.f32.gmra.mrb[0].mxu0 %v2738
    %v2809 = vpop.f32.mrb[0].mxu0
    %v2810 = vadd.f32 0.0, %v2809
    %v2811 = vpop.f32.mrb[0].mxu0
    %2812 = vdwg.mxu0
    %v2814 = vsel %vm2432, %v1169, 0
    %v2817 = vsel %vm2432, %v1729, 0
    %2819 = vmatprep.subr.mxu0 0.0
    %2820 = vmatpush1.xpose.msra.mxu0 %v2817
    %2821 = vmatprep.subr.mxu0 0.0
    %2822 = vmatpush1.xpose.msra.mxu0 0.0
    %2823 = vmatprep.subr.mxu0 0.0
    %2824 = vmatpush1.xpose.msra.mxu0 0.0
    %2825 = vmatprep.subr.mxu0 0.0
    %2826 = vmatpush1.xpose.msra.mxu0 0.0
    %2827 = vmatprep.subr.mxu0 0.0
    %2828 = vmatpush1.xpose.msra.mxu0 0.0
    %2829 = vmatprep.subr.mxu0 0.0
    %2830 = vmatpush1.xpose.msra.mxu0 0.0
    %2831 = vmatprep.subr.mxu0 0.0
    %2832 = vmatpush1.xpose.msra.mxu0 0.0
    %2833 = vmatprep.subr.mxu0 0.0
    %2834 = vmatpush1.xpose.msra.mxu0 0.0
    %2835 = vmatprep.subr.mxu0 0.0
    %2836 = vmatpush1.xpose.msra.mxu0 0.0
    %2837 = vmatprep.subr.mxu0 0.0
    %2838 = vmatpush1.xpose.msra.mxu0 0.0
    %2839 = vmatprep.subr.mxu0 0.0
    %2840 = vmatpush1.xpose.msra.mxu0 0.0
    %2841 = vmatprep.subr.mxu0 0.0
    %2842 = vmatpush1.xpose.msra.mxu0 0.0
    %2843 = vmatprep.subr.mxu0 0.0
    %2844 = vmatpush1.xpose.msra.mxu0 0.0
    %2845 = vmatprep.subr.mxu0 0.0
    %2846 = vmatpush1.xpose.msra.mxu0 0.0
    %2847 = vmatprep.subr.mxu0 0.0
    %2848 = vmatpush1.xpose.msra.mxu0 0.0
    %2849 = vmatprep.subr.mxu0 0.0
    %2850 = vmatpush1.xpose.msra.mxu0 0.0
    %2851 = vmatprep.subr.mxu0 0.0
    %2852 = vmatpush1.xpose.msra.mxu0 0.0
    %2853 = vmatprep.subr.mxu0 0.0
    %2854 = vmatpush1.xpose.msra.mxu0 0.0
    %2855 = vmatprep.subr.mxu0 0.0
    %2856 = vmatpush1.xpose.msra.mxu0 0.0
    %2857 = vmatprep.subr.mxu0 0.0
    %2858 = vmatpush1.xpose.msra.mxu0 0.0
    %2859 = vmatprep.subr.mxu0 0.0
    %2860 = vmatpush1.xpose.msra.mxu0 0.0
    %2861 = vmatprep.subr.mxu0 0.0
    %2862 = vmatpush1.xpose.msra.mxu0 0.0
    %2863 = vmatprep.subr.mxu0 0.0
    %2864 = vmatpush1.xpose.msra.mxu0 0.0
    %2865 = vmatprep.subr.mxu0 0.0
    %2866 = vmatpush1.xpose.msra.mxu0 0.0
    %2867 = vmatprep.subr.mxu0 0.0
    %2868 = vmatpush1.xpose.msra.mxu0 0.0
    %2869 = vmatprep.subr.mxu0 0.0
    %2870 = vmatpush1.xpose.msra.mxu0 0.0
    %2871 = vmatprep.subr.mxu0 0.0
    %2872 = vmatpush1.xpose.msra.mxu0 0.0
    %2873 = vmatprep.subr.mxu0 0.0
    %2874 = vmatpush1.xpose.msra.mxu0 0.0
    %2875 = vmatprep.subr.mxu0 0.0
    %2876 = vmatpush1.xpose.msra.mxu0 0.0
    %2877 = vmatprep.subr.mxu0 0.0
    %2878 = vmatpush1.xpose.msra.mxu0 0.0
    %2879 = vmatprep.subr.mxu0 0.0
    %2880 = vmatpush1.xpose.msra.mxu0 0.0
    %2881 = vmatprep.subr.mxu0 0.0
    %2882 = vmatpush1.xpose.msra.mxu0 0.0
    %2883 = vmatprep.mubr.f32.mxu0 0.0
    %2884 = vmatmul.mubr.f32.gmra.mrb[0].mxu0 %v2814
    %v2885 = vpop.f32.mrb[0].mxu0
    %v2886 = vadd.f32 0.0, %v2885
    %v2887 = vpop.f32.mrb[0].mxu0
    %2888 = vdwg.mxu0
    %v2890 = vsel %vm2432, %v1239, 0
    %v2893 = vsel %vm2432, %v1799, 0
    %2895 = vmatprep.subr.mxu0 0.0
    %2896 = vmatpush1.xpose.msra.mxu0 %v2893
    %2897 = vmatprep.subr.mxu0 0.0
    %2898 = vmatpush1.xpose.msra.mxu0 0.0
    %2899 = vmatprep.subr.mxu0 0.0
    %2900 = vmatpush1.xpose.msra.mxu0 0.0
    %2901 = vmatprep.subr.mxu0 0.0
    %2902 = vmatpush1.xpose.msra.mxu0 0.0
    %2903 = vmatprep.subr.mxu0 0.0
    %2904 = vmatpush1.xpose.msra.mxu0 0.0
    %2905 = vmatprep.subr.mxu0 0.0
    %2906 = vmatpush1.xpose.msra.mxu0 0.0
    %2907 = vmatprep.subr.mxu0 0.0
    %2908 = vmatpush1.xpose.msra.mxu0 0.0
    %2909 = vmatprep.subr.mxu0 0.0
    %2910 = vmatpush1.xpose.msra.mxu0 0.0
    %2911 = vmatprep.subr.mxu0 0.0
    %2912 = vmatpush1.xpose.msra.mxu0 0.0
    %2913 = vmatprep.subr.mxu0 0.0
    %2914 = vmatpush1.xpose.msra.mxu0 0.0
    %2915 = vmatprep.subr.mxu0 0.0
    %2916 = vmatpush1.xpose.msra.mxu0 0.0
    %2917 = vmatprep.subr.mxu0 0.0
    %2918 = vmatpush1.xpose.msra.mxu0 0.0
    %2919 = vmatprep.subr.mxu0 0.0
    %2920 = vmatpush1.xpose.msra.mxu0 0.0
    %2921 = vmatprep.subr.mxu0 0.0
    %2922 = vmatpush1.xpose.msra.mxu0 0.0
    %2923 = vmatprep.subr.mxu0 0.0
    %2924 = vmatpush1.xpose.msra.mxu0 0.0
    %2925 = vmatprep.subr.mxu0 0.0
    %2926 = vmatpush1.xpose.msra.mxu0 0.0
    %2927 = vmatprep.subr.mxu0 0.0
    %2928 = vmatpush1.xpose.msra.mxu0 0.0
    %2929 = vmatprep.subr.mxu0 0.0
    %2930 = vmatpush1.xpose.msra.mxu0 0.0
    %2931 = vmatprep.subr.mxu0 0.0
    %2932 = vmatpush1.xpose.msra.mxu0 0.0
    %2933 = vmatprep.subr.mxu0 0.0
    %2934 = vmatpush1.xpose.msra.mxu0 0.0
    %2935 = vmatprep.subr.mxu0 0.0
    %2936 = vmatpush1.xpose.msra.mxu0 0.0
    %2937 = vmatprep.subr.mxu0 0.0
    %2938 = vmatpush1.xpose.msra.mxu0 0.0
    %2939 = vmatprep.subr.mxu0 0.0
    %2940 = vmatpush1.xpose.msra.mxu0 0.0
    %2941 = vmatprep.subr.mxu0 0.0
    %2942 = vmatpush1.xpose.msra.mxu0 0.0
    %2943 = vmatprep.subr.mxu0 0.0
    %2944 = vmatpush1.xpose.msra.mxu0 0.0
    %2945 = vmatprep.subr.mxu0 0.0
    %2946 = vmatpush1.xpose.msra.mxu0 0.0
    %2947 = vmatprep.subr.mxu0 0.0
    %2948 = vmatpush1.xpose.msra.mxu0 0.0
    %2949 = vmatprep.subr.mxu0 0.0
    %2950 = vmatpush1.xpose.msra.mxu0 0.0
    %2951 = vmatprep.subr.mxu0 0.0
    %2952 = vmatpush1.xpose.msra.mxu0 0.0
    %2953 = vmatprep.subr.mxu0 0.0
    %2954 = vmatpush1.xpose.msra.mxu0 0.0
    %2955 = vmatprep.subr.mxu0 0.0
    %2956 = vmatpush1.xpose.msra.mxu0 0.0
    %2957 = vmatprep.subr.mxu0 0.0
    %2958 = vmatpush1.xpose.msra.mxu0 0.0
    %2959 = vmatprep.mubr.f32.mxu0 0.0
    %2960 = vmatmul.mubr.f32.gmra.mrb[0].mxu0 %v2890
    %v2961 = vpop.f32.mrb[0].mxu0
    %v2962 = vadd.f32 0.0, %v2961
    %v2963 = vpop.f32.mrb[0].mxu0
    %2964 = vdwg.mxu0
    %v2966 = vsel %vm2432, %v1309, 0
    %v2969 = vsel %vm2432, %v1869, 0
    %2971 = vmatprep.subr.mxu0 0.0
    %2972 = vmatpush1.xpose.msra.mxu0 %v2969
    %2973 = vmatprep.subr.mxu0 0.0
    %2974 = vmatpush1.xpose.msra.mxu0 0.0
    %2975 = vmatprep.subr.mxu0 0.0
    %2976 = vmatpush1.xpose.msra.mxu0 0.0
    %2977 = vmatprep.subr.mxu0 0.0
    %2978 = vmatpush1.xpose.msra.mxu0 0.0
    %2979 = vmatprep.subr.mxu0 0.0
    %2980 = vmatpush1.xpose.msra.mxu0 0.0
    %2981 = vmatprep.subr.mxu0 0.0
    %2982 = vmatpush1.xpose.msra.mxu0 0.0
    %2983 = vmatprep.subr.mxu0 0.0
    %2984 = vmatpush1.xpose.msra.mxu0 0.0
    %2985 = vmatprep.subr.mxu0 0.0
    %2986 = vmatpush1.xpose.msra.mxu0 0.0
    %2987 = vmatprep.subr.mxu0 0.0
    %2988 = vmatpush1.xpose.msra.mxu0 0.0
    %2989 = vmatprep.subr.mxu0 0.0
    %2990 = vmatpush1.xpose.msra.mxu0 0.0
    %2991 = vmatprep.subr.mxu0 0.0
    %2992 = vmatpush1.xpose.msra.mxu0 0.0
    %2993 = vmatprep.subr.mxu0 0.0
    %2994 = vmatpush1.xpose.msra.mxu0 0.0
    %2995 = vmatprep.subr.mxu0 0.0
    %2996 = vmatpush1.xpose.msra.mxu0 0.0
    %2997 = vmatprep.subr.mxu0 0.0
    %2998 = vmatpush1.xpose.msra.mxu0 0.0
    %2999 = vmatprep.subr.mxu0 0.0
    %3000 = vmatpush1.xpose.msra.mxu0 0.0
    %3001 = vmatprep.subr.mxu0 0.0
    %3002 = vmatpush1.xpose.msra.mxu0 0.0
    %3003 = vmatprep.subr.mxu0 0.0
    %3004 = vmatpush1.xpose.msra.mxu0 0.0
    %3005 = vmatprep.subr.mxu0 0.0
    %3006 = vmatpush1.xpose.msra.mxu0 0.0
    %3007 = vmatprep.subr.mxu0 0.0
    %3008 = vmatpush1.xpose.msra.mxu0 0.0
    %3009 = vmatprep.subr.mxu0 0.0
    %3010 = vmatpush1.xpose.msra.mxu0 0.0
    %3011 = vmatprep.subr.mxu0 0.0
    %3012 = vmatpush1.xpose.msra.mxu0 0.0
    %3013 = vmatprep.subr.mxu0 0.0
    %3014 = vmatpush1.xpose.msra.mxu0 0.0
    %3015 = vmatprep.subr.mxu0 0.0
    %3016 = vmatpush1.xpose.msra.mxu0 0.0
    %3017 = vmatprep.subr.mxu0 0.0
    %3018 = vmatpush1.xpose.msra.mxu0 0.0
    %3019 = vmatprep.subr.mxu0 0.0
    %3020 = vmatpush1.xpose.msra.mxu0 0.0
    %3021 = vmatprep.subr.mxu0 0.0
    %3022 = vmatpush1.xpose.msra.mxu0 0.0
    %3023 = vmatprep.subr.mxu0 0.0
    %3024 = vmatpush1.xpose.msra.mxu0 0.0
    %3025 = vmatprep.subr.mxu0 0.0
    %3026 = vmatpush1.xpose.msra.mxu0 0.0
    %3027 = vmatprep.subr.mxu0 0.0
    %3028 = vmatpush1.xpose.msra.mxu0 0.0
    %3029 = vmatprep.subr.mxu0 0.0
    %3030 = vmatpush1.xpose.msra.mxu0 0.0
    %3031 = vmatprep.subr.mxu0 0.0
    %3032 = vmatpush1.xpose.msra.mxu0 0.0
    %3033 = vmatprep.subr.mxu0 0.0
    %3034 = vmatpush1.xpose.msra.mxu0 0.0
    %3035 = vmatprep.mubr.f32.mxu0 0.0
    %3036 = vmatmul.mubr.f32.gmra.mrb[0].mxu0 %v2966
    %v3037 = vpop.f32.mrb[0].mxu0
    %v3038 = vadd.f32 0.0, %v3037
    %v3039 = vpop.f32.mrb[0].mxu0
    %3040 = vdwg.mxu0
    %v3041 = vmul.f32 %v2506, 0.17677669
    %v3042 = vmul.f32 %v2582, 0.17677669
    %v3043 = vmul.f32 %v2658, 0.17677669
    %v3044 = vmul.f32 %v2734, 0.17677669
    %v3045 = vmul.f32 %v2810, 0.17677669
    %v3046 = vmul.f32 %v2886, 0.17677669
    %v3047 = vmul.f32 %v2962, 0.17677669
    %v3048 = vmul.f32 %v3038, 0.17677669
    %v3049 = vsel %vm2432, %v3041, -inf
    %3050 = vmax.xlane.f32.xlu0 %v3049
    %v3051 = vpop.xlane.xlu0 %3050
    %v3052 = vsel %vm2432, %v3042, -inf
    %3053 = vmax.xlane.f32.xlu0 %v3052
    %v3054 = vpop.xlane.xlu0 %3053
    %v3055 = vsel %vm2432, %v3043, -inf
    %3056 = vmax.xlane.f32.xlu0 %v3055
    %v3057 = vpop.xlane.xlu0 %3056
    %v3058 = vsel %vm2432, %v3044, -inf
    %3059 = vmax.xlane.f32.xlu0 %v3058
    %v3060 = vpop.xlane.xlu0 %3059
    %v3061 = vsel %vm2432, %v3045, -inf
    %3062 = vmax.xlane.f32.xlu0 %v3061
    %v3063 = vpop.xlane.xlu0 %3062
    %v3064 = vsel %vm2432, %v3046, -inf
    %3065 = vmax.xlane.f32.xlu0 %v3064
    %v3066 = vpop.xlane.xlu0 %3065
    %v3067 = vsel %vm2432, %v3047, -inf
    %3068 = vmax.xlane.f32.xlu0 %v3067
    %v3069 = vpop.xlane.xlu0 %3068
    %v3070 = vsel %vm2432, %v3048, -inf
    %3071 = vmax.xlane.f32.xlu0 %v3070
    %v3072 = vpop.xlane.xlu0 %3071
    %v3073 = vsub.f32 %v3041, %v3051
    %v3074 = vsub.f32 %v3042, %v3054
    %v3075 = vsub.f32 %v3043, %v3057
    %v3076 = vsub.f32 %v3044, %v3060
    %v3077 = vsub.f32 %v3045, %v3063
    %v3078 = vsub.f32 %v3046, %v3066
    %v3079 = vsub.f32 %v3047, %v3069
    %v3080 = vsub.f32 %v3048, %v3072
    %v3081 = vmul.f32 %v3073, 1.442695
    %v3082 = vpow.pop %v3081
    %v3083 = vmul.f32 %v3074, 1.442695
    %v3084 = vpow.pop %v3083
    %v3085 = vmul.f32 %v3075, 1.442695
    %v3086 = vpow.pop %v3085
    %v3087 = vmul.f32 %v3076, 1.442695
    %v3088 = vpow.pop %v3087
    %v3089 = vmul.f32 %v3077, 1.442695
    %v3090 = vpow.pop %v3089
    %v3091 = vmul.f32 %v3078, 1.442695
    %v3092 = vpow.pop %v3091
    %v3093 = vmul.f32 %v3079, 1.442695
    %v3094 = vpow.pop %v3093
    %v3095 = vmul.f32 %v3080, 1.442695
    %v3096 = vpow.pop %v3095
    %v3097 = vsel %vm2432, %v3082, 0.0
    %3098 = vadd.xlane.f32.xlu0 %v3097
    %v3099 = vpop.xlane.xlu0 %3098
    %v3100 = vsel %vm2432, %v3084, 0.0
    %3101 = vadd.xlane.f32.xlu0 %v3100
    %v3102 = vpop.xlane.xlu0 %3101
    %v3103 = vsel %vm2432, %v3086, 0.0
    %3104 = vadd.xlane.f32.xlu0 %v3103
    %v3105 = vpop.xlane.xlu0 %3104
    %v3106 = vsel %vm2432, %v3088, 0.0
    %3107 = vadd.xlane.f32.xlu0 %v3106
    %v3108 = vpop.xlane.xlu0 %3107
    %v3109 = vsel %vm2432, %v3090, 0.0
    %3110 = vadd.xlane.f32.xlu0 %v3109
    %v3111 = vpop.xlane.xlu0 %3110
    %v3112 = vsel %vm2432, %v3092, 0.0
    %3113 = vadd.xlane.f32.xlu0 %v3112
    %v3114 = vpop.xlane.xlu0 %3113
    %v3115 = vsel %vm2432, %v3094, 0.0
    %3116 = vadd.xlane.f32.xlu0 %v3115
    %v3117 = vpop.xlane.xlu0 %3116
    %v3118 = vsel %vm2432, %v3096, 0.0
    %3119 = vadd.xlane.f32.xlu0 %v3118
    %v3120 = vpop.xlane.xlu0 %3119
    %v3121 = vrcp.pop %v3099
    %v3122 = vmul.f32 %v3082, %v3121
    %v3123 = vrcp.pop %v3102
    %v3124 = vmul.f32 %v3084, %v3123
    %v3125 = vrcp.pop %v3105
    %v3126 = vmul.f32 %v3086, %v3125
    %v3127 = vrcp.pop %v3108
    %v3128 = vmul.f32 %v3088, %v3127
    %v3129 = vrcp.pop %v3111
    %v3130 = vmul.f32 %v3090, %v3129
    %v3131 = vrcp.pop %v3114
    %v3132 = vmul.f32 %v3092, %v3131
    %v3133 = vrcp.pop %v3117
    %v3134 = vmul.f32 %v3094, %v3133
    %v3135 = vrcp.pop %v3120
    %v3136 = vmul.f32 %v3096, %v3135
    %v3138 = vsel %vm2432, %v3122, 0
    %3140 = vmatprep.subr.mxu0 0.0
    %3141 = vmatpush1.msra.mxu0 %v1939
    %3142 = vmatprep.subr.mxu0 0.0
    %3143 = vmatpush1.msra.mxu0 0.0
    %3144 = vmatprep.subr.mxu0 0.0
    %3145 = vmatpush1.msra.mxu0 0.0
    %3146 = vmatprep.subr.mxu0 0.0
    %3147 = vmatpush1.msra.mxu0 0.0
    %3148 = vmatprep.subr.mxu0 0.0
    %3149 = vmatpush1.msra.mxu0 0.0
    %3150 = vmatprep.subr.mxu0 0.0
    %3151 = vmatpush1.msra.mxu0 0.0
    %3152 = vmatprep.subr.mxu0 0.0
    %3153 = vmatpush1.msra.mxu0 0.0
    %3154 = vmatprep.subr.mxu0 0.0
    %3155 = vmatpush1.msra.mxu0 0.0
    %3156 = vmatprep.subr.mxu0 0.0
    %3157 = vmatpush1.msra.mxu0 0.0
    %3158 = vmatprep.subr.mxu0 0.0
    %3159 = vmatpush1.msra.mxu0 0.0
    %3160 = vmatprep.subr.mxu0 0.0
    %3161 = vmatpush1.msra.mxu0 0.0
    %3162 = vmatprep.subr.mxu0 0.0
    %3163 = vmatpush1.msra.mxu0 0.0
    %3164 = vmatprep.subr.mxu0 0.0
    %3165 = vmatpush1.msra.mxu0 0.0
    %3166 = vmatprep.subr.mxu0 0.0
    %3167 = vmatpush1.msra.mxu0 0.0
    %3168 = vmatprep.subr.mxu0 0.0
    %3169 = vmatpush1.msra.mxu0 0.0
    %3170 = vmatprep.subr.mxu0 0.0
    %3171 = vmatpush1.msra.mxu0 0.0
    %3172 = vmatprep.subr.mxu0 0.0
    %3173 = vmatpush1.msra.mxu0 0.0
    %3174 = vmatprep.subr.mxu0 0.0
    %3175 = vmatpush1.msra.mxu0 0.0
    %3176 = vmatprep.subr.mxu0 0.0
    %3177 = vmatpush1.msra.mxu0 0.0
    %3178 = vmatprep.subr.mxu0 0.0
    %3179 = vmatpush1.msra.mxu0 0.0
    %3180 = vmatprep.subr.mxu0 0.0
    %3181 = vmatpush1.msra.mxu0 0.0
    %3182 = vmatprep.subr.mxu0 0.0
    %3183 = vmatpush1.msra.mxu0 0.0
    %3184 = vmatprep.subr.mxu0 0.0
    %3185 = vmatpush1.msra.mxu0 0.0
    %3186 = vmatprep.subr.mxu0 0.0
    %3187 = vmatpush1.msra.mxu0 0.0
    %3188 = vmatprep.subr.mxu0 0.0
    %3189 = vmatpush1.msra.mxu0 0.0
    %3190 = vmatprep.subr.mxu0 0.0
    %3191 = vmatpush1.msra.mxu0 0.0
    %3192 = vmatprep.subr.mxu0 0.0
    %3193 = vmatpush1.msra.mxu0 0.0
    %3194 = vmatprep.subr.mxu0 0.0
    %3195 = vmatpush1.msra.mxu0 0.0
    %3196 = vmatprep.subr.mxu0 0.0
    %3197 = vmatpush1.msra.mxu0 0.0
    %3198 = vmatprep.subr.mxu0 0.0
    %3199 = vmatpush1.msra.mxu0 0.0
    %3200 = vmatprep.subr.mxu0 0.0
    %3201 = vmatpush1.msra.mxu0 0.0
    %3202 = vmatprep.subr.mxu0 0.0
    %3203 = vmatpush1.msra.mxu0 0.0
    %3204 = vmatprep.mubr.f32.mxu0 0.0
    %3205 = vmatmul.mubr.f32.gmra.mrb[0].mxu0 %v3138
    %v3206 = vpop.f32.mrb[0].mxu0
    %v3207 = vadd.f32 0.0, %v3206
    %v3208 = vpop.f32.mrb[0].mxu0
    %3209 = vdwg.mxu0
    %v3211 = vsel %vm2432, %v3124, 0
    %3213 = vmatprep.subr.mxu0 0.0
    %3214 = vmatpush1.msra.mxu0 %v2009
    %3215 = vmatprep.subr.mxu0 0.0
    %3216 = vmatpush1.msra.mxu0 0.0
    %3217 = vmatprep.subr.mxu0 0.0
    %3218 = vmatpush1.msra.mxu0 0.0
    %3219 = vmatprep.subr.mxu0 0.0
    %3220 = vmatpush1.msra.mxu0 0.0
    %3221 = vmatprep.subr.mxu0 0.0
    %3222 = vmatpush1.msra.mxu0 0.0
    %3223 = vmatprep.subr.mxu0 0.0
    %3224 = vmatpush1.msra.mxu0 0.0
    %3225 = vmatprep.subr.mxu0 0.0
    %3226 = vmatpush1.msra.mxu0 0.0
    %3227 = vmatprep.subr.mxu0 0.0
    %3228 = vmatpush1.msra.mxu0 0.0
    %3229 = vmatprep.subr.mxu0 0.0
    %3230 = vmatpush1.msra.mxu0 0.0
    %3231 = vmatprep.subr.mxu0 0.0
    %3232 = vmatpush1.msra.mxu0 0.0
    %3233 = vmatprep.subr.mxu0 0.0
    %3234 = vmatpush1.msra.mxu0 0.0
    %3235 = vmatprep.subr.mxu0 0.0
    %3236 = vmatpush1.msra.mxu0 0.0
    %3237 = vmatprep.subr.mxu0 0.0
    %3238 = vmatpush1.msra.mxu0 0.0
    %3239 = vmatprep.subr.mxu0 0.0
    %3240 = vmatpush1.msra.mxu0 0.0
    %3241 = vmatprep.subr.mxu0 0.0
    %3242 = vmatpush1.msra.mxu0 0.0
    %3243 = vmatprep.subr.mxu0 0.0
    %3244 = vmatpush1.msra.mxu0 0.0
    %3245 = vmatprep.subr.mxu0 0.0
    %3246 = vmatpush1.msra.mxu0 0.0
    %3247 = vmatprep.subr.mxu0 0.0
    %3248 = vmatpush1.msra.mxu0 0.0
    %3249 = vmatprep.subr.mxu0 0.0
    %3250 = vmatpush1.msra.mxu0 0.0
    %3251 = vmatprep.subr.mxu0 0.0
    %3252 = vmatpush1.msra.mxu0 0.0
    %3253 = vmatprep.subr.mxu0 0.0
    %3254 = vmatpush1.msra.mxu0 0.0
    %3255 = vmatprep.subr.mxu0 0.0
    %3256 = vmatpush1.msra.mxu0 0.0
    %3257 = vmatprep.subr.mxu0 0.0
    %3258 = vmatpush1.msra.mxu0 0.0
    %3259 = vmatprep.subr.mxu0 0.0
    %3260 = vmatpush1.msra.mxu0 0.0
    %3261 = vmatprep.subr.mxu0 0.0
    %3262 = vmatpush1.msra.mxu0 0.0
    %3263 = vmatprep.subr.mxu0 0.0
    %3264 = vmatpush1.msra.mxu0 0.0
    %3265 = vmatprep.subr.mxu0 0.0
    %3266 = vmatpush1.msra.mxu0 0.0
    %3267 = vmatprep.subr.mxu0 0.0
    %3268 = vmatpush1.msra.mxu0 0.0
    %3269 = vmatprep.subr.mxu0 0.0
    %3270 = vmatpush1.msra.mxu0 0.0
    %3271 = vmatprep.subr.mxu0 0.0
    %3272 = vmatpush1.msra.mxu0 0.0
    %3273 = vmatprep.subr.mxu0 0.0
    %3274 = vmatpush1.msra.mxu0 0.0
    %3275 = vmatprep.subr.mxu0 0.0
    %3276 = vmatpush1.msra.mxu0 0.0
    %3277 = vmatprep.mubr.f32.mxu0 0.0
    %3278 = vmatmul.mubr.f32.gmra.mrb[0].mxu0 %v3211
    %v3279 = vpop.f32.mrb[0].mxu0
    %v3280 = vadd.f32 0.0, %v3279
    %v3281 = vpop.f32.mrb[0].mxu0
    %3282 = vdwg.mxu0
    %v3284 = vsel %vm2432, %v3126, 0
    %3286 = vmatprep.subr.mxu0 0.0
    %3287 = vmatpush1.msra.mxu0 %v2079
    %3288 = vmatprep.subr.mxu0 0.0
    %3289 = vmatpush1.msra.mxu0 0.0
    %3290 = vmatprep.subr.mxu0 0.0
    %3291 = vmatpush1.msra.mxu0 0.0
    %3292 = vmatprep.subr.mxu0 0.0
    %3293 = vmatpush1.msra.mxu0 0.0
    %3294 = vmatprep.subr.mxu0 0.0
    %3295 = vmatpush1.msra.mxu0 0.0
    %3296 = vmatprep.subr.mxu0 0.0
    %3297 = vmatpush1.msra.mxu0 0.0
    %3298 = vmatprep.subr.mxu0 0.0
    %3299 = vmatpush1.msra.mxu0 0.0
    %3300 = vmatprep.subr.mxu0 0.0
    %3301 = vmatpush1.msra.mxu0 0.0
    %3302 = vmatprep.subr.mxu0 0.0
    %3303 = vmatpush1.msra.mxu0 0.0
    %3304 = vmatprep.subr.mxu0 0.0
    %3305 = vmatpush1.msra.mxu0 0.0
    %3306 = vmatprep.subr.mxu0 0.0
    %3307 = vmatpush1.msra.mxu0 0.0
    %3308 = vmatprep.subr.mxu0 0.0
    %3309 = vmatpush1.msra.mxu0 0.0
    %3310 = vmatprep.subr.mxu0 0.0
    %3311 = vmatpush1.msra.mxu0 0.0
    %3312 = vmatprep.subr.mxu0 0.0
    %3313 = vmatpush1.msra.mxu0 0.0
    %3314 = vmatprep.subr.mxu0 0.0
    %3315 = vmatpush1.msra.mxu0 0.0
    %3316 = vmatprep.subr.mxu0 0.0
    %3317 = vmatpush1.msra.mxu0 0.0
    %3318 = vmatprep.subr.mxu0 0.0
    %3319 = vmatpush1.msra.mxu0 0.0
    %3320 = vmatprep.subr.mxu0 0.0
    %3321 = vmatpush1.msra.mxu0 0.0
    %3322 = vmatprep.subr.mxu0 0.0
    %3323 = vmatpush1.msra.mxu0 0.0
    %3324 = vmatprep.subr.mxu0 0.0
    %3325 = vmatpush1.msra.mxu0 0.0
    %3326 = vmatprep.subr.mxu0 0.0
    %3327 = vmatpush1.msra.mxu0 0.0
    %3328 = vmatprep.subr.mxu0 0.0
    %3329 = vmatpush1.msra.mxu0 0.0
    %3330 = vmatprep.subr.mxu0 0.0
    %3331 = vmatpush1.msra.mxu0 0.0
    %3332 = vmatprep.subr.mxu0 0.0
    %3333 = vmatpush1.msra.mxu0 0.0
    %3334 = vmatprep.subr.mxu0 0.0
    %3335 = vmatpush1.msra.mxu0 0.0
    %3336 = vmatprep.subr.mxu0 0.0
    %3337 = vmatpush1.msra.mxu0 0.0
    %3338 = vmatprep.subr.mxu0 0.0
    %3339 = vmatpush1.msra.mxu0 0.0
    %3340 = vmatprep.subr.mxu0 0.0
    %3341 = vmatpush1.msra.mxu0 0.0
    %3342 = vmatprep.subr.mxu0 0.0
    %3343 = vmatpush1.msra.mxu0 0.0
    %3344 = vmatprep.subr.mxu0 0.0
    %3345 = vmatpush1.msra.mxu0 0.0
    %3346 = vmatprep.subr.mxu0 0.0
    %3347 = vmatpush1.msra.mxu0 0.0
    %3348 = vmatprep.subr.mxu0 0.0
    %3349 = vmatpush1.msra.mxu0 0.0
    %3350 = vmatprep.mubr.f32.mxu0 0.0
    %3351 = vmatmul.mubr.f32.gmra.mrb[0].mxu0 %v3284
    %v3352 = vpop.f32.mrb[0].mxu0
    %v3353 = vadd.f32 0.0, %v3352
    %v3354 = vpop.f32.mrb[0].mxu0
    %3355 = vdwg.mxu0
    %v3357 = vsel %vm2432, %v3128, 0
    %3359 = vmatprep.subr.mxu0 0.0
    %3360 = vmatpush1.msra.mxu0 %v2149
    %3361 = vmatprep.subr.mxu0 0.0
    %3362 = vmatpush1.msra.mxu0 0.0
    %3363 = vmatprep.subr.mxu0 0.0
    %3364 = vmatpush1.msra.mxu0 0.0
    %3365 = vmatprep.subr.mxu0 0.0
    %3366 = vmatpush1.msra.mxu0 0.0
    %3367 = vmatprep.subr.mxu0 0.0
    %3368 = vmatpush1.msra.mxu0 0.0
    %3369 = vmatprep.subr.mxu0 0.0
    %3370 = vmatpush1.msra.mxu0 0.0
    %3371 = vmatprep.subr.mxu0 0.0
    %3372 = vmatpush1.msra.mxu0 0.0
    %3373 = vmatprep.subr.mxu0 0.0
    %3374 = vmatpush1.msra.mxu0 0.0
    %3375 = vmatprep.subr.mxu0 0.0
    %3376 = vmatpush1.msra.mxu0 0.0
    %3377 = vmatprep.subr.mxu0 0.0
    %3378 = vmatpush1.msra.mxu0 0.0
    %3379 = vmatprep.subr.mxu0 0.0
    %3380 = vmatpush1.msra.mxu0 0.0
    %3381 = vmatprep.subr.mxu0 0.0
    %3382 = vmatpush1.msra.mxu0 0.0
    %3383 = vmatprep.subr.mxu0 0.0
    %3384 = vmatpush1.msra.mxu0 0.0
    %3385 = vmatprep.subr.mxu0 0.0
    %3386 = vmatpush1.msra.mxu0 0.0
    %3387 = vmatprep.subr.mxu0 0.0
    %3388 = vmatpush1.msra.mxu0 0.0
    %3389 = vmatprep.subr.mxu0 0.0
    %3390 = vmatpush1.msra.mxu0 0.0
    %3391 = vmatprep.subr.mxu0 0.0
    %3392 = vmatpush1.msra.mxu0 0.0
    %3393 = vmatprep.subr.mxu0 0.0
    %3394 = vmatpush1.msra.mxu0 0.0
    %3395 = vmatprep.subr.mxu0 0.0
    %3396 = vmatpush1.msra.mxu0 0.0
    %3397 = vmatprep.subr.mxu0 0.0
    %3398 = vmatpush1.msra.mxu0 0.0
    %3399 = vmatprep.subr.mxu0 0.0
    %3400 = vmatpush1.msra.mxu0 0.0
    %3401 = vmatprep.subr.mxu0 0.0
    %3402 = vmatpush1.msra.mxu0 0.0
    %3403 = vmatprep.subr.mxu0 0.0
    %3404 = vmatpush1.msra.mxu0 0.0
    %3405 = vmatprep.subr.mxu0 0.0
    %3406 = vmatpush1.msra.mxu0 0.0
    %3407 = vmatprep.subr.mxu0 0.0
    %3408 = vmatpush1.msra.mxu0 0.0
    %3409 = vmatprep.subr.mxu0 0.0
    %3410 = vmatpush1.msra.mxu0 0.0
    %3411 = vmatprep.subr.mxu0 0.0
    %3412 = vmatpush1.msra.mxu0 0.0
    %3413 = vmatprep.subr.mxu0 0.0
    %3414 = vmatpush1.msra.mxu0 0.0
    %3415 = vmatprep.subr.mxu0 0.0
    %3416 = vmatpush1.msra.mxu0 0.0
    %3417 = vmatprep.subr.mxu0 0.0
    %3418 = vmatpush1.msra.mxu0 0.0
    %3419 = vmatprep.subr.mxu0 0.0
    %3420 = vmatpush1.msra.mxu0 0.0
    %3421 = vmatprep.subr.mxu0 0.0
    %3422 = vmatpush1.msra.mxu0 0.0
    %3423 = vmatprep.mubr.f32.mxu0 0.0
    %3424 = vmatmul.mubr.f32.gmra.mrb[0].mxu0 %v3357
    %v3425 = vpop.f32.mrb[0].mxu0
    %v3426 = vadd.f32 0.0, %v3425
    %v3427 = vpop.f32.mrb[0].mxu0
    %3428 = vdwg.mxu0
    %v3430 = vsel %vm2432, %v3130, 0
    %3432 = vmatprep.subr.mxu0 0.0
    %3433 = vmatpush1.msra.mxu0 %v2219
    %3434 = vmatprep.subr.mxu0 0.0
    %3435 = vmatpush1.msra.mxu0 0.0
    %3436 = vmatprep.subr.mxu0 0.0
    %3437 = vmatpush1.msra.mxu0 0.0
    %3438 = vmatprep.subr.mxu0 0.0
    %3439 = vmatpush1.msra.mxu0 0.0
    %3440 = vmatprep.subr.mxu0 0.0
    %3441 = vmatpush1.msra.mxu0 0.0
    %3442 = vmatprep.subr.mxu0 0.0
    %3443 = vmatpush1.msra.mxu0 0.0
    %3444 = vmatprep.subr.mxu0 0.0
    %3445 = vmatpush1.msra.mxu0 0.0
    %3446 = vmatprep.subr.mxu0 0.0
    %3447 = vmatpush1.msra.mxu0 0.0
    %3448 = vmatprep.subr.mxu0 0.0
    %3449 = vmatpush1.msra.mxu0 0.0
    %3450 = vmatprep.subr.mxu0 0.0
    %3451 = vmatpush1.msra.mxu0 0.0
    %3452 = vmatprep.subr.mxu0 0.0
    %3453 = vmatpush1.msra.mxu0 0.0
    %3454 = vmatprep.subr.mxu0 0.0
    %3455 = vmatpush1.msra.mxu0 0.0
    %3456 = vmatprep.subr.mxu0 0.0
    %3457 = vmatpush1.msra.mxu0 0.0
    %3458 = vmatprep.subr.mxu0 0.0
    %3459 = vmatpush1.msra.mxu0 0.0
    %3460 = vmatprep.subr.mxu0 0.0
    %3461 = vmatpush1.msra.mxu0 0.0
    %3462 = vmatprep.subr.mxu0 0.0
    %3463 = vmatpush1.msra.mxu0 0.0
    %3464 = vmatprep.subr.mxu0 0.0
    %3465 = vmatpush1.msra.mxu0 0.0
    %3466 = vmatprep.subr.mxu0 0.0
    %3467 = vmatpush1.msra.mxu0 0.0
    %3468 = vmatprep.subr.mxu0 0.0
    %3469 = vmatpush1.msra.mxu0 0.0
    %3470 = vmatprep.subr.mxu0 0.0
    %3471 = vmatpush1.msra.mxu0 0.0
    %3472 = vmatprep.subr.mxu0 0.0
    %3473 = vmatpush1.msra.mxu0 0.0
    %3474 = vmatprep.subr.mxu0 0.0
    %3475 = vmatpush1.msra.mxu0 0.0
    %3476 = vmatprep.subr.mxu0 0.0
    %3477 = vmatpush1.msra.mxu0 0.0
    %3478 = vmatprep.subr.mxu0 0.0
    %3479 = vmatpush1.msra.mxu0 0.0
    %3480 = vmatprep.subr.mxu0 0.0
    %3481 = vmatpush1.msra.mxu0 0.0
    %3482 = vmatprep.subr.mxu0 0.0
    %3483 = vmatpush1.msra.mxu0 0.0
    %3484 = vmatprep.subr.mxu0 0.0
    %3485 = vmatpush1.msra.mxu0 0.0
    %3486 = vmatprep.subr.mxu0 0.0
    %3487 = vmatpush1.msra.mxu0 0.0
    %3488 = vmatprep.subr.mxu0 0.0
    %3489 = vmatpush1.msra.mxu0 0.0
    %3490 = vmatprep.subr.mxu0 0.0
    %3491 = vmatpush1.msra.mxu0 0.0
    %3492 = vmatprep.subr.mxu0 0.0
    %3493 = vmatpush1.msra.mxu0 0.0
    %3494 = vmatprep.subr.mxu0 0.0
    %3495 = vmatpush1.msra.mxu0 0.0
    %3496 = vmatprep.mubr.f32.mxu0 0.0
    %3497 = vmatmul.mubr.f32.gmra.mrb[0].mxu0 %v3430
    %v3498 = vpop.f32.mrb[0].mxu0
    %v3499 = vadd.f32 0.0, %v3498
    %v3500 = vpop.f32.mrb[0].mxu0
    %3501 = vdwg.mxu0
    %v3503 = vsel %vm2432, %v3132, 0
    %3505 = vmatprep.subr.mxu0 0.0
    %3506 = vmatpush1.msra.mxu0 %v2289
    %3507 = vmatprep.subr.mxu0 0.0
    %3508 = vmatpush1.msra.mxu0 0.0
    %3509 = vmatprep.subr.mxu0 0.0
    %3510 = vmatpush1.msra.mxu0 0.0
    %3511 = vmatprep.subr.mxu0 0.0
    %3512 = vmatpush1.msra.mxu0 0.0
    %3513 = vmatprep.subr.mxu0 0.0
    %3514 = vmatpush1.msra.mxu0 0.0
    %3515 = vmatprep.subr.mxu0 0.0
    %3516 = vmatpush1.msra.mxu0 0.0
    %3517 = vmatprep.subr.mxu0 0.0
    %3518 = vmatpush1.msra.mxu0 0.0
    %3519 = vmatprep.subr.mxu0 0.0
    %3520 = vmatpush1.msra.mxu0 0.0
    %3521 = vmatprep.subr.mxu0 0.0
    %3522 = vmatpush1.msra.mxu0 0.0
    %3523 = vmatprep.subr.mxu0 0.0
    %3524 = vmatpush1.msra.mxu0 0.0
    %3525 = vmatprep.subr.mxu0 0.0
    %3526 = vmatpush1.msra.mxu0 0.0
    %3527 = vmatprep.subr.mxu0 0.0
    %3528 = vmatpush1.msra.mxu0 0.0
    %3529 = vmatprep.subr.mxu0 0.0
    %3530 = vmatpush1.msra.mxu0 0.0
    %3531 = vmatprep.subr.mxu0 0.0
    %3532 = vmatpush1.msra.mxu0 0.0
    %3533 = vmatprep.subr.mxu0 0.0
    %3534 = vmatpush1.msra.mxu0 0.0
    %3535 = vmatprep.subr.mxu0 0.0
    %3536 = vmatpush1.msra.mxu0 0.0
    %3537 = vmatprep.subr.mxu0 0.0
    %3538 = vmatpush1.msra.mxu0 0.0
    %3539 = vmatprep.subr.mxu0 0.0
    %3540 = vmatpush1.msra.mxu0 0.0
    %3541 = vmatprep.subr.mxu0 0.0
    %3542 = vmatpush1.msra.mxu0 0.0
    %3543 = vmatprep.subr.mxu0 0.0
    %3544 = vmatpush1.msra.mxu0 0.0
    %3545 = vmatprep.subr.mxu0 0.0
    %3546 = vmatpush1.msra.mxu0 0.0
    %3547 = vmatprep.subr.mxu0 0.0
    %3548 = vmatpush1.msra.mxu0 0.0
    %3549 = vmatprep.subr.mxu0 0.0
    %3550 = vmatpush1.msra.mxu0 0.0
    %3551 = vmatprep.subr.mxu0 0.0
    %3552 = vmatpush1.msra.mxu0 0.0
    %3553 = vmatprep.subr.mxu0 0.0
    %3554 = vmatpush1.msra.mxu0 0.0
    %3555 = vmatprep.subr.mxu0 0.0
    %3556 = vmatpush1.msra.mxu0 0.0
    %3557 = vmatprep.subr.mxu0 0.0
    %3558 = vmatpush1.msra.mxu0 0.0
    %3559 = vmatprep.subr.mxu0 0.0
    %3560 = vmatpush1.msra.mxu0 0.0
    %3561 = vmatprep.subr.mxu0 0.0
    %3562 = vmatpush1.msra.mxu0 0.0
    %3563 = vmatprep.subr.mxu0 0.0
    %3564 = vmatpush1.msra.mxu0 0.0
    %3565 = vmatprep.subr.mxu0 0.0
    %3566 = vmatpush1.msra.mxu0 0.0
    %3567 = vmatprep.subr.mxu0 0.0
    %3568 = vmatpush1.msra.mxu0 0.0
    %3569 = vmatprep.mubr.f32.mxu0 0.0
    %3570 = vmatmul.mubr.f32.gmra.mrb[0].mxu0 %v3503
    %v3571 = vpop.f32.mrb[0].mxu0
    %v3572 = vadd.f32 0.0, %v3571
    %v3573 = vpop.f32.mrb[0].mxu0
    %3574 = vdwg.mxu0
    %v3576 = vsel %vm2432, %v3134, 0
    %3578 = vmatprep.subr.mxu0 0.0
    %3579 = vmatpush1.msra.mxu0 %v2359
    %3580 = vmatprep.subr.mxu0 0.0
    %3581 = vmatpush1.msra.mxu0 0.0
    %3582 = vmatprep.subr.mxu0 0.0
    %3583 = vmatpush1.msra.mxu0 0.0
    %3584 = vmatprep.subr.mxu0 0.0
    %3585 = vmatpush1.msra.mxu0 0.0
    %3586 = vmatprep.subr.mxu0 0.0
    %3587 = vmatpush1.msra.mxu0 0.0
    %3588 = vmatprep.subr.mxu0 0.0
    %3589 = vmatpush1.msra.mxu0 0.0
    %3590 = vmatprep.subr.mxu0 0.0
    %3591 = vmatpush1.msra.mxu0 0.0
    %3592 = vmatprep.subr.mxu0 0.0
    %3593 = vmatpush1.msra.mxu0 0.0
    %3594 = vmatprep.subr.mxu0 0.0
    %3595 = vmatpush1.msra.mxu0 0.0
    %3596 = vmatprep.subr.mxu0 0.0
    %3597 = vmatpush1.msra.mxu0 0.0
    %3598 = vmatprep.subr.mxu0 0.0
    %3599 = vmatpush1.msra.mxu0 0.0
    %3600 = vmatprep.subr.mxu0 0.0
    %3601 = vmatpush1.msra.mxu0 0.0
    %3602 = vmatprep.subr.mxu0 0.0
    %3603 = vmatpush1.msra.mxu0 0.0
    %3604 = vmatprep.subr.mxu0 0.0
    %3605 = vmatpush1.msra.mxu0 0.0
    %3606 = vmatprep.subr.mxu0 0.0
    %3607 = vmatpush1.msra.mxu0 0.0
    %3608 = vmatprep.subr.mxu0 0.0
    %3609 = vmatpush1.msra.mxu0 0.0
    %3610 = vmatprep.subr.mxu0 0.0
    %3611 = vmatpush1.msra.mxu0 0.0
    %3612 = vmatprep.subr.mxu0 0.0
    %3613 = vmatpush1.msra.mxu0 0.0
    %3614 = vmatprep.subr.mxu0 0.0
    %3615 = vmatpush1.msra.mxu0 0.0
    %3616 = vmatprep.subr.mxu0 0.0
    %3617 = vmatpush1.msra.mxu0 0.0
    %3618 = vmatprep.subr.mxu0 0.0
    %3619 = vmatpush1.msra.mxu0 0.0
    %3620 = vmatprep.subr.mxu0 0.0
    %3621 = vmatpush1.msra.mxu0 0.0
    %3622 = vmatprep.subr.mxu0 0.0
    %3623 = vmatpush1.msra.mxu0 0.0
    %3624 = vmatprep.subr.mxu0 0.0
    %3625 = vmatpush1.msra.mxu0 0.0
    %3626 = vmatprep.subr.mxu0 0.0
    %3627 = vmatpush1.msra.mxu0 0.0
    %3628 = vmatprep.subr.mxu0 0.0
    %3629 = vmatpush1.msra.mxu0 0.0
    %3630 = vmatprep.subr.mxu0 0.0
    %3631 = vmatpush1.msra.mxu0 0.0
    %3632 = vmatprep.subr.mxu0 0.0
    %3633 = vmatpush1.msra.mxu0 0.0
    %3634 = vmatprep.subr.mxu0 0.0
    %3635 = vmatpush1.msra.mxu0 0.0
    %3636 = vmatprep.subr.mxu0 0.0
    %3637 = vmatpush1.msra.mxu0 0.0
    %3638 = vmatprep.subr.mxu0 0.0
    %3639 = vmatpush1.msra.mxu0 0.0
    %3640 = vmatprep.subr.mxu0 0.0
    %3641 = vmatpush1.msra.mxu0 0.0
    %3642 = vmatprep.mubr.f32.mxu0 0.0
    %3643 = vmatmul.mubr.f32.gmra.mrb[0].mxu0 %v3576
    %v3644 = vpop.f32.mrb[0].mxu0
    %v3645 = vadd.f32 0.0, %v3644
    %v3646 = vpop.f32.mrb[0].mxu0
    %3647 = vdwg.mxu0
    %v3649 = vsel %vm2432, %v3136, 0
    %3651 = vmatprep.subr.mxu0 0.0
    %3652 = vmatpush1.msra.mxu0 %v2429
    %3653 = vmatprep.subr.mxu0 0.0
    %3654 = vmatpush1.msra.mxu0 0.0
    %3655 = vmatprep.subr.mxu0 0.0
    %3656 = vmatpush1.msra.mxu0 0.0
    %3657 = vmatprep.subr.mxu0 0.0
    %3658 = vmatpush1.msra.mxu0 0.0
    %3659 = vmatprep.subr.mxu0 0.0
    %3660 = vmatpush1.msra.mxu0 0.0
    %3661 = vmatprep.subr.mxu0 0.0
    %3662 = vmatpush1.msra.mxu0 0.0
    %3663 = vmatprep.subr.mxu0 0.0
    %3664 = vmatpush1.msra.mxu0 0.0
    %3665 = vmatprep.subr.mxu0 0.0
    %3666 = vmatpush1.msra.mxu0 0.0
    %3667 = vmatprep.subr.mxu0 0.0
    %3668 = vmatpush1.msra.mxu0 0.0
    %3669 = vmatprep.subr.mxu0 0.0
    %3670 = vmatpush1.msra.mxu0 0.0
    %3671 = vmatprep.subr.mxu0 0.0
    %3672 = vmatpush1.msra.mxu0 0.0
    %3673 = vmatprep.subr.mxu0 0.0
    %3674 = vmatpush1.msra.mxu0 0.0
    %3675 = vmatprep.subr.mxu0 0.0
    %3676 = vmatpush1.msra.mxu0 0.0
    %3677 = vmatprep.subr.mxu0 0.0
    %3678 = vmatpush1.msra.mxu0 0.0
    %3679 = vmatprep.subr.mxu0 0.0
    %3680 = vmatpush1.msra.mxu0 0.0
    %3681 = vmatprep.subr.mxu0 0.0
    %3682 = vmatpush1.msra.mxu0 0.0
    %3683 = vmatprep.subr.mxu0 0.0
    %3684 = vmatpush1.msra.mxu0 0.0
    %3685 = vmatprep.subr.mxu0 0.0
    %3686 = vmatpush1.msra.mxu0 0.0
    %3687 = vmatprep.subr.mxu0 0.0
    %3688 = vmatpush1.msra.mxu0 0.0
    %3689 = vmatprep.subr.mxu0 0.0
    %3690 = vmatpush1.msra.mxu0 0.0
    %3691 = vmatprep.subr.mxu0 0.0
    %3692 = vmatpush1.msra.mxu0 0.0
    %3693 = vmatprep.subr.mxu0 0.0
    %3694 = vmatpush1.msra.mxu0 0.0
    %3695 = vmatprep.subr.mxu0 0.0
    %3696 = vmatpush1.msra.mxu0 0.0
    %3697 = vmatprep.subr.mxu0 0.0
    %3698 = vmatpush1.msra.mxu0 0.0
    %3699 = vmatprep.subr.mxu0 0.0
    %3700 = vmatpush1.msra.mxu0 0.0
    %3701 = vmatprep.subr.mxu0 0.0
    %3702 = vmatpush1.msra.mxu0 0.0
    %3703 = vmatprep.subr.mxu0 0.0
    %3704 = vmatpush1.msra.mxu0 0.0
    %3705 = vmatprep.subr.mxu0 0.0
    %3706 = vmatpush1.msra.mxu0 0.0
    %3707 = vmatprep.subr.mxu0 0.0
    %3708 = vmatpush1.msra.mxu0 0.0
    %3709 = vmatprep.subr.mxu0 0.0
    %3710 = vmatpush1.msra.mxu0 0.0
    %3711 = vmatprep.subr.mxu0 0.0
    %3712 = vmatpush1.msra.mxu0 0.0
    %3713 = vmatprep.subr.mxu0 0.0
    %3714 = vmatpush1.msra.mxu0 0.0
    %3715 = vmatprep.mubr.f32.mxu0 0.0
    %3716 = vmatmul.mubr.f32.gmra.mrb[0].mxu0 %v3649
    %v3717 = vpop.f32.mrb[0].mxu0
    %v3718 = vadd.f32 0.0, %v3717
    %v3719 = vpop.f32.mrb[0].mxu0
    %3720 = vdwg.mxu0
    %3721 = vst.msk [vmem:[#allocation4] sm:$0xff] %vm2432, %v3207
    %3722 = vst.msk [vmem:[#allocation4 + $0x8] sm:$0xff] %vm2432, %v3499
    %3725 = vrot.lane.b32.xlu0 %v3280, 8
    %v3726 = vpop.permute.xlu0 %3725
    %3727 = vrot.lane.b32.xlu0 %v3572, 8
    %v3728 = vpop.permute.xlu0 %3727
    %vm3731 = vcmask 130112
    %3732 = vst.msk [vmem:[#allocation4] sm:$0xff] %vm3731, %v3726
    %3733 = vst.msk [vmem:[#allocation4 + $0x8] sm:$0xff] %vm3731, %v3728
    %3736 = vrot.lane.b32.xlu0 %v3353, 16
    %v3737 = vpop.permute.xlu0 %3736
    %3738 = vrot.lane.b32.xlu0 %v3645, 16
    %v3739 = vpop.permute.xlu0 %3738
    %vm3742 = vcmask 195712
    %3743 = vst.msk [vmem:[#allocation4] sm:$0xff] %vm3742, %v3737
    %3744 = vst.msk [vmem:[#allocation4 + $0x8] sm:$0xff] %vm3742, %v3739
    %3747 = vrot.lane.b32.xlu0 %v3426, 24
    %v3748 = vpop.permute.xlu0 %3747
    %3749 = vrot.lane.b32.xlu0 %v3718, 24
    %v3750 = vpop.permute.xlu0 %3749
    %vm3753 = vcmask 261312
    %3754 = vst.msk [vmem:[#allocation4] sm:$0xff] %vm3753, %v3748
    %3755 = vst.msk [vmem:[#allocation4 + $0x8] sm:$0xff] %vm3753, %v3750
    %v3756 = vld [vmem:[#allocation4] sm:$0xff]
    %v3757 = vld [vmem:[#allocation4 + $0x8] sm:$0xff]
    %v3758 = vld [vmem:[%s10] sm:$0x1]
    %v3759 = vld [vmem:[%s11] sm:$0x1]
    %v3760 = vsel %vm223, %v3756, 0.0
    %3761 = vadd.xlane.f32.xlu0 %v3760
    %v3762 = vpop.xlane.xlu0 %3761
    %v3763 = vsel %vm223, %v3757, 0.0
    %3764 = vadd.xlane.f32.xlu0 %v3763
    %v3765 = vpop.xlane.xlu0 %3764
    %v3766 = vrcp.pop 32.0
    %v3767 = vmul.f32 %v3762, %v3766
    %v3768 = vmul.f32 %v3765, %v3766
    %v3769 = vsub.f32 %v3756, %v3767
    %v3770 = vsub.f32 %v3757, %v3768
    %v3771 = vmul.f32 %v3769, %v3769
    %v3772 = vmul.f32 %v3770, %v3770
    %v3773 = vsel %vm223, %v3771, 0.0
    %3774 = vadd.xlane.f32.xlu0 %v3773
    %v3775 = vpop.xlane.xlu0 %3774
    %v3776 = vsel %vm223, %v3772, 0.0
    %3777 = vadd.xlane.f32.xlu0 %v3776
    %v3778 = vpop.xlane.xlu0 %3777
    %v3779 = vmul.f32 %v3775, %v3766
    %v3780 = vmul.f32 %v3778, %v3766
    %v3781 = vadd.f32 %v3779, 1e-05
    %v3782 = vadd.f32 %v3780, 1e-05
    %v3783 = vrsqrt.pop %v3781
    %v3784 = vrsqrt.pop %v3782
    %v3785 = vmul.f32 %v3769, %v3783
    %v3786 = vmul.f32 %v3770, %v3784
    %v3788 = vlaneseq
    %v3789 = vshrl.u32 %v3788, 7
    %v3790 = vsub.s32 0, %v3789
    %v3791 = vrot.slane %v3758, %v3790
    %v3793 = vmul.f32 %v3785, %v3791
    %v3794 = vmul.f32 %v3786, %v3791
    %v3796 = vlaneseq
    %v3797 = vshrl.u32 %v3796, 7
    %v3798 = vsub.s32 0, %v3797
    %v3799 = vrot.slane %v3759, %v3798
    %v3801 = vadd.f32 %v3793, %v3799
    %v3802 = vadd.f32 %v3794, %v3799
    %v3803 = vld [vmem:[%s12] sm:$0xff]
    %v3804 = vld [vmem:[%s12 + $0x8] sm:$0xff]
    %v3805 = vld [vmem:[%s12 + $0x10] sm:$0xff]
    %v3806 = vld [vmem:[%s12 + $0x18] sm:$0xff]
    %v3807 = vld [vmem:[%s13] sm:$0x1]
    %v3809 = vlaneseq
    %v3810 = vshrl.u32 %v3809, 7
    %v3811 = vsub.s32 0, %v3810
    %v3812 = vrot.slane %v3807, %v3811
    %v3815 = vsel %vm223, %v3801, 0
    %v3818 = vsel %vm223, %v3802, 0
    %3820 = vmatprep.subr.mxu0 0.0
    %3821 = vmatpush1.msra.mxu0 %v3803
    %3822 = vmatprep.subr.mxu0 0.0
    %3823 = vmatpush1.msra.mxu0 %v3804
    %3824 = vmatprep.subr.mxu0 0.0
    %3825 = vmatpush1.msra.mxu0 %v3805
    %3826 = vmatprep.subr.mxu0 0.0
    %3827 = vmatpush1.msra.mxu0 %v3806
    %3828 = vmatprep.subr.mxu0 0.0
    %3829 = vmatpush1.msra.mxu0 0.0
    %3830 = vmatprep.subr.mxu0 0.0
    %3831 = vmatpush1.msra.mxu0 0.0
    %3832 = vmatprep.subr.mxu0 0.0
    %3833 = vmatpush1.msra.mxu0 0.0
    %3834 = vmatprep.subr.mxu0 0.0
    %3835 = vmatpush1.msra.mxu0 0.0
    %3836 = vmatprep.subr.mxu0 0.0
    %3837 = vmatpush1.msra.mxu0 0.0
    %3838 = vmatprep.subr.mxu0 0.0
    %3839 = vmatpush1.msra.mxu0 0.0
    %3840 = vmatprep.subr.mxu0 0.0
    %3841 = vmatpush1.msra.mxu0 0.0
    %3842 = vmatprep.subr.mxu0 0.0
    %3843 = vmatpush1.msra.mxu0 0.0
    %3844 = vmatprep.subr.mxu0 0.0
    %3845 = vmatpush1.msra.mxu0 0.0
    %3846 = vmatprep.subr.mxu0 0.0
    %3847 = vmatpush1.msra.mxu0 0.0
    %3848 = vmatprep.subr.mxu0 0.0
    %3849 = vmatpush1.msra.mxu0 0.0
    %3850 = vmatprep.subr.mxu0 0.0
    %3851 = vmatpush1.msra.mxu0 0.0
    %3852 = vmatprep.subr.mxu0 0.0
    %3853 = vmatpush1.msra.mxu0 0.0
    %3854 = vmatprep.subr.mxu0 0.0
    %3855 = vmatpush1.msra.mxu0 0.0
    %3856 = vmatprep.subr.mxu0 0.0
    %3857 = vmatpush1.msra.mxu0 0.0
    %3858 = vmatprep.subr.mxu0 0.0
    %3859 = vmatpush1.msra.mxu0 0.0
    %3860 = vmatprep.subr.mxu0 0.0
    %3861 = vmatpush1.msra.mxu0 0.0
    %3862 = vmatprep.subr.mxu0 0.0
    %3863 = vmatpush1.msra.mxu0 0.0
    %3864 = vmatprep.subr.mxu0 0.0
    %3865 = vmatpush1.msra.mxu0 0.0
    %3866 = vmatprep.subr.mxu0 0.0
    %3867 = vmatpush1.msra.mxu0 0.0
    %3868 = vmatprep.subr.mxu0 0.0
    %3869 = vmatpush1.msra.mxu0 0.0
    %3870 = vmatprep.subr.mxu0 0.0
    %3871 = vmatpush1.msra.mxu0 0.0
    %3872 = vmatprep.subr.mxu0 0.0
    %3873 = vmatpush1.msra.mxu0 0.0
    %3874 = vmatprep.subr.mxu0 0.0
    %3875 = vmatpush1.msra.mxu0 0.0
    %3876 = vmatprep.subr.mxu0 0.0
    %3877 = vmatpush1.msra.mxu0 0.0
    %3878 = vmatprep.subr.mxu0 0.0
    %3879 = vmatpush1.msra.mxu0 0.0
    %3880 = vmatprep.subr.mxu0 0.0
    %3881 = vmatpush1.msra.mxu0 0.0
    %3882 = vmatprep.subr.mxu0 0.0
    %3883 = vmatpush1.msra.mxu0 0.0
    %3884 = vmatprep.mubr.f32.mxu0 0.0
    %3885 = vmatmul.mubr.f32.gmra.mrb[0].mxu0 %v3815
    %v3886 = vpop.f32.mrb[0].mxu0
    %v3887 = vadd.f32 %v3812, %v3886
    %v3888 = vpop.f32.mrb[0].mxu0
    %3889 = vmatprep.mubr.f32.mxu0 0.0
    %3890 = vmatmul.mubr.f32.gmra.mrb[0].mxu0 %v3818
    %v3891 = vpop.f32.mrb[0].mxu0
    %v3892 = vadd.f32 %v3812, %v3891
    %v3893 = vpop.f32.mrb[0].mxu0
    %3894 = vdwg.mxu0
    %v3895 = vmax.f32 %v3887, 0.0
    %v3896 = vmax.f32 %v3892, 0.0
    %v3897 = vld [vmem:[%s14] sm:$0xff]
    %v3898 = vld [vmem:[%s14 + $0x8] sm:$0xff]
    %v3899 = vld [vmem:[%s14 + $0x10] sm:$0xff]
    %v3900 = vld [vmem:[%s14 + $0x18] sm:$0xff]
    %v3901 = vld [vmem:[%s14 + $0x20] sm:$0xff]
    %v3902 = vld [vmem:[%s14 + $0x28] sm:$0xff]
    %v3903 = vld [vmem:[%s14 + $0x30] sm:$0xff]
    %v3904 = vld [vmem:[%s14 + $0x38] sm:$0xff]
    %v3905 = vld [vmem:[%s15] sm:$0x1]
    %v3907 = vlaneseq
    %v3908 = vshrl.u32 %v3907, 7
    %v3909 = vsub.s32 0, %v3908
    %v3910 = vrot.slane %v3905, %v3909
    %vm3912 = vcmask 523264
    %v3914 = vsel %vm3912, %v3895, 0
    %v3917 = vsel %vm3912, %v3896, 0
    %3919 = vmatprep.subr.mxu0 0.0
    %3920 = vmatpush1.msra.mxu0 %v3897
    %3921 = vmatprep.subr.mxu0 0.0
    %3922 = vmatpush1.msra.mxu0 %v3898
    %3923 = vmatprep.subr.mxu0 0.0
    %3924 = vmatpush1.msra.mxu0 %v3899
    %3925 = vmatprep.subr.mxu0 0.0
    %3926 = vmatpush1.msra.mxu0 %v3900
    %3927 = vmatprep.subr.mxu0 0.0
    %3928 = vmatpush1.msra.mxu0 %v3901
    %3929 = vmatprep.subr.mxu0 0.0
    %3930 = vmatpush1.msra.mxu0 %v3902
    %3931 = vmatprep.subr.mxu0 0.0
    %3932 = vmatpush1.msra.mxu0 %v3903
    %3933 = vmatprep.subr.mxu0 0.0
    %3934 = vmatpush1.msra.mxu0 %v3904
    %3935 = vmatprep.subr.mxu0 0.0
    %3936 = vmatpush1.msra.mxu0 0.0
    %3937 = vmatprep.subr.mxu0 0.0
    %3938 = vmatpush1.msra.mxu0 0.0
    %3939 = vmatprep.subr.mxu0 0.0
    %3940 = vmatpush1.msra.mxu0 0.0
    %3941 = vmatprep.subr.mxu0 0.0
    %3942 = vmatpush1.msra.mxu0 0.0
    %3943 = vmatprep.subr.mxu0 0.0
    %3944 = vmatpush1.msra.mxu0 0.0
    %3945 = vmatprep.subr.mxu0 0.0
    %3946 = vmatpush1.msra.mxu0 0.0
    %3947 = vmatprep.subr.mxu0 0.0
    %3948 = vmatpush1.msra.mxu0 0.0
    %3949 = vmatprep.subr.mxu0 0.0
    %3950 = vmatpush1.msra.mxu0 0.0
    %3951 = vmatprep.subr.mxu0 0.0
    %3952 = vmatpush1.msra.mxu0 0.0
    %3953 = vmatprep.subr.mxu0 0.0
    %3954 = vmatpush1.msra.mxu0 0.0
    %3955 = vmatprep.subr.mxu0 0.0
    %3956 = vmatpush1.msra.mxu0 0.0
    %3957 = vmatprep.subr.mxu0 0.0
    %3958 = vmatpush1.msra.mxu0 0.0
    %3959 = vmatprep.subr.mxu0 0.0
    %3960 = vmatpush1.msra.mxu0 0.0
    %3961 = vmatprep.subr.mxu0 0.0
    %3962 = vmatpush1.msra.mxu0 0.0
    %3963 = vmatprep.subr.mxu0 0.0
    %3964 = vmatpush1.msra.mxu0 0.0
    %3965 = vmatprep.subr.mxu0 0.0
    %3966 = vmatpush1.msra.mxu0 0.0
    %3967 = vmatprep.subr.mxu0 0.0
    %3968 = vmatpush1.msra.mxu0 0.0
    %3969 = vmatprep.subr.mxu0 0.0
    %3970 = vmatpush1.msra.mxu0 0.0
    %3971 = vmatprep.subr.mxu0 0.0
    %3972 = vmatpush1.msra.mxu0 0.0
    %3973 = vmatprep.subr.mxu0 0.0
    %3974 = vmatpush1.msra.mxu0 0.0
    %3975 = vmatprep.subr.mxu0 0.0
    %3976 = vmatpush1.msra.mxu0 0.0
    %3977 = vmatprep.subr.mxu0 0.0
    %3978 = vmatpush1.msra.mxu0 0.0
    %3979 = vmatprep.subr.mxu0 0.0
    %3980 = vmatpush1.msra.mxu0 0.0
    %3981 = vmatprep.subr.mxu0 0.0
    %3982 = vmatpush1.msra.mxu0 0.0
    %3983 = vmatprep.mubr.f32.mxu0 0.0
    %3984 = vmatmul.mubr.f32.gmra.mrb[0].mxu0 %v3914
    %v3985 = vpop.f32.mrb[0].mxu0
    %v3986 = vadd.f32 %v3910, %v3985
    %v3987 = vpop.f32.mrb[0].mxu0
    %3988 = vmatprep.mubr.f32.mxu0 0.0
    %3989 = vmatmul.mubr.f32.gmra.mrb[0].mxu0 %v3917
    %v3990 = vpop.f32.mrb[0].mxu0
    %v3991 = vadd.f32 %v3910, %v3990
    %v3992 = vpop.f32.mrb[0].mxu0
    %3993 = vdwg.mxu0
    %v3994 = vadd.f32 %v3801, %v3986
    %v3995 = vadd.f32 %v3802, %v3991
    %v3996 = vld [vmem:[%s16] sm:$0x1]
    %v3997 = vld [vmem:[%s17] sm:$0x1]
    %v3998 = vsel %vm223, %v3994, 0.0
    %3999 = vadd.xlane.f32.xlu0 %v3998
    %v4000 = vpop.xlane.xlu0 %3999
    %v4001 = vsel %vm223, %v3995, 0.0
    %4002 = vadd.xlane.f32.xlu0 %v4001
    %v4003 = vpop.xlane.xlu0 %4002
    %v4004 = vmul.f32 %v4000, %v3766
    %v4005 = vmul.f32 %v4003, %v3766
    %v4006 = vsub.f32 %v3994, %v4004
    %v4007 = vsub.f32 %v3995, %v4005
    %v4008 = vmul.f32 %v4006, %v4006
    %v4009 = vmul.f32 %v4007, %v4007
    %v4010 = vsel %vm223, %v4008, 0.0
    %4011 = vadd.xlane.f32.xlu0 %v4010
    %v4012 = vpop.xlane.xlu0 %4011
    %v4013 = vsel %vm223, %v4009, 0.0
    %4014 = vadd.xlane.f32.xlu0 %v4013
    %v4015 = vpop.xlane.xlu0 %4014
    %v4016 = vmul.f32 %v4012, %v3766
    %v4017 = vmul.f32 %v4015, %v3766
    %v4018 = vadd.f32 %v4016, 1e-05
    %v4019 = vadd.f32 %v4017, 1e-05
    %v4020 = vrsqrt.pop %v4018
    %v4021 = vrsqrt.pop %v4019
    %v4022 = vmul.f32 %v4006, %v4020
    %v4023 = vmul.f32 %v4007, %v4021
    %v4025 = vlaneseq
    %v4026 = vshrl.u32 %v4025, 7
    %v4027 = vsub.s32 0, %v4026
    %v4028 = vrot.slane %v3996, %v4027
    %v4030 = vmul.f32 %v4022, %v4028
    %v4031 = vmul.f32 %v4023, %v4028
    %v4033 = vlaneseq
    %v4034 = vshrl.u32 %v4033, 7
    %v4035 = vsub.s32 0, %v4034
    %v4036 = vrot.slane %v3997, %v4035
    %v4038 = vadd.f32 %v4030, %v4036
    %v4039 = vadd.f32 %v4031, %v4036
    %v4040 = vld [vmem:[%s18] sm:$0xff]
    %v4041 = vld [vmem:[%s18 + $0x8] sm:$0xff]
    %v4042 = vld [vmem:[%s18 + $0x10] sm:$0xff]
    %v4043 = vld [vmem:[%s18 + $0x18] sm:$0xff]
    %v4044 = vld [vmem:[%s19] sm:$0x1]
    %v4046 = vlaneseq
    %v4047 = vshrl.u32 %v4046, 7
    %v4048 = vsub.s32 0, %v4047
    %v4049 = vrot.slane %v4044, %v4048
    %v4052 = vsel %vm223, %v4038, 0
    %v4055 = vsel %vm223, %v4039, 0
    %4057 = vmatprep.subr.mxu0 0.0
    %4058 = vmatpush1.msra.mxu0 %v4040
    %4059 = vmatprep.subr.mxu0 0.0
    %4060 = vmatpush1.msra.mxu0 %v4041
    %4061 = vmatprep.subr.mxu0 0.0
    %4062 = vmatpush1.msra.mxu0 %v4042
    %4063 = vmatprep.subr.mxu0 0.0
    %4064 = vmatpush1.msra.mxu0 %v4043
    %4065 = vmatprep.subr.mxu0 0.0
    %4066 = vmatpush1.msra.mxu0 0.0
    %4067 = vmatprep.subr.mxu0 0.0
    %4068 = vmatpush1.msra.mxu0 0.0
    %4069 = vmatprep.subr.mxu0 0.0
    %4070 = vmatpush1.msra.mxu0 0.0
    %4071 = vmatprep.subr.mxu0 0.0
    %4072 = vmatpush1.msra.mxu0 0.0
    %4073 = vmatprep.subr.mxu0 0.0
    %4074 = vmatpush1.msra.mxu0 0.0
    %4075 = vmatprep.subr.mxu0 0.0
    %4076 = vmatpush1.msra.mxu0 0.0
    %4077 = vmatprep.subr.mxu0 0.0
    %4078 = vmatpush1.msra.mxu0 0.0
    %4079 = vmatprep.subr.mxu0 0.0
    %4080 = vmatpush1.msra.mxu0 0.0
    %4081 = vmatprep.subr.mxu0 0.0
    %4082 = vmatpush1.msra.mxu0 0.0
    %4083 = vmatprep.subr.mxu0 0.0
    %4084 = vmatpush1.msra.mxu0 0.0
    %4085 = vmatprep.subr.mxu0 0.0
    %4086 = vmatpush1.msra.mxu0 0.0
    %4087 = vmatprep.subr.mxu0 0.0
    %4088 = vmatpush1.msra.mxu0 0.0
    %4089 = vmatprep.subr.mxu0 0.0
    %4090 = vmatpush1.msra.mxu0 0.0
    %4091 = vmatprep.subr.mxu0 0.0
    %4092 = vmatpush1.msra.mxu0 0.0
    %4093 = vmatprep.subr.mxu0 0.0
    %4094 = vmatpush1.msra.mxu0 0.0
    %4095 = vmatprep.subr.mxu0 0.0
    %4096 = vmatpush1.msra.mxu0 0.0
    %4097 = vmatprep.subr.mxu0 0.0
    %4098 = vmatpush1.msra.mxu0 0.0
    %4099 = vmatprep.subr.mxu0 0.0
    %4100 = vmatpush1.msra.mxu0 0.0
    %4101 = vmatprep.subr.mxu0 0.0
    %4102 = vmatpush1.msra.mxu0 0.0
    %4103 = vmatprep.subr.mxu0 0.0
    %4104 = vmatpush1.msra.mxu0 0.0
    %4105 = vmatprep.subr.mxu0 0.0
    %4106 = vmatpush1.msra.mxu0 0.0
    %4107 = vmatprep.subr.mxu0 0.0
    %4108 = vmatpush1.msra.mxu0 0.0
    %4109 = vmatprep.subr.mxu0 0.0
    %4110 = vmatpush1.msra.mxu0 0.0
    %4111 = vmatprep.subr.mxu0 0.0
    %4112 = vmatpush1.msra.mxu0 0.0
    %4113 = vmatprep.subr.mxu0 0.0
    %4114 = vmatpush1.msra.mxu0 0.0
    %4115 = vmatprep.subr.mxu0 0.0
    %4116 = vmatpush1.msra.mxu0 0.0
    %4117 = vmatprep.subr.mxu0 0.0
    %4118 = vmatpush1.msra.mxu0 0.0
    %4119 = vmatprep.subr.mxu0 0.0
    %4120 = vmatpush1.msra.mxu0 0.0
    %4121 = vmatprep.mubr.f32.mxu0 0.0
    %4122 = vmatmul.mubr.f32.gmra.mrb[0].mxu0 %v4052
    %v4123 = vpop.f32.mrb[0].mxu0
    %v4124 = vadd.f32 %v4049, %v4123
    %v4125 = vpop.f32.mrb[0].mxu0
    %4126 = vmatprep.mubr.f32.mxu0 0.0
    %4127 = vmatmul.mubr.f32.gmra.mrb[0].mxu0 %v4055
    %v4128 = vpop.f32.mrb[0].mxu0
    %v4129 = vadd.f32 %v4049, %v4128
    %v4130 = vpop.f32.mrb[0].mxu0
    %4131 = vdwg.mxu0
    %v4132 = vmax.f32 %v4124, 0.0
    %v4133 = vmax.f32 %v4129, 0.0
    %v4134 = vld [vmem:[%s1] sm:$0x3]
    %v4135 = vld [vmem:[%s20] sm:$0xf]
    %v4136 = vld [vmem:[%s21] sm:$0x1]
    %v4138 = vlaneseq
    %v4139 = vshrl.u32 %v4138, 7
    %v4140 = vsub.s32 0, %v4139
    %v4141 = vrot.slane %v4136, %v4140
    %v4144 = vsel %vm78, %v4134, 0
    %vm4146 = vcmask 1043456
    %v4148 = vsel %vm4146, %v4135, 0
    %4150 = vmatprep.subr.mxu0 0.0
    %4151 = vmatpush1.msra.mxu0 %v4148
    %4152 = vmatprep.subr.mxu0 0.0
    %4153 = vmatpush1.msra.mxu0 0.0
    %4154 = vmatprep.subr.mxu0 0.0
    %4155 = vmatpush1.msra.mxu0 0.0
    %4156 = vmatprep.subr.mxu0 0.0
    %4157 = vmatpush1.msra.mxu0 0.0
    %4158 = vmatprep.subr.mxu0 0.0
    %4159 = vmatpush1.msra.mxu0 0.0
    %4160 = vmatprep.subr.mxu0 0.0
    %4161 = vmatpush1.msra.mxu0 0.0
    %4162 = vmatprep.subr.mxu0 0.0
    %4163 = vmatpush1.msra.mxu0 0.0
    %4164 = vmatprep.subr.mxu0 0.0
    %4165 = vmatpush1.msra.mxu0 0.0
    %4166 = vmatprep.subr.mxu0 0.0
    %4167 = vmatpush1.msra.mxu0 0.0
    %4168 = vmatprep.subr.mxu0 0.0
    %4169 = vmatpush1.msra.mxu0 0.0
    %4170 = vmatprep.subr.mxu0 0.0
    %4171 = vmatpush1.msra.mxu0 0.0
    %4172 = vmatprep.subr.mxu0 0.0
    %4173 = vmatpush1.msra.mxu0 0.0
    %4174 = vmatprep.subr.mxu0 0.0
    %4175 = vmatpush1.msra.mxu0 0.0
    %4176 = vmatprep.subr.mxu0 0.0
    %4177 = vmatpush1.msra.mxu0 0.0
    %4178 = vmatprep.subr.mxu0 0.0
    %4179 = vmatpush1.msra.mxu0 0.0
    %4180 = vmatprep.subr.mxu0 0.0
    %4181 = vmatpush1.msra.mxu0 0.0
    %4182 = vmatprep.subr.mxu0 0.0
    %4183 = vmatpush1.msra.mxu0 0.0
    %4184 = vmatprep.subr.mxu0 0.0
    %4185 = vmatpush1.msra.mxu0 0.0
    %4186 = vmatprep.subr.mxu0 0.0
    %4187 = vmatpush1.msra.mxu0 0.0
    %4188 = vmatprep.subr.mxu0 0.0
    %4189 = vmatpush1.msra.mxu0 0.0
    %4190 = vmatprep.subr.mxu0 0.0
    %4191 = vmatpush1.msra.mxu0 0.0
    %4192 = vmatprep.subr.mxu0 0.0
    %4193 = vmatpush1.msra.mxu0 0.0
    %4194 = vmatprep.subr.mxu0 0.0
    %4195 = vmatpush1.msra.mxu0 0.0
    %4196 = vmatprep.subr.mxu0 0.0
    %4197 = vmatpush1.msra.mxu0 0.0
    %4198 = vmatprep.subr.mxu0 0.0
    %4199 = vmatpush1.msra.mxu0 0.0
    %4200 = vmatprep.subr.mxu0 0.0
    %4201 = vmatpush1.msra.mxu0 0.0
    %4202 = vmatprep.subr.mxu0 0.0
    %4203 = vmatpush1.msra.mxu0 0.0
    %4204 = vmatprep.subr.mxu0 0.0
    %4205 = vmatpush1.msra.mxu0 0.0
    %4206 = vmatprep.subr.mxu0 0.0
    %4207 = vmatpush1.msra.mxu0 0.0
    %4208 = vmatprep.subr.mxu0 0.0
    %4209 = vmatpush1.msra.mxu0 0.0
    %4210 = vmatprep.subr.mxu0 0.0
    %4211 = vmatpush1.msra.mxu0 0.0
    %4212 = vmatprep.subr.mxu0 0.0
    %4213 = vmatpush1.msra.mxu0 0.0
    %4214 = vmatprep.mubr.f32.mxu0 0.0
    %4215 = vmatmul.mubr.f32.gmra.mrb[0].mxu0 %v4144
    %v4216 = vpop.f32.mrb[0].mxu0
    %v4217 = vadd.f32 %v4141, %v4216
    %v4218 = vpop.f32.mrb[0].mxu0
    %4219 = vdwg.mxu0
    %vm4220 = vcmask 17408
    %v4221 = vsel %vm4220, %v4217, -inf
    %4222 = vmax.xlane.f32.xlu0 %v4221
    %v4223 = vpop.xlane.xlu0 %4222
    %v4224 = vsub.f32 %v4217, %v4223
    %v4225 = vmul.f32 %v4224, 1.442695
    %v4226 = vpow.pop %v4225
    %v4227 = vsel %vm4220, %v4226, 0.0
    %4228 = vadd.xlane.f32.xlu0 %v4227
    %v4229 = vpop.xlane.xlu0 %4228
    %v4230 = vrcp.pop %v4229
    %v4231 = vmul.f32 %v4226, %v4230
    %vm4232 = vcmask 785408
    %v4233 = vsel %vm4232, %v4132, 0.0
    %v4234 = vrot.slane %v4233, 4
    %v4235 = vadd.f32 %v4233, %v4234
    %v4236 = vrot.slane %v4235, 2
    %v4237 = vadd.f32 %v4235, %v4236
    %v4238 = vrot.slane %v4237, 1
    %v4239 = vadd.f32 %v4237, %v4238
    %v4240 = vsel %vm4232, %v4133, 0.0
    %v4241 = vrot.slane %v4240, 4
    %v4242 = vadd.f32 %v4240, %v4241
    %v4243 = vrot.slane %v4242, 2
    %v4244 = vadd.f32 %v4242, %v4243
    %v4245 = vrot.slane %v4244, 1
    %v4246 = vadd.f32 %v4244, %v4245
    %v4247 = vrcp.pop 8.0
    %v4248 = vmul.f32 %v4239, %v4247
    %v4249 = vmul.f32 %v4246, %v4247
    %4251 = vset.pattern.permute.xlu0 0
    %4252 = vperm.xlu0 %4251, %v4231
    %v4253 = vpop.permute.xlu0 %4252
    %v4254 = vrot.slane %v4253, 1
    %v4257 = vmul.f32 %v4248, %v4253
    %v4258 = vmul.f32 %v4249, %v4254
    %4259 = vset.pattern.permute.xlu0 1
    %4260 = vperm.xlu0 %4259, %v4231
    %v4261 = vpop.permute.xlu0 %4260
    %v4262 = vrot.slane %v4261, 1
    %v4265 = vmul.f32 %v4248, %v4261
    %v4266 = vmul.f32 %v4249, %v4262
    %4269 = vrot.lane.b32.xlu0 %v4265, 96
    %v4270 = vpop.permute.xlu0 %4269
    %4271 = vrot.lane.b32.xlu0 %v4266, 96
    %v4272 = vpop.permute.xlu0 %4271
    %v4275 = vadd.f32 %v4257, %v4270
    %v4276 = vadd.f32 %v4258, %v4272
    %4277 = vset.pattern.permute.xlu0 2
    %4278 = vperm.xlu0 %4277, %v4231
    %v4279 = vpop.permute.xlu0 %4278
    %v4280 = vrot.slane %v4279, 1
    %v4283 = vmul.f32 %v4248, %v4279
    %v4284 = vmul.f32 %v4249, %v4280
    %4287 = vrot.lane.b32.xlu0 %v4283, 64
    %v4288 = vpop.permute.xlu0 %4287
    %4289 = vrot.lane.b32.xlu0 %v4284, 64
    %v4290 = vpop.permute.xlu0 %4289
    %v4293 = vadd.f32 %v4275, %v4288
    %v4294 = vadd.f32 %v4276, %v4290
    %v4295 = vld [vmem:[%s22] sm:$0xff]
    %v4296 = vld [vmem:[%s22 + $0x8] sm:$0xff]
    %v4297 = vld [vmem:[%s22 + $0x10] sm:$0xff]
    %v4298 = vld [vmem:[%s22 + $0x18] sm:$0xff]
    %v4299 = vld [vmem:[%s23] sm:$0x1]
    %v4301 = vlaneseq
    %v4302 = vshrl.u32 %v4301, 7
    %v4303 = vsub.s32 0, %v4302
    %v4304 = vrot.slane %v4299, %v4303
    %v4308 = vrot.slane %v4294, 7
    %vm4309 = vcmask 1041409
    %v4310 = vsel %vm4309, %v4308, %v4293
    %v4311 = vsel %vm223, %v4310, 0
    %4313 = vmatprep.subr.mxu0 0.0
    %4314 = vmatpush1.msra.mxu0 %v4295
    %4315 = vmatprep.subr.mxu0 0.0
    %4316 = vmatpush1.msra.mxu0 %v4296
    %4317 = vmatprep.subr.mxu0 0.0
    %4318 = vmatpush1.msra.mxu0 %v4297
    %4319 = vmatprep.subr.mxu0 0.0
    %4320 = vmatpush1.msra.mxu0 %v4298
    %4321 = vmatprep.subr.mxu0 0.0
    %4322 = vmatpush1.msra.mxu0 0.0
    %4323 = vmatprep.subr.mxu0 0.0
    %4324 = vmatpush1.msra.mxu0 0.0
    %4325 = vmatprep.subr.mxu0 0.0
    %4326 = vmatpush1.msra.mxu0 0.0
    %4327 = vmatprep.subr.mxu0 0.0
    %4328 = vmatpush1.msra.mxu0 0.0
    %4329 = vmatprep.subr.mxu0 0.0
    %4330 = vmatpush1.msra.mxu0 0.0
    %4331 = vmatprep.subr.mxu0 0.0
    %4332 = vmatpush1.msra.mxu0 0.0
    %4333 = vmatprep.subr.mxu0 0.0
    %4334 = vmatpush1.msra.mxu0 0.0
    %4335 = vmatprep.subr.mxu0 0.0
    %4336 = vmatpush1.msra.mxu0 0.0
    %4337 = vmatprep.subr.mxu0 0.0
    %4338 = vmatpush1.msra.mxu0 0.0
    %4339 = vmatprep.subr.mxu0 0.0
    %4340 = vmatpush1.msra.mxu0 0.0
    %4341 = vmatprep.subr.mxu0 0.0
    %4342 = vmatpush1.msra.mxu0 0.0
    %4343 = vmatprep.subr.mxu0 0.0
    %4344 = vmatpush1.msra.mxu0 0.0
    %4345 = vmatprep.subr.mxu0 0.0
    %4346 = vmatpush1.msra.mxu0 0.0
    %4347 = vmatprep.subr.mxu0 0.0
    %4348 = vmatpush1.msra.mxu0 0.0
    %4349 = vmatprep.subr.mxu0 0.0
    %4350 = vmatpush1.msra.mxu0 0.0
    %4351 = vmatprep.subr.mxu0 0.0
    %4352 = vmatpush1.msra.mxu0 0.0
    %4353 = vmatprep.subr.mxu0 0.0
    %4354 = vmatpush1.msra.mxu0 0.0
    %4355 = vmatprep.subr.mxu0 0.0
    %4356 = vmatpush1.msra.mxu0 0.0
    %4357 = vmatprep.subr.mxu0 0.0
    %4358 = vmatpush1.msra.mxu0 0.0
    %4359 = vmatprep.subr.mxu0 0.0
    %4360 = vmatpush1.msra.mxu0 0.0
    %4361 = vmatprep.subr.mxu0 0.0
    %4362 = vmatpush1.msra.mxu0 0.0
    %4363 = vmatprep.subr.mxu0 0.0
    %4364 = vmatpush1.msra.mxu0 0.0
    %4365 = vmatprep.subr.mxu0 0.0
    %4366 = vmatpush1.msra.mxu0 0.0
    %4367 = vmatprep.subr.mxu0 0.0
    %4368 = vmatpush1.msra.mxu0 0.0
    %4369 = vmatprep.subr.mxu0 0.0
    %4370 = vmatpush1.msra.mxu0 0.0
    %4371 = vmatprep.subr.mxu0 0.0
    %4372 = vmatpush1.msra.mxu0 0.0
    %4373 = vmatprep.subr.mxu0 0.0
    %4374 = vmatpush1.msra.mxu0 0.0
    %4375 = vmatprep.subr.mxu0 0.0
    %4376 = vmatpush1.msra.mxu0 0.0
    %4377 = vmatprep.mubr.f32.mxu0 0.0
    %4378 = vmatmul.mubr.f32.gmra.mrb[0].mxu0 %v4311
    %v4379 = vpop.f32.mrb[0].mxu0
    %v4380 = vadd.f32 %v4304, %v4379
    %v4381 = vpop.f32.mrb[0].mxu0
    %4382 = vdwg.mxu0
    %4383 = vst.msk [vmem:[#allocation5] sm:$0x3] %vm4220, %v4380
    // Predicated region
    $region98: #{branchnet_forward.1} parent=1 // pred_check
      _
    $region99: #{branchnet_forward.1} parent=1 // pred_check_branch
      %4385 = sbr.rel (0) target = $region101
    $region100: #{branchnet_forward.1} parent=1 // pred_region
      %s4387 = ssub.s32 32, 32
      %4388 = vsyncadd [#allocation6], %s4387
      %s4390 = sshll.u32 [#allocation5], 4
      %s4391 = int_to_ptr.vmem [resolvable:$true] %s4390
      %4393 = dma.vmem_to_hbm [thread:$0]  %s4391, 32, %s24, [#allocation6]
    $region101: #{branchnet_forward.1} parent=1 // pred_fallthru
      _
    // Predicated region
    $region102: #{branchnet_forward.1} parent=1 // pred_check
      _
    $region103: #{branchnet_forward.1} parent=1 // pred_check_branch
      %4395 = sbr.rel (0) target = $region105
    $region104: #{branchnet_forward.1} parent=1 // pred_region
      %4396 = dma.done [#allocation6], 32
    $region105: #{branchnet_forward.1} parent=1 // pred_fallthru
      _
    %4397 = vsyncpa [#allocation6], 1

</llo_original>
